<compile_context>
chip_gen: v6e
topology: v6e:2x2x1
jax: 0.10.0
libtpu: 0.0.40
codegen_flags: <defaults>
</compile_context>

<pallas_src>
import numpy as np

import jax
import jax.numpy as jnp
from jax.experimental import pallas as pl
from jax.experimental.pallas import tpu as pltpu


_K, _S, _P = 3, 2, 1  # kernel size, stride, padding (all layers)


# ---------------------------------------------------------------------------
# Fused kernel: 6 x (single matmul) + bias + ReLU / Sigmoid
# ---------------------------------------------------------------------------
def _autoencoder_kernel(x_ref, *refs):
    o_ref = refs[-1]
    layer_refs = refs[:-1]            # (M, bias_row) per layer
    n_layers = len(layer_refs) // 2

    h = x_ref[...].astype(jnp.bfloat16)                  # [B_BLK, Cin*Pin]
    for li in range(n_layers):
        m_ref = layer_refs[2 * li]                       # [Cin*Pin, Cout*Pout] bf16
        b_ref = layer_refs[2 * li + 1]                   # [1, Cout*Pout] f32
        acc = jnp.dot(h, m_ref[...],
                      preferred_element_type=jnp.float32)  # [B_BLK, Cout*Pout]
        acc = acc + b_ref[...]                           # broadcast over sublanes
        if li < n_layers - 1:
            h = jnp.maximum(acc, 0.0).astype(jnp.bfloat16)   # ReLU, keep bf16
        else:
            # exact sigmoid (range is exactly [0, 1] in f32)
            o_ref[...] = (1.0 / (1.0 + jnp.exp(-acc))).astype(o_ref.dtype)


# ---------------------------------------------------------------------------
# Host-side tap-selection construction (0/1 matrices, numpy, built once)
# ---------------------------------------------------------------------------
def _conv_select(hi, wi, ho, wo):
    """sel[t, p_in, p_out] = 1 iff input pixel p_in is tap t of output p_out (Conv2d)."""
    sel = np.zeros((_K * _K, hi * wi, ho * wo), np.float32)
    for ki in range(_K):
        for kj in range(_K):
            t = ki * _K + kj
            for oh in range(ho):
                ih = oh * _S - _P + ki
                if ih < 0 or ih >= hi:
                    continue
                for ow in range(wo):
                    iw = ow * _S - _P + kj
                    if iw < 0 or iw >= wi:
                        continue
                    sel[t, ih * wi + iw, oh * wo + ow] = 1.0
    return sel


def _convT_select(hi, wi, ho, wo):
    """Same, for ConvTranspose2d(stride=2, padding=1, output_padding=1)."""
    sel = np.zeros((_K * _K, hi * wi, ho * wo), np.float32)
    for ki in range(_K):
        for kj in range(_K):
            t = ki * _K + kj
            for oh in range(ho):
                num_h = oh + _P - ki
                if num_h % _S != 0:
                    continue
                ih = num_h // _S
                if ih < 0 or ih >= hi:
                    continue
                for ow in range(wo):
                    num_w = ow + _P - kj
                    if num_w % _S != 0:
                        continue
                    iw = num_w // _S
                    if iw < 0 or iw >= wi:
                        continue
                    sel[t, ih * wi + iw, oh * wo + ow] = 1.0
    return sel


# ---------------------------------------------------------------------------
# Parameter init (deterministic, PyTorch-style uniform fan-in bounds)
# ---------------------------------------------------------------------------
def _init_conv(key, cout, cin, k):
    kw_, kb_ = jax.random.split(key)
    bound = 1.0 / np.sqrt(cin * k * k)
    w = jax.random.uniform(kw_, (cout, cin, k, k), jnp.float32, -bound, bound)
    b = jax.random.uniform(kb_, (cout,), jnp.float32, -bound, bound)
    return w, b


def _init_convT(key, cin, cout, k):
    kw_, kb_ = jax.random.split(key)
    bound = 1.0 / np.sqrt(cout * k * k)   # PyTorch uses weight.size(1)*k*k
    w = jax.random.uniform(kw_, (cin, cout, k, k), jnp.float32, -bound, bound)
    b = jax.random.uniform(kb_, (cout,), jnp.float32, -bound, bound)
    return w, b


def init_params(seed=0):
    keys = jax.random.split(jax.random.PRNGKey(seed), 6)
    return {
        "e1": _init_conv(keys[0], 16, 1, 3),
        "e2": _init_conv(keys[1], 32, 16, 3),
        "e3": _init_conv(keys[2], 64, 32, 3),
        "d1": _init_convT(keys[3], 64, 32, 3),
        "d2": _init_convT(keys[4], 32, 16, 3),
        "d3": _init_convT(keys[5], 16, 1, 3),
    }


# ---------------------------------------------------------------------------
# One-time host-side fold: (conv weights, tap selection) -> one matrix / layer
# ---------------------------------------------------------------------------
def prepare_params(params, height, width):
    """Returns a flat tuple (M_l bf16 [Cin*Pin, Cout*Pout], bias_row f32
    [1, Cout*Pout]) for each of the 6 layers, in execution order."""
    assert height % 8 == 0 and width % 8 == 0, "need H, W divisible by 8"
    layers = [("e1", "conv"), ("e2", "conv"), ("e3", "conv"),
              ("d1", "convT"), ("d2", "convT"), ("d3", "convT")]
    h_cur, w_cur = height, width
    arrays = []
    for name, kind in layers:
        w, b = params[name]
        w_np = np.asarray(w)
        b_np = np.asarray(b).astype(np.float32)
        if kind == "conv":
            ho = (h_cur + 2 * _P - _K) // _S + 1
            wo = (w_cur + 2 * _P - _K) // _S + 1
            # Conv2d weight (Cout,Cin,kh,kw): per-tap [Cout, Cin]
            taps = np.stack([w_np[:, :, i, j] for i in range(_K) for j in range(_K)], 0)
            sel = _conv_select(h_cur, w_cur, ho, wo)
        else:
            ho, wo = _S * h_cur, _S * w_cur               # (Hi-1)*2 - 2 + 3 + 1 = 2*Hi
            # ConvTranspose2d weight (Cin,Cout,kh,kw): per-tap [Cout, Cin]
            taps = np.stack([w_np[:, :, i, j].T for i in range(_K) for j in range(_K)], 0)
            sel = _convT_select(h_cur, w_cur, ho, wo)
        n_taps, cout, cin = taps.shape
        pin, pout = h_cur * w_cur, ho * wo
        # Fold weights into the tap selection.  Each (p_in, p_out) pair is hit
        # by at most one tap, so every entry of M is a single weight value
        # (no additive collisions) -> exact up to the bf16 weight cast.
        m = np.einsum("tio,tuc->ciuo", sel, taps).reshape(cin * pin, cout * pout)
        bias_row = np.repeat(b_np, pout).reshape(1, cout * pout)  # (c_out*Pout) order
        arrays += [jnp.asarray(m, jnp.bfloat16), jnp.asarray(bias_row, jnp.float32)]
        h_cur, w_cur = ho, wo
    return tuple(arrays)


# ---------------------------------------------------------------------------
# Batch-block choice: fill MXU rows, keep >=2 grid steps once batch allows it
# ---------------------------------------------------------------------------
def _pick_batch_block(n):
    for b in (256, 128, 64, 32, 16, 8):
        if n >= 2 * b:          # at least two grid steps (v7x: two TensorCores)
            return b
    return 8                    # minimum = one full f32 sublane tile


# ---------------------------------------------------------------------------
# Forward pass: one pallas_call for the whole network
# ---------------------------------------------------------------------------
def autoencoder_forward(prepared, x):
    """prepared: output of prepare_params.  x: (N, 1, H, W) float32 (NCHW)."""
    n, c, height, width = x.shape
    pix = height * width
    in_feat = c * pix
    out_feat = prepared[-1].shape[1]          # last layer's Cout * H * W
    cout_last = out_feat // pix

    b_blk = _pick_batch_block(n)
    n_pad = pl.cdiv(n, b_blk) * b_blk

    x2 = x.reshape(n, in_feat)                # flattened NCHW, lane-dense rows
    if n_pad != n:
        x2 = jnp.concatenate(
            [x2, jnp.zeros((n_pad - n, in_feat), x2.dtype)], axis=0)

    def _const_spec(a):
        zeros = (0,) * a.ndim
        return pl.BlockSpec(a.shape, lambda i, z=zeros: z)   # fetched once

    in_specs = [pl.BlockSpec((b_blk, in_feat), lambda i: (i, 0))]
    in_specs += [_const_spec(a) for a in prepared]

    # Advisory cost estimate (recomputed for the folded single-matmul layers).
    const_bytes = sum(int(np.prod(a.shape)) * a.dtype.itemsize for a in prepared)
    flops = 0
    for li in range(0, len(prepared), 2):
        k_l, n_l = prepared[li].shape
        flops += 2 * k_l * n_l * n_pad
    bytes_accessed = (x2.size * x2.dtype.itemsize
                      + n_pad * out_feat * 4 + const_bytes)
    # Constants are the dominant VMEM user; leave headroom, cap below v7x's 64 MiB.
    vmem_limit = int(min(60 * 2**20, max(32 * 2**20, 2 * const_bytes + (8 << 20))))

    y2 = pl.pallas_call(
        _autoencoder_kernel,
        out_shape=jax.ShapeDtypeStruct((n_pad, out_feat), jnp.float32),
        grid=(n_pad // b_blk,),
        in_specs=in_specs,
        out_specs=pl.BlockSpec((b_blk, out_feat), lambda i: (i, 0)),
        compiler_params=pltpu.CompilerParams(
            dimension_semantics=("parallel",),   # batch blocks split across TCs
            vmem_limit_bytes=vmem_limit,
        ),
        cost_estimate=pl.CostEstimate(
            flops=int(flops),
            transcendentals=int(n_pad * out_feat),
            bytes_accessed=int(bytes_accessed),
        ),
    )(x2, *prepared)

    return y2[:n].reshape(n, cout_last, height, width)


# ---------------------------------------------------------------------------
# Pure-JAX reference (independent of the fold construction) for validation
# ---------------------------------------------------------------------------
def _reference_forward(params, x):
    def conv(h, w, b):
        y = jax.lax.conv_general_dilated(
            h, w, window_strides=(_S, _S), padding=((_P, _P), (_P, _P)),
            dimension_numbers=("NCHW", "OIHW", "NCHW"))
        return y + b.reshape(1, -1, 1, 1)

    def convT(h, w, b):
        # ConvTranspose2d(s=2, p=1, op=1) == input-dilated conv with the
        # spatially-flipped, channel-swapped kernel; pad lo=k-1-p, hi=k-1-p+op.
        w_flip = jnp.transpose(w, (1, 0, 2, 3))[:, :, ::-1, ::-1]
        y = jax.lax.conv_general_dilated(
            h, w_flip, window_strides=(1, 1),
            padding=((_K - 1 - _P, _K - _P), (_K - 1 - _P, _K - _P)),
            lhs_dilation=(_S, _S),
            dimension_numbers=("NCHW", "OIHW", "NCHW"))
        return y + b.reshape(1, -1, 1, 1)

    h = jax.nn.relu(conv(x, *params["e1"]))
    h = jax.nn.relu(conv(h, *params["e2"]))
    h = jax.nn.relu(conv(h, *params["e3"]))
    h = jax.nn.relu(convT(h, *params["d1"]))
    h = jax.nn.relu(convT(h, *params["d2"]))
    return jax.nn.sigmoid(convT(h, *params["d3"]))


if __name__ == "__main__":
    H = W = 16
    params = init_params(0)
    prepared = prepare_params(params, H, W)

    x = jax.random.normal(jax.random.PRNGKey(0), (2, 1, H, W), jnp.float32)

    fwd = jax.jit(autoencoder_forward)
    y = fwd(prepared, x)
    jax.block_until_ready(y)

    assert y.shape == (2, 1, H, W), y.shape
    assert bool(jnp.all(jnp.isfinite(y)))
    assert bool(jnp.all((y >= 0.0) & (y <= 1.0)))

    # Validate against an independent f32 XLA reference (bf16 weights/activations
    # in the kernel -> small absolute tolerance on the sigmoid output).
    y_ref = jax.jit(_reference_forward)(params, x)
    jax.block_until_ready(y_ref)
    max_err = float(jnp.max(jnp.abs(y - y_ref)))
    assert max_err < 5e-2, f"max abs err vs reference: {max_err}"

    print("KERNEL_OK")
</pallas_src>

<mosaic_0001>
module attributes {stable_mosaic.version = 11 : i64} {
  func.func @_autoencoder_kernel(%arg0: i32, %arg1: memref<8x256xf32, #tpu.memory_space<vmem>>, %arg2: memref<256x1024xbf16, #tpu.memory_space<vmem>>, %arg3: memref<1x1024xf32, #tpu.memory_space<vmem>>, %arg4: memref<1024x512xbf16, #tpu.memory_space<vmem>>, %arg5: memref<1x512xf32, #tpu.memory_space<vmem>>, %arg6: memref<512x256xbf16, #tpu.memory_space<vmem>>, %arg7: memref<1x256xf32, #tpu.memory_space<vmem>>, %arg8: memref<256x512xbf16, #tpu.memory_space<vmem>>, %arg9: memref<1x512xf32, #tpu.memory_space<vmem>>, %arg10: memref<512x1024xbf16, #tpu.memory_space<vmem>>, %arg11: memref<1x1024xf32, #tpu.memory_space<vmem>>, %arg12: memref<1024x256xbf16, #tpu.memory_space<vmem>>, %arg13: memref<1x256xf32, #tpu.memory_space<vmem>>, %arg14: memref<8x256xf32, #tpu.memory_space<vmem>>) attributes {dimension_semantics = [#tpu.dimension_semantics<parallel>], iteration_bounds = array<i64: 1>, scalar_prefetch = 0 : i64, scratch_operands = 0 : i64, tpu.core_type = #tpu.core_type<tc>, window_params = [{transform_indices = @transform_0, window_bounds = array<i64: 8, 256>}, {pipeline_mode = #tpu.pipeline_mode<synchronous>, transform_indices = @transform_1, window_bounds = array<i64: 256, 1024>}, {pipeline_mode = #tpu.pipeline_mode<synchronous>, transform_indices = @transform_2, window_bounds = array<i64: 1, 1024>}, {pipeline_mode = #tpu.pipeline_mode<synchronous>, transform_indices = @transform_3, window_bounds = array<i64: 1024, 512>}, {pipeline_mode = #tpu.pipeline_mode<synchronous>, transform_indices = @transform_4, window_bounds = array<i64: 1, 512>}, {pipeline_mode = #tpu.pipeline_mode<synchronous>, transform_indices = @transform_5, window_bounds = array<i64: 512, 256>}, {pipeline_mode = #tpu.pipeline_mode<synchronous>, transform_indices = @transform_6, window_bounds = array<i64: 1, 256>}, {pipeline_mode = #tpu.pipeline_mode<synchronous>, transform_indices = @transform_7, window_bounds = array<i64: 256, 512>}, {pipeline_mode = #tpu.pipeline_mode<synchronous>, transform_indices = @transform_8, window_bounds = array<i64: 1, 512>}, {pipeline_mode = #tpu.pipeline_mode<synchronous>, transform_indices = @transform_9, window_bounds = array<i64: 512, 1024>}, {pipeline_mode = #tpu.pipeline_mode<synchronous>, transform_indices = @transform_10, window_bounds = array<i64: 1, 1024>}, {pipeline_mode = #tpu.pipeline_mode<synchronous>, transform_indices = @transform_11, window_bounds = array<i64: 1024, 256>}, {pipeline_mode = #tpu.pipeline_mode<synchronous>, transform_indices = @transform_12, window_bounds = array<i64: 1, 256>}, {transform_indices = @transform_13, window_bounds = array<i64: 8, 256>}]} {
    %c0 = arith.constant 0 : index
    %c0_0 = arith.constant 0 : index
    %0 = vector.load %arg1[%c0, %c0_0] : memref<8x256xf32, #tpu.memory_space<vmem>>, vector<8x256xf32>
    %1 = arith.truncf %0 : vector<8x256xf32> to vector<8x256xbf16>
    %c0_1 = arith.constant 0 : index
    %c0_2 = arith.constant 0 : index
    %2 = vector.load %arg2[%c0_1, %c0_2] : memref<256x1024xbf16, #tpu.memory_space<vmem>>, vector<256x1024xbf16>
    %cst = arith.constant dense<0.000000e+00> : vector<8x1024xf32>
    %3 = tpu.matmul %1, %2, %cst {dimension_numbers = #tpu.dot_dimension_numbers<[1], [0], [0], [1], [0, 0, 1, 1], [], []>} : vector<8x256xbf16>, vector<256x1024xbf16>, vector<8x1024xf32> -> vector<8x1024xf32>
    %c0_3 = arith.constant 0 : index
    %c0_4 = arith.constant 0 : index
    %4 = vector.load %arg3[%c0_3, %c0_4] : memref<1x1024xf32, #tpu.memory_space<vmem>>, vector<1x1024xf32>
    %5 = vector.broadcast %4 : vector<1x1024xf32> to vector<8x1024xf32>
    %6 = arith.addf %3, %5 : vector<8x1024xf32>
    %cst_5 = arith.constant 0.000000e+00 : f32
    %7 = vector.broadcast %cst_5 : f32 to vector<8x1024xf32>
    %8 = arith.maximumf %6, %7 : vector<8x1024xf32>
    %9 = arith.truncf %8 : vector<8x1024xf32> to vector<8x1024xbf16>
    %c0_6 = arith.constant 0 : index
    %c0_7 = arith.constant 0 : index
    %10 = vector.load %arg4[%c0_6, %c0_7] : memref<1024x512xbf16, #tpu.memory_space<vmem>>, vector<1024x512xbf16>
    %cst_8 = arith.constant dense<0.000000e+00> : vector<8x512xf32>
    %11 = tpu.matmul %9, %10, %cst_8 {dimension_numbers = #tpu.dot_dimension_numbers<[1], [0], [0], [1], [0, 0, 1, 1], [], []>} : vector<8x1024xbf16>, vector<1024x512xbf16>, vector<8x512xf32> -> vector<8x512xf32>
    %c0_9 = arith.constant 0 : index
    %c0_10 = arith.constant 0 : index
    %12 = vector.load %arg5[%c0_9, %c0_10] : memref<1x512xf32, #tpu.memory_space<vmem>>, vector<1x512xf32>
    %13 = vector.broadcast %12 : vector<1x512xf32> to vector<8x512xf32>
    %14 = arith.addf %11, %13 : vector<8x512xf32>
    %cst_11 = arith.constant 0.000000e+00 : f32
    %15 = vector.broadcast %cst_11 : f32 to vector<8x512xf32>
    %16 = arith.maximumf %14, %15 : vector<8x512xf32>
    %17 = arith.truncf %16 : vector<8x512xf32> to vector<8x512xbf16>
    %c0_12 = arith.constant 0 : index
    %c0_13 = arith.constant 0 : index
    %18 = vector.load %arg6[%c0_12, %c0_13] : memref<512x256xbf16, #tpu.memory_space<vmem>>, vector<512x256xbf16>
    %cst_14 = arith.constant dense<0.000000e+00> : vector<8x256xf32>
    %19 = tpu.matmul %17, %18, %cst_14 {dimension_numbers = #tpu.dot_dimension_numbers<[1], [0], [0], [1], [0, 0, 1, 1], [], []>} : vector<8x512xbf16>, vector<512x256xbf16>, vector<8x256xf32> -> vector<8x256xf32>
    %c0_15 = arith.constant 0 : index
    %c0_16 = arith.constant 0 : index
    %20 = vector.load %arg7[%c0_15, %c0_16] : memref<1x256xf32, #tpu.memory_space<vmem>>, vector<1x256xf32>
    %21 = vector.broadcast %20 : vector<1x256xf32> to vector<8x256xf32>
    %22 = arith.addf %19, %21 : vector<8x256xf32>
    %cst_17 = arith.constant 0.000000e+00 : f32
    %23 = vector.broadcast %cst_17 : f32 to vector<8x256xf32>
    %24 = arith.maximumf %22, %23 : vector<8x256xf32>
    %25 = arith.truncf %24 : vector<8x256xf32> to vector<8x256xbf16>
    %c0_18 = arith.constant 0 : index
    %c0_19 = arith.constant 0 : index
    %26 = vector.load %arg8[%c0_18, %c0_19] : memref<256x512xbf16, #tpu.memory_space<vmem>>, vector<256x512xbf16>
    %cst_20 = arith.constant dense<0.000000e+00> : vector<8x512xf32>
    %27 = tpu.matmul %25, %26, %cst_20 {dimension_numbers = #tpu.dot_dimension_numbers<[1], [0], [0], [1], [0, 0, 1, 1], [], []>} : vector<8x256xbf16>, vector<256x512xbf16>, vector<8x512xf32> -> vector<8x512xf32>
    %c0_21 = arith.constant 0 : index
    %c0_22 = arith.constant 0 : index
    %28 = vector.load %arg9[%c0_21, %c0_22] : memref<1x512xf32, #tpu.memory_space<vmem>>, vector<1x512xf32>
    %29 = vector.broadcast %28 : vector<1x512xf32> to vector<8x512xf32>
    %30 = arith.addf %27, %29 : vector<8x512xf32>
    %cst_23 = arith.constant 0.000000e+00 : f32
    %31 = vector.broadcast %cst_23 : f32 to vector<8x512xf32>
    %32 = arith.maximumf %30, %31 : vector<8x512xf32>
    %33 = arith.truncf %32 : vector<8x512xf32> to vector<8x512xbf16>
    %c0_24 = arith.constant 0 : index
    %c0_25 = arith.constant 0 : index
    %34 = vector.load %arg10[%c0_24, %c0_25] : memref<512x1024xbf16, #tpu.memory_space<vmem>>, vector<512x1024xbf16>
    %cst_26 = arith.constant dense<0.000000e+00> : vector<8x1024xf32>
    %35 = tpu.matmul %33, %34, %cst_26 {dimension_numbers = #tpu.dot_dimension_numbers<[1], [0], [0], [1], [0, 0, 1, 1], [], []>} : vector<8x512xbf16>, vector<512x1024xbf16>, vector<8x1024xf32> -> vector<8x1024xf32>
    %c0_27 = arith.constant 0 : index
    %c0_28 = arith.constant 0 : index
    %36 = vector.load %arg11[%c0_27, %c0_28] : memref<1x1024xf32, #tpu.memory_space<vmem>>, vector<1x1024xf32>
    %37 = vector.broadcast %36 : vector<1x1024xf32> to vector<8x1024xf32>
    %38 = arith.addf %35, %37 : vector<8x1024xf32>
    %cst_29 = arith.constant 0.000000e+00 : f32
    %39 = vector.broadcast %cst_29 : f32 to vector<8x1024xf32>
    %40 = arith.maximumf %38, %39 : vector<8x1024xf32>
    %41 = arith.truncf %40 : vector<8x1024xf32> to vector<8x1024xbf16>
    %c0_30 = arith.constant 0 : index
    %c0_31 = arith.constant 0 : index
    %42 = vector.load %arg12[%c0_30, %c0_31] : memref<1024x256xbf16, #tpu.memory_space<vmem>>, vector<1024x256xbf16>
    %cst_32 = arith.constant dense<0.000000e+00> : vector<8x256xf32>
    %43 = tpu.matmul %41, %42, %cst_32 {dimension_numbers = #tpu.dot_dimension_numbers<[1], [0], [0], [1], [0, 0, 1, 1], [], []>} : vector<8x1024xbf16>, vector<1024x256xbf16>, vector<8x256xf32> -> vector<8x256xf32>
    %c0_33 = arith.constant 0 : index
    %c0_34 = arith.constant 0 : index
    %44 = vector.load %arg13[%c0_33, %c0_34] : memref<1x256xf32, #tpu.memory_space<vmem>>, vector<1x256xf32>
    %45 = vector.broadcast %44 : vector<1x256xf32> to vector<8x256xf32>
    %46 = arith.addf %43, %45 : vector<8x256xf32>
    %cst_35 = arith.constant 0.000000e+00 : f32
    %47 = vector.broadcast %cst_35 : f32 to vector<8x256xf32>
    %48 = arith.subf %47, %46 : vector<8x256xf32>
    %49 = math.exp %48 : vector<8x256xf32>
    %cst_36 = arith.constant 1.000000e+00 : f32
    %50 = vector.broadcast %cst_36 : f32 to vector<8x256xf32>
    %51 = arith.addf %50, %49 : vector<8x256xf32>
    %cst_37 = arith.constant 1.000000e+00 : f32
    %52 = vector.broadcast %cst_37 : f32 to vector<8x256xf32>
    %53 = arith.divf %52, %51 : vector<8x256xf32>
    %c0_38 = arith.constant 0 : index
    %c0_39 = arith.constant 0 : index
    %54 = vector.load %arg14[%c0_38, %c0_39] : memref<8x256xf32, #tpu.memory_space<vmem>>, vector<8x256xf32>
    tpu.vector_store %arg14[%c0_38, %c0_39], %53 {strides = array<i32>} : memref<8x256xf32, #tpu.memory_space<vmem>>, vector<8x256xf32>,
    return
  }
  func.func @transform_0(%arg0: i32) -> (i32, i32) {
    %c0_i32 = arith.constant 0 : i32
    %c0_i32_0 = arith.constant 0 : i32
    return %arg0, %c0_i32 : i32, i32
  }
  func.func @transform_1(%arg0: i32) -> (i32, i32) {
    %c0_i32 = arith.constant 0 : i32
    %c0_i32_0 = arith.constant 0 : i32
    %c0_i32_1 = arith.constant 0 : i32
    return %c0_i32, %c0_i32_0 : i32, i32
  }
  func.func @transform_2(%arg0: i32) -> (i32, i32) {
    %c0_i32 = arith.constant 0 : i32
    %c0_i32_0 = arith.constant 0 : i32
    %c0_i32_1 = arith.constant 0 : i32
    return %c0_i32, %c0_i32_0 : i32, i32
  }
  func.func @transform_3(%arg0: i32) -> (i32, i32) {
    %c0_i32 = arith.constant 0 : i32
    %c0_i32_0 = arith.constant 0 : i32
    %c0_i32_1 = arith.constant 0 : i32
    return %c0_i32, %c0_i32_0 : i32, i32
  }
  func.func @transform_4(%arg0: i32) -> (i32, i32) {
    %c0_i32 = arith.constant 0 : i32
    %c0_i32_0 = arith.constant 0 : i32
    %c0_i32_1 = arith.constant 0 : i32
    return %c0_i32, %c0_i32_0 : i32, i32
  }
  func.func @transform_5(%arg0: i32) -> (i32, i32) {
    %c0_i32 = arith.constant 0 : i32
    %c0_i32_0 = arith.constant 0 : i32
    %c0_i32_1 = arith.constant 0 : i32
    return %c0_i32, %c0_i32_0 : i32, i32
  }
  func.func @transform_6(%arg0: i32) -> (i32, i32) {
    %c0_i32 = arith.constant 0 : i32
    %c0_i32_0 = arith.constant 0 : i32
    %c0_i32_1 = arith.constant 0 : i32
    return %c0_i32, %c0_i32_0 : i32, i32
  }
  func.func @transform_7(%arg0: i32) -> (i32, i32) {
    %c0_i32 = arith.constant 0 : i32
    %c0_i32_0 = arith.constant 0 : i32
    %c0_i32_1 = arith.constant 0 : i32
    return %c0_i32, %c0_i32_0 : i32, i32
  }
  func.func @transform_8(%arg0: i32) -> (i32, i32) {
    %c0_i32 = arith.constant 0 : i32
    %c0_i32_0 = arith.constant 0 : i32
    %c0_i32_1 = arith.constant 0 : i32
    return %c0_i32, %c0_i32_0 : i32, i32
  }
  func.func @transform_9(%arg0: i32) -> (i32, i32) {
    %c0_i32 = arith.constant 0 : i32
    %c0_i32_0 = arith.constant 0 : i32
    %c0_i32_1 = arith.constant 0 : i32
    return %c0_i32, %c0_i32_0 : i32, i32
  }
  func.func @transform_10(%arg0: i32) -> (i32, i32) {
    %c0_i32 = arith.constant 0 : i32
    %c0_i32_0 = arith.constant 0 : i32
    %c0_i32_1 = arith.constant 0 : i32
    return %c0_i32, %c0_i32_0 : i32, i32
  }
  func.func @transform_11(%arg0: i32) -> (i32, i32) {
    %c0_i32 = arith.constant 0 : i32
    %c0_i32_0 = arith.constant 0 : i32
    %c0_i32_1 = arith.constant 0 : i32
    return %c0_i32, %c0_i32_0 : i32, i32
  }
  func.func @transform_12(%arg0: i32) -> (i32, i32) {
    %c0_i32 = arith.constant 0 : i32
    %c0_i32_0 = arith.constant 0 : i32
    %c0_i32_1 = arith.constant 0 : i32
    return %c0_i32, %c0_i32_0 : i32, i32
  }
  func.func @transform_13(%arg0: i32) -> (i32, i32) {
    %c0_i32 = arith.constant 0 : i32
    %c0_i32_0 = arith.constant 0 : i32
    return %arg0, %c0_i32 : i32, i32
  }
}

</mosaic_0001>

<llo_original>
// kernel: autoencoder_forward.1
$region0: #{autoencoder_forward.1}
  #allocation0 [shape = 'u32[]', space=smem, size = 0x4, offset = 0x4, fixed_abs, tag = 'smem constant byte address 0x4 - core index']
  #allocation1 [shape = 'u32[144,128]{1,0:T(1,128)}', space=vmem, size = 0x12000, scoped, tag = 'internal scratch']
  %s0 = inlined_call_operand.vmem [shape: f32[8,256], index: 0, kind: input, shape index: {}]
  %s1 = inlined_call_operand.hbm [shape: bf16[256,1024], index: 1, kind: input, shape index: {}]
  %s2 = inlined_call_operand.vmem [shape: f32[1,1024], index: 2, kind: input, shape index: {}]
  %s3 = inlined_call_operand.hbm [shape: bf16[1024,512], index: 3, kind: input, shape index: {}]
  %s4 = inlined_call_operand.vmem [shape: f32[1,512], index: 4, kind: input, shape index: {}]
  %s5 = inlined_call_operand.hbm [shape: bf16[512,256], index: 5, kind: input, shape index: {}]
  %s6 = inlined_call_operand.vmem [shape: f32[1,256], index: 6, kind: input, shape index: {}]
  %s7 = inlined_call_operand.hbm [shape: bf16[256,512], index: 7, kind: input, shape index: {}]
  %s8 = inlined_call_operand.vmem [shape: f32[1,512], index: 8, kind: input, shape index: {}]
  %s9 = inlined_call_operand.hbm [shape: bf16[512,1024], index: 9, kind: input, shape index: {}]
  %s10 = inlined_call_operand.vmem [shape: f32[1,1024], index: 10, kind: input, shape index: {}]
  %s11 = inlined_call_operand.hbm [shape: bf16[1024,256], index: 11, kind: input, shape index: {}]
  %s12 = inlined_call_operand.vmem [shape: f32[1,256], index: 12, kind: input, shape index: {}]
  %s13 = inlined_call_operand.vmem [shape: f32[8,256], index: 13, kind: output, shape index: {}]
  %s14 = sld [smem:[#allocation0]]
  $region86: #{autoencoder_forward.1} parent=0
    _
  %s16 = ssub.s32 1, %s14
  %s17 = scalar_select 0, %s16, %s14
  $region1: #{autoencoder_forward.1} parent=0
    #allocation2 [shape = 'u8[524288]{0}', space=vmem, size = 0x80000, scoped, tag = 'input window, operand 1, single buffered']
    #allocation3 [shape = 's32[1]{0}', space=sflag, size = 0x4, scoped, tag = 'scoped memory for autoencoder_forward.1']
    #allocation4 [shape = 'u8[1048576]{0}', space=vmem, size = 0x100000, scoped, tag = 'input window, operand 3, single buffered']
    #allocation5 [shape = 's32[1]{0}', space=sflag, size = 0x4, scoped, tag = 'scoped memory for autoencoder_forward.1']
    #allocation6 [shape = 'u8[262144]{0}', space=vmem, size = 0x40000, scoped, tag = 'input window, operand 5, single buffered']
    #allocation7 [shape = 'u8[262144]{0}', space=vmem, size = 0x40000, scoped, tag = 'input window, operand 7, single buffered']
    #allocation8 [shape = 's32[1]{0}', space=sflag, size = 0x4, scoped, tag = 'scoped memory for autoencoder_forward.1']
    #allocation9 [shape = 'u8[1048576]{0}', space=vmem, size = 0x100000, scoped, tag = 'input window, operand 9, single buffered']
    #allocation10 [shape = 'u8[524288]{0}', space=vmem, size = 0x80000, scoped, tag = 'input window, operand 11, single buffered']
    #allocation11 [shape = 's32[1]{0}', space=sflag, size = 0x4, scoped, tag = 'scoped memory for autoencoder_forward.1']
    %18 = vsyncpa [#allocation3], 0
    %19 = vsyncpa [#allocation5], 0
    %20 = vsyncpa [#allocation8], 0
    %21 = vsyncpa [#allocation11], 0
    // Predicated region
    $region2: #{autoencoder_forward.1} parent=1 // pred_check
      _
    $region3: #{autoencoder_forward.1} parent=1 // pred_check_branch
      %23 = sbr.rel (0) target = $region5
    $region4: #{autoencoder_forward.1} parent=1 // pred_region
      _
    $region5: #{autoencoder_forward.1} parent=1 // pred_fallthru
      _
    // Predicated region
    $region6: #{autoencoder_forward.1} parent=1 // pred_check
      _
    $region7: #{autoencoder_forward.1} parent=1 // pred_check_branch
      %25 = sbr.rel (0) target = $region9
    $region8: #{autoencoder_forward.1} parent=1 // pred_region
      %s27 = ssub.s32 16384, 16384
      %28 = vsyncadd [#allocation3], %s27
      %s29 = sshll.u32 [#allocation2], 4
      %s30 = int_to_ptr.vmem [resolvable:$true] %s29
      %35 = dma.hbm_to_vmem [thread:$0]  %s1, 16384, %s30, [#allocation3], 512, 512, 32
    $region9: #{autoencoder_forward.1} parent=1 // pred_fallthru
      _
    // Predicated region
    $region10: #{autoencoder_forward.1} parent=1 // pred_check
      _
    $region11: #{autoencoder_forward.1} parent=1 // pred_check_branch
      %37 = sbr.rel (0) target = $region13
    $region12: #{autoencoder_forward.1} parent=1 // pred_region
      _
    $region13: #{autoencoder_forward.1} parent=1 // pred_fallthru
      _
    // Predicated region
    $region14: #{autoencoder_forward.1} parent=1 // pred_check
      _
    $region15: #{autoencoder_forward.1} parent=1 // pred_check_branch
      %39 = sbr.rel (0) target = $region17
    $region16: #{autoencoder_forward.1} parent=1 // pred_region
      %s41 = ssub.s32 32768, 32768
      %42 = vsyncadd [#allocation5], %s41
      %s43 = sshll.u32 [#allocation4], 4
      %s44 = int_to_ptr.vmem [resolvable:$true] %s43
      %49 = dma.hbm_to_vmem [thread:$0]  %s3, 32768, %s44, [#allocation5], 256, 256, 16
    $region17: #{autoencoder_forward.1} parent=1 // pred_fallthru
      _
    // Predicated region
    $region18: #{autoencoder_forward.1} parent=1 // pred_check
      _
    $region19: #{autoencoder_forward.1} parent=1 // pred_check_branch
      %51 = sbr.rel (0) target = $region21
    $region20: #{autoencoder_forward.1} parent=1 // pred_region
      _
    $region21: #{autoencoder_forward.1} parent=1 // pred_fallthru
      _
    // Predicated region
    $region22: #{autoencoder_forward.1} parent=1 // pred_check
      _
    $region23: #{autoencoder_forward.1} parent=1 // pred_check_branch
      %53 = sbr.rel (0) target = $region25
    $region24: #{autoencoder_forward.1} parent=1 // pred_region
      %s55 = ssub.s32 8192, 8192
      %56 = vsyncadd [#allocation5], %s55
      %s57 = sshll.u32 [#allocation6], 4
      %s58 = int_to_ptr.vmem [resolvable:$true] %s57
      %63 = dma.hbm_to_vmem [thread:$0]  %s5, 8192, %s58, [#allocation5], 128, 128, 8
    $region25: #{autoencoder_forward.1} parent=1 // pred_fallthru
      _
    // Predicated region
    $region26: #{autoencoder_forward.1} parent=1 // pred_check
      _
    $region27: #{autoencoder_forward.1} parent=1 // pred_check_branch
      %65 = sbr.rel (0) target = $region29
    $region28: #{autoencoder_forward.1} parent=1 // pred_region
      _
    $region29: #{autoencoder_forward.1} parent=1 // pred_fallthru
      _
    // Predicated region
    $region30: #{autoencoder_forward.1} parent=1 // pred_check
      _
    $region31: #{autoencoder_forward.1} parent=1 // pred_check_branch
      %67 = sbr.rel (0) target = $region33
    $region32: #{autoencoder_forward.1} parent=1 // pred_region
      %s69 = ssub.s32 8192, 8192
      %70 = vsyncadd [#allocation8], %s69
      %s71 = sshll.u32 [#allocation7], 4
      %s72 = int_to_ptr.vmem [resolvable:$true] %s71
      %77 = dma.hbm_to_vmem [thread:$0]  %s7, 8192, %s72, [#allocation8], 256, 256, 16
    $region33: #{autoencoder_forward.1} parent=1 // pred_fallthru
      _
    // Predicated region
    $region34: #{autoencoder_forward.1} parent=1 // pred_check
      _
    $region35: #{autoencoder_forward.1} parent=1 // pred_check_branch
      %79 = sbr.rel (0) target = $region37
    $region36: #{autoencoder_forward.1} parent=1 // pred_region
      _
    $region37: #{autoencoder_forward.1} parent=1 // pred_fallthru
      _
    // Predicated region
    $region38: #{autoencoder_forward.1} parent=1 // pred_check
      _
    $region39: #{autoencoder_forward.1} parent=1 // pred_check_branch
      %81 = sbr.rel (0) target = $region41
    $region40: #{autoencoder_forward.1} parent=1 // pred_region
      %s83 = ssub.s32 32768, 32768
      %84 = vsyncadd [#allocation8], %s83
      %s85 = sshll.u32 [#allocation9], 4
      %s86 = int_to_ptr.vmem [resolvable:$true] %s85
      %91 = dma.hbm_to_vmem [thread:$0]  %s9, 32768, %s86, [#allocation8], 512, 512, 32
    $region41: #{autoencoder_forward.1} parent=1 // pred_fallthru
      _
    // Predicated region
    $region42: #{autoencoder_forward.1} parent=1 // pred_check
      _
    $region43: #{autoencoder_forward.1} parent=1 // pred_check_branch
      %93 = sbr.rel (0) target = $region45
    $region44: #{autoencoder_forward.1} parent=1 // pred_region
      _
    $region45: #{autoencoder_forward.1} parent=1 // pred_fallthru
      _
    // Predicated region
    $region46: #{autoencoder_forward.1} parent=1 // pred_check
      _
    $region47: #{autoencoder_forward.1} parent=1 // pred_check_branch
      %95 = sbr.rel (0) target = $region49
    $region48: #{autoencoder_forward.1} parent=1 // pred_region
      %s97 = ssub.s32 16384, 16384
      %98 = vsyncadd [#allocation11], %s97
      %s99 = sshll.u32 [#allocation10], 4
      %s100 = int_to_ptr.vmem [resolvable:$true] %s99
      %105 = dma.hbm_to_vmem [thread:$0]  %s11, 16384, %s100, [#allocation11], 128, 128, 8
    $region49: #{autoencoder_forward.1} parent=1 // pred_fallthru
      _
    // Predicated region
    $region50: #{autoencoder_forward.1} parent=1 // pred_check
      _
    $region51: #{autoencoder_forward.1} parent=1 // pred_check_branch
      %107 = sbr.rel (0) target = $region53
    $region52: #{autoencoder_forward.1} parent=1 // pred_region
      _
    $region53: #{autoencoder_forward.1} parent=1 // pred_fallthru
      _
    // Predicated region
    $region54: #{autoencoder_forward.1} parent=1 // pred_check
      _
    $region55: #{autoencoder_forward.1} parent=1 // pred_check_branch
      %109 = sbr.rel (0) target = $region57
    $region56: #{autoencoder_forward.1} parent=1 // pred_region
      %110 = dma.done [#allocation3], 16384
    $region57: #{autoencoder_forward.1} parent=1 // pred_fallthru
      _
    // Predicated region
    $region58: #{autoencoder_forward.1} parent=1 // pred_check
      _
    $region59: #{autoencoder_forward.1} parent=1 // pred_check_branch
      %112 = sbr.rel (0) target = $region61
    $region60: #{autoencoder_forward.1} parent=1 // pred_region
      %113 = dma.done [#allocation5], 32768
    $region61: #{autoencoder_forward.1} parent=1 // pred_fallthru
      _
    // Predicated region
    $region62: #{autoencoder_forward.1} parent=1 // pred_check
      _
    $region63: #{autoencoder_forward.1} parent=1 // pred_check_branch
      %115 = sbr.rel (0) target = $region65
    $region64: #{autoencoder_forward.1} parent=1 // pred_region
      %116 = dma.done [#allocation5], 8192
    $region65: #{autoencoder_forward.1} parent=1 // pred_fallthru
      _
    // Predicated region
    $region66: #{autoencoder_forward.1} parent=1 // pred_check
      _
    $region67: #{autoencoder_forward.1} parent=1 // pred_check_branch
      %118 = sbr.rel (0) target = $region69
    $region68: #{autoencoder_forward.1} parent=1 // pred_region
      %119 = dma.done [#allocation8], 8192
    $region69: #{autoencoder_forward.1} parent=1 // pred_fallthru
      _
    // Predicated region
    $region70: #{autoencoder_forward.1} parent=1 // pred_check
      _
    $region71: #{autoencoder_forward.1} parent=1 // pred_check_branch
      %121 = sbr.rel (0) target = $region73
    $region72: #{autoencoder_forward.1} parent=1 // pred_region
      %122 = dma.done [#allocation8], 32768
    $region73: #{autoencoder_forward.1} parent=1 // pred_fallthru
      _
    // Predicated region
    $region74: #{autoencoder_forward.1} parent=1 // pred_check
      _
    $region75: #{autoencoder_forward.1} parent=1 // pred_check_branch
      %124 = sbr.rel (0) target = $region77
    $region76: #{autoencoder_forward.1} parent=1 // pred_region
      %125 = dma.done [#allocation11], 16384
    $region77: #{autoencoder_forward.1} parent=1 // pred_fallthru
      _
    %v126 = vld [vmem:[%s0] sm:$0xff]
    %v127 = vld [vmem:[%s0 + $0x8] sm:$0xff]
    %v128 = vpack.c.bf16 %v126, %v126
    %v129 = vpack.c.bf16 %v127, %v127
    %v130 = vld [vmem:[#allocation2] sm:$0xff]
    %v131 = vld [vmem:[#allocation2 + $0x8] sm:$0xff]
    %v132 = vld [vmem:[#allocation2 + $0x10] sm:$0xff]
    %v133 = vld [vmem:[#allocation2 + $0x18] sm:$0xff]
    %v134 = vld [vmem:[#allocation2 + $0x20] sm:$0xff]
    %v135 = vld [vmem:[#allocation2 + $0x28] sm:$0xff]
    %v136 = vld [vmem:[#allocation2 + $0x30] sm:$0xff]
    %v137 = vld [vmem:[#allocation2 + $0x38] sm:$0xff]
    %v138 = vld [vmem:[#allocation2 + $0x40] sm:$0xff]
    %v139 = vld [vmem:[#allocation2 + $0x48] sm:$0xff]
    %v140 = vld [vmem:[#allocation2 + $0x50] sm:$0xff]
    %v141 = vld [vmem:[#allocation2 + $0x58] sm:$0xff]
    %v142 = vld [vmem:[#allocation2 + $0x60] sm:$0xff]
    %v143 = vld [vmem:[#allocation2 + $0x68] sm:$0xff]
    %v144 = vld [vmem:[#allocation2 + $0x70] sm:$0xff]
    %v145 = vld [vmem:[#allocation2 + $0x78] sm:$0xff]
    %v146 = vld [vmem:[#allocation2 + $0x80] sm:$0xff]
    %v147 = vld [vmem:[#allocation2 + $0x88] sm:$0xff]
    %v148 = vld [vmem:[#allocation2 + $0x90] sm:$0xff]
    %v149 = vld [vmem:[#allocation2 + $0x98] sm:$0xff]
    %v150 = vld [vmem:[#allocation2 + $0xa0] sm:$0xff]
    %v151 = vld [vmem:[#allocation2 + $0xa8] sm:$0xff]
    %v152 = vld [vmem:[#allocation2 + $0xb0] sm:$0xff]
    %v153 = vld [vmem:[#allocation2 + $0xb8] sm:$0xff]
    %v154 = vld [vmem:[#allocation2 + $0xc0] sm:$0xff]
    %v155 = vld [vmem:[#allocation2 + $0xc8] sm:$0xff]
    %v156 = vld [vmem:[#allocation2 + $0xd0] sm:$0xff]
    %v157 = vld [vmem:[#allocation2 + $0xd8] sm:$0xff]
    %v158 = vld [vmem:[#allocation2 + $0xe0] sm:$0xff]
    %v159 = vld [vmem:[#allocation2 + $0xe8] sm:$0xff]
    %v160 = vld [vmem:[#allocation2 + $0xf0] sm:$0xff]
    %v161 = vld [vmem:[#allocation2 + $0xf8] sm:$0xff]
    %v162 = vld [vmem:[#allocation2 + $0x100] sm:$0xff]
    %v163 = vld [vmem:[#allocation2 + $0x108] sm:$0xff]
    %v164 = vld [vmem:[#allocation2 + $0x110] sm:$0xff]
    %v165 = vld [vmem:[#allocation2 + $0x118] sm:$0xff]
    %v166 = vld [vmem:[#allocation2 + $0x120] sm:$0xff]
    %v167 = vld [vmem:[#allocation2 + $0x128] sm:$0xff]
    %v168 = vld [vmem:[#allocation2 + $0x130] sm:$0xff]
    %v169 = vld [vmem:[#allocation2 + $0x138] sm:$0xff]
    %v170 = vld [vmem:[#allocation2 + $0x140] sm:$0xff]
    %v171 = vld [vmem:[#allocation2 + $0x148] sm:$0xff]
    %v172 = vld [vmem:[#allocation2 + $0x150] sm:$0xff]
    %v173 = vld [vmem:[#allocation2 + $0x158] sm:$0xff]
    %v174 = vld [vmem:[#allocation2 + $0x160] sm:$0xff]
    %v175 = vld [vmem:[#allocation2 + $0x168] sm:$0xff]
    %v176 = vld [vmem:[#allocation2 + $0x170] sm:$0xff]
    %v177 = vld [vmem:[#allocation2 + $0x178] sm:$0xff]
    %v178 = vld [vmem:[#allocation2 + $0x180] sm:$0xff]
    %v179 = vld [vmem:[#allocation2 + $0x188] sm:$0xff]
    %v180 = vld [vmem:[#allocation2 + $0x190] sm:$0xff]
    %v181 = vld [vmem:[#allocation2 + $0x198] sm:$0xff]
    %v182 = vld [vmem:[#allocation2 + $0x1a0] sm:$0xff]
    %v183 = vld [vmem:[#allocation2 + $0x1a8] sm:$0xff]
    %v184 = vld [vmem:[#allocation2 + $0x1b0] sm:$0xff]
    %v185 = vld [vmem:[#allocation2 + $0x1b8] sm:$0xff]
    %v186 = vld [vmem:[#allocation2 + $0x1c0] sm:$0xff]
    %v187 = vld [vmem:[#allocation2 + $0x1c8] sm:$0xff]
    %v188 = vld [vmem:[#allocation2 + $0x1d0] sm:$0xff]
    %v189 = vld [vmem:[#allocation2 + $0x1d8] sm:$0xff]
    %v190 = vld [vmem:[#allocation2 + $0x1e0] sm:$0xff]
    %v191 = vld [vmem:[#allocation2 + $0x1e8] sm:$0xff]
    %v192 = vld [vmem:[#allocation2 + $0x1f0] sm:$0xff]
    %v193 = vld [vmem:[#allocation2 + $0x1f8] sm:$0xff]
    %v194 = vld [vmem:[#allocation2 + $0x200] sm:$0xff]
    %v195 = vld [vmem:[#allocation2 + $0x208] sm:$0xff]
    %v196 = vld [vmem:[#allocation2 + $0x210] sm:$0xff]
    %v197 = vld [vmem:[#allocation2 + $0x218] sm:$0xff]
    %v198 = vld [vmem:[#allocation2 + $0x220] sm:$0xff]
    %v199 = vld [vmem:[#allocation2 + $0x228] sm:$0xff]
    %v200 = vld [vmem:[#allocation2 + $0x230] sm:$0xff]
    %v201 = vld [vmem:[#allocation2 + $0x238] sm:$0xff]
    %v202 = vld [vmem:[#allocation2 + $0x240] sm:$0xff]
    %v203 = vld [vmem:[#allocation2 + $0x248] sm:$0xff]
    %v204 = vld [vmem:[#allocation2 + $0x250] sm:$0xff]
    %v205 = vld [vmem:[#allocation2 + $0x258] sm:$0xff]
    %v206 = vld [vmem:[#allocation2 + $0x260] sm:$0xff]
    %v207 = vld [vmem:[#allocation2 + $0x268] sm:$0xff]
    %v208 = vld [vmem:[#allocation2 + $0x270] sm:$0xff]
    %v209 = vld [vmem:[#allocation2 + $0x278] sm:$0xff]
    %v210 = vld [vmem:[#allocation2 + $0x280] sm:$0xff]
    %v211 = vld [vmem:[#allocation2 + $0x288] sm:$0xff]
    %v212 = vld [vmem:[#allocation2 + $0x290] sm:$0xff]
    %v213 = vld [vmem:[#allocation2 + $0x298] sm:$0xff]
    %v214 = vld [vmem:[#allocation2 + $0x2a0] sm:$0xff]
    %v215 = vld [vmem:[#allocation2 + $0x2a8] sm:$0xff]
    %v216 = vld [vmem:[#allocation2 + $0x2b0] sm:$0xff]
    %v217 = vld [vmem:[#allocation2 + $0x2b8] sm:$0xff]
    %v218 = vld [vmem:[#allocation2 + $0x2c0] sm:$0xff]
    %v219 = vld [vmem:[#allocation2 + $0x2c8] sm:$0xff]
    %v220 = vld [vmem:[#allocation2 + $0x2d0] sm:$0xff]
    %v221 = vld [vmem:[#allocation2 + $0x2d8] sm:$0xff]
    %v222 = vld [vmem:[#allocation2 + $0x2e0] sm:$0xff]
    %v223 = vld [vmem:[#allocation2 + $0x2e8] sm:$0xff]
    %v224 = vld [vmem:[#allocation2 + $0x2f0] sm:$0xff]
    %v225 = vld [vmem:[#allocation2 + $0x2f8] sm:$0xff]
    %v226 = vld [vmem:[#allocation2 + $0x300] sm:$0xff]
    %v227 = vld [vmem:[#allocation2 + $0x308] sm:$0xff]
    %v228 = vld [vmem:[#allocation2 + $0x310] sm:$0xff]
    %v229 = vld [vmem:[#allocation2 + $0x318] sm:$0xff]
    %v230 = vld [vmem:[#allocation2 + $0x320] sm:$0xff]
    %v231 = vld [vmem:[#allocation2 + $0x328] sm:$0xff]
    %v232 = vld [vmem:[#allocation2 + $0x330] sm:$0xff]
    %v233 = vld [vmem:[#allocation2 + $0x338] sm:$0xff]
    %v234 = vld [vmem:[#allocation2 + $0x340] sm:$0xff]
    %v235 = vld [vmem:[#allocation2 + $0x348] sm:$0xff]
    %v236 = vld [vmem:[#allocation2 + $0x350] sm:$0xff]
    %v237 = vld [vmem:[#allocation2 + $0x358] sm:$0xff]
    %v238 = vld [vmem:[#allocation2 + $0x360] sm:$0xff]
    %v239 = vld [vmem:[#allocation2 + $0x368] sm:$0xff]
    %v240 = vld [vmem:[#allocation2 + $0x370] sm:$0xff]
    %v241 = vld [vmem:[#allocation2 + $0x378] sm:$0xff]
    %v242 = vld [vmem:[#allocation2 + $0x380] sm:$0xff]
    %v243 = vld [vmem:[#allocation2 + $0x388] sm:$0xff]
    %v244 = vld [vmem:[#allocation2 + $0x390] sm:$0xff]
    %v245 = vld [vmem:[#allocation2 + $0x398] sm:$0xff]
    %v246 = vld [vmem:[#allocation2 + $0x3a0] sm:$0xff]
    %v247 = vld [vmem:[#allocation2 + $0x3a8] sm:$0xff]
    %v248 = vld [vmem:[#allocation2 + $0x3b0] sm:$0xff]
    %v249 = vld [vmem:[#allocation2 + $0x3b8] sm:$0xff]
    %v250 = vld [vmem:[#allocation2 + $0x3c0] sm:$0xff]
    %v251 = vld [vmem:[#allocation2 + $0x3c8] sm:$0xff]
    %v252 = vld [vmem:[#allocation2 + $0x3d0] sm:$0xff]
    %v253 = vld [vmem:[#allocation2 + $0x3d8] sm:$0xff]
    %v254 = vld [vmem:[#allocation2 + $0x3e0] sm:$0xff]
    %v255 = vld [vmem:[#allocation2 + $0x3e8] sm:$0xff]
    %v256 = vld [vmem:[#allocation2 + $0x3f0] sm:$0xff]
    %v257 = vld [vmem:[#allocation2 + $0x3f8] sm:$0xff]
    %v258 = vld [vmem:[%s2] sm:$0xff]
    %v260 = vlaneseq
    %v261 = vshrl.u32 %v260, 7
    %v262 = vsub.s32 0, %v261
    %v263 = vrot.slane %v258, %v262
    %v264 = vlaneseq
    %v265 = vshrl.u32 %v264, 7
    %v266 = vsub.s32 1, %v265
    %v267 = vrot.slane %v258, %v266
    %v268 = vlaneseq
    %v269 = vshrl.u32 %v268, 7
    %v270 = vsub.s32 2, %v269
    %v271 = vrot.slane %v258, %v270
    %v272 = vlaneseq
    %v273 = vshrl.u32 %v272, 7
    %v274 = vsub.s32 3, %v273
    %v275 = vrot.slane %v258, %v274
    %v276 = vlaneseq
    %v277 = vshrl.u32 %v276, 7
    %v278 = vsub.s32 4, %v277
    %v279 = vrot.slane %v258, %v278
    %v280 = vlaneseq
    %v281 = vshrl.u32 %v280, 7
    %v282 = vsub.s32 5, %v281
    %v283 = vrot.slane %v258, %v282
    %v284 = vlaneseq
    %v285 = vshrl.u32 %v284, 7
    %v286 = vsub.s32 6, %v285
    %v287 = vrot.slane %v258, %v286
    %v288 = vlaneseq
    %v289 = vshrl.u32 %v288, 7
    %v290 = vsub.s32 7, %v289
    %v291 = vrot.slane %v258, %v290
    %v428 = vunpack.c.l.b16 %v130
    %v429 = vunpack.c.h.b16 %v130
    %v430 = vunpack.c.l.b16 %v131
    %v431 = vunpack.c.h.b16 %v131
    %v432 = vunpack.c.l.b16 %v132
    %v433 = vunpack.c.h.b16 %v132
    %v434 = vunpack.c.l.b16 %v133
    %v435 = vunpack.c.h.b16 %v133
    %v436 = vunpack.c.l.b16 %v134
    %v437 = vunpack.c.h.b16 %v134
    %v438 = vunpack.c.l.b16 %v135
    %v439 = vunpack.c.h.b16 %v135
    %v440 = vunpack.c.l.b16 %v136
    %v441 = vunpack.c.h.b16 %v136
    %v442 = vunpack.c.l.b16 %v137
    %v443 = vunpack.c.h.b16 %v137
    %v444 = vunpack.c.l.b16 %v138
    %v445 = vunpack.c.h.b16 %v138
    %v446 = vunpack.c.l.b16 %v139
    %v447 = vunpack.c.h.b16 %v139
    %v448 = vunpack.c.l.b16 %v140
    %v449 = vunpack.c.h.b16 %v140
    %v450 = vunpack.c.l.b16 %v141
    %v451 = vunpack.c.h.b16 %v141
    %v452 = vunpack.c.l.b16 %v142
    %v453 = vunpack.c.h.b16 %v142
    %v454 = vunpack.c.l.b16 %v143
    %v455 = vunpack.c.h.b16 %v143
    %v456 = vunpack.c.l.b16 %v144
    %v457 = vunpack.c.h.b16 %v144
    %v458 = vunpack.c.l.b16 %v145
    %v459 = vunpack.c.h.b16 %v145
    %v460 = vunpack.c.l.b16 %v146
    %v461 = vunpack.c.h.b16 %v146
    %v462 = vunpack.c.l.b16 %v147
    %v463 = vunpack.c.h.b16 %v147
    %v464 = vunpack.c.l.b16 %v148
    %v465 = vunpack.c.h.b16 %v148
    %v466 = vunpack.c.l.b16 %v149
    %v467 = vunpack.c.h.b16 %v149
    %v468 = vunpack.c.l.b16 %v150
    %v469 = vunpack.c.h.b16 %v150
    %v470 = vunpack.c.l.b16 %v151
    %v471 = vunpack.c.h.b16 %v151
    %v472 = vunpack.c.l.b16 %v152
    %v473 = vunpack.c.h.b16 %v152
    %v474 = vunpack.c.l.b16 %v153
    %v475 = vunpack.c.h.b16 %v153
    %v476 = vunpack.c.l.b16 %v154
    %v477 = vunpack.c.h.b16 %v154
    %v478 = vunpack.c.l.b16 %v155
    %v479 = vunpack.c.h.b16 %v155
    %v480 = vunpack.c.l.b16 %v156
    %v481 = vunpack.c.h.b16 %v156
    %v482 = vunpack.c.l.b16 %v157
    %v483 = vunpack.c.h.b16 %v157
    %v484 = vunpack.c.l.b16 %v158
    %v485 = vunpack.c.h.b16 %v158
    %v486 = vunpack.c.l.b16 %v159
    %v487 = vunpack.c.h.b16 %v159
    %v488 = vunpack.c.l.b16 %v160
    %v489 = vunpack.c.h.b16 %v160
    %v490 = vunpack.c.l.b16 %v161
    %v491 = vunpack.c.h.b16 %v161
    %v492 = vunpack.c.l.b16 %v162
    %v493 = vunpack.c.h.b16 %v162
    %v494 = vunpack.c.l.b16 %v163
    %v495 = vunpack.c.h.b16 %v163
    %v496 = vunpack.c.l.b16 %v164
    %v497 = vunpack.c.h.b16 %v164
    %v498 = vunpack.c.l.b16 %v165
    %v499 = vunpack.c.h.b16 %v165
    %v500 = vunpack.c.l.b16 %v166
    %v501 = vunpack.c.h.b16 %v166
    %v502 = vunpack.c.l.b16 %v167
    %v503 = vunpack.c.h.b16 %v167
    %v504 = vunpack.c.l.b16 %v168
    %v505 = vunpack.c.h.b16 %v168
    %v506 = vunpack.c.l.b16 %v169
    %v507 = vunpack.c.h.b16 %v169
    %v508 = vunpack.c.l.b16 %v170
    %v509 = vunpack.c.h.b16 %v170
    %v510 = vunpack.c.l.b16 %v171
    %v511 = vunpack.c.h.b16 %v171
    %v512 = vunpack.c.l.b16 %v172
    %v513 = vunpack.c.h.b16 %v172
    %v514 = vunpack.c.l.b16 %v173
    %v515 = vunpack.c.h.b16 %v173
    %v516 = vunpack.c.l.b16 %v174
    %v517 = vunpack.c.h.b16 %v174
    %v518 = vunpack.c.l.b16 %v175
    %v519 = vunpack.c.h.b16 %v175
    %v520 = vunpack.c.l.b16 %v176
    %v521 = vunpack.c.h.b16 %v176
    %v522 = vunpack.c.l.b16 %v177
    %v523 = vunpack.c.h.b16 %v177
    %v524 = vunpack.c.l.b16 %v178
    %v525 = vunpack.c.h.b16 %v178
    %v526 = vunpack.c.l.b16 %v179
    %v527 = vunpack.c.h.b16 %v179
    %v528 = vunpack.c.l.b16 %v180
    %v529 = vunpack.c.h.b16 %v180
    %v530 = vunpack.c.l.b16 %v181
    %v531 = vunpack.c.h.b16 %v181
    %v532 = vunpack.c.l.b16 %v182
    %v533 = vunpack.c.h.b16 %v182
    %v534 = vunpack.c.l.b16 %v183
    %v535 = vunpack.c.h.b16 %v183
    %v536 = vunpack.c.l.b16 %v184
    %v537 = vunpack.c.h.b16 %v184
    %v538 = vunpack.c.l.b16 %v185
    %v539 = vunpack.c.h.b16 %v185
    %v540 = vunpack.c.l.b16 %v186
    %v541 = vunpack.c.h.b16 %v186
    %v542 = vunpack.c.l.b16 %v187
    %v543 = vunpack.c.h.b16 %v187
    %v544 = vunpack.c.l.b16 %v188
    %v545 = vunpack.c.h.b16 %v188
    %v546 = vunpack.c.l.b16 %v189
    %v547 = vunpack.c.h.b16 %v189
    %v548 = vunpack.c.l.b16 %v190
    %v549 = vunpack.c.h.b16 %v190
    %v550 = vunpack.c.l.b16 %v191
    %v551 = vunpack.c.h.b16 %v191
    %v552 = vunpack.c.l.b16 %v192
    %v553 = vunpack.c.h.b16 %v192
    %v554 = vunpack.c.l.b16 %v193
    %v555 = vunpack.c.h.b16 %v193
    %v556 = vunpack.c.l.b16 %v194
    %v557 = vunpack.c.h.b16 %v194
    %v558 = vunpack.c.l.b16 %v195
    %v559 = vunpack.c.h.b16 %v195
    %v560 = vunpack.c.l.b16 %v196
    %v561 = vunpack.c.h.b16 %v196
    %v562 = vunpack.c.l.b16 %v197
    %v563 = vunpack.c.h.b16 %v197
    %v564 = vunpack.c.l.b16 %v198
    %v565 = vunpack.c.h.b16 %v198
    %v566 = vunpack.c.l.b16 %v199
    %v567 = vunpack.c.h.b16 %v199
    %v568 = vunpack.c.l.b16 %v200
    %v569 = vunpack.c.h.b16 %v200
    %v570 = vunpack.c.l.b16 %v201
    %v571 = vunpack.c.h.b16 %v201
    %v572 = vunpack.c.l.b16 %v202
    %v573 = vunpack.c.h.b16 %v202
    %v574 = vunpack.c.l.b16 %v203
    %v575 = vunpack.c.h.b16 %v203
    %v576 = vunpack.c.l.b16 %v204
    %v577 = vunpack.c.h.b16 %v204
    %v578 = vunpack.c.l.b16 %v205
    %v579 = vunpack.c.h.b16 %v205
    %v580 = vunpack.c.l.b16 %v206
    %v581 = vunpack.c.h.b16 %v206
    %v582 = vunpack.c.l.b16 %v207
    %v583 = vunpack.c.h.b16 %v207
    %v584 = vunpack.c.l.b16 %v208
    %v585 = vunpack.c.h.b16 %v208
    %v586 = vunpack.c.l.b16 %v209
    %v587 = vunpack.c.h.b16 %v209
    %v588 = vunpack.c.l.b16 %v210
    %v589 = vunpack.c.h.b16 %v210
    %v590 = vunpack.c.l.b16 %v211
    %v591 = vunpack.c.h.b16 %v211
    %v592 = vunpack.c.l.b16 %v212
    %v593 = vunpack.c.h.b16 %v212
    %v594 = vunpack.c.l.b16 %v213
    %v595 = vunpack.c.h.b16 %v213
    %v596 = vunpack.c.l.b16 %v214
    %v597 = vunpack.c.h.b16 %v214
    %v598 = vunpack.c.l.b16 %v215
    %v599 = vunpack.c.h.b16 %v215
    %v600 = vunpack.c.l.b16 %v216
    %v601 = vunpack.c.h.b16 %v216
    %v602 = vunpack.c.l.b16 %v217
    %v603 = vunpack.c.h.b16 %v217
    %v604 = vunpack.c.l.b16 %v218
    %v605 = vunpack.c.h.b16 %v218
    %v606 = vunpack.c.l.b16 %v219
    %v607 = vunpack.c.h.b16 %v219
    %v608 = vunpack.c.l.b16 %v220
    %v609 = vunpack.c.h.b16 %v220
    %v610 = vunpack.c.l.b16 %v221
    %v611 = vunpack.c.h.b16 %v221
    %v612 = vunpack.c.l.b16 %v222
    %v613 = vunpack.c.h.b16 %v222
    %v614 = vunpack.c.l.b16 %v223
    %v615 = vunpack.c.h.b16 %v223
    %v616 = vunpack.c.l.b16 %v224
    %v617 = vunpack.c.h.b16 %v224
    %v618 = vunpack.c.l.b16 %v225
    %v619 = vunpack.c.h.b16 %v225
    %v620 = vunpack.c.l.b16 %v226
    %v621 = vunpack.c.h.b16 %v226
    %v622 = vunpack.c.l.b16 %v227
    %v623 = vunpack.c.h.b16 %v227
    %v624 = vunpack.c.l.b16 %v228
    %v625 = vunpack.c.h.b16 %v228
    %v626 = vunpack.c.l.b16 %v229
    %v627 = vunpack.c.h.b16 %v229
    %v628 = vunpack.c.l.b16 %v230
    %v629 = vunpack.c.h.b16 %v230
    %v630 = vunpack.c.l.b16 %v231
    %v631 = vunpack.c.h.b16 %v231
    %v632 = vunpack.c.l.b16 %v232
    %v633 = vunpack.c.h.b16 %v232
    %v634 = vunpack.c.l.b16 %v233
    %v635 = vunpack.c.h.b16 %v233
    %v636 = vunpack.c.l.b16 %v234
    %v637 = vunpack.c.h.b16 %v234
    %v638 = vunpack.c.l.b16 %v235
    %v639 = vunpack.c.h.b16 %v235
    %v640 = vunpack.c.l.b16 %v236
    %v641 = vunpack.c.h.b16 %v236
    %v642 = vunpack.c.l.b16 %v237
    %v643 = vunpack.c.h.b16 %v237
    %v644 = vunpack.c.l.b16 %v238
    %v645 = vunpack.c.h.b16 %v238
    %v646 = vunpack.c.l.b16 %v239
    %v647 = vunpack.c.h.b16 %v239
    %v648 = vunpack.c.l.b16 %v240
    %v649 = vunpack.c.h.b16 %v240
    %v650 = vunpack.c.l.b16 %v241
    %v651 = vunpack.c.h.b16 %v241
    %v652 = vunpack.c.l.b16 %v242
    %v653 = vunpack.c.h.b16 %v242
    %v654 = vunpack.c.l.b16 %v243
    %v655 = vunpack.c.h.b16 %v243
    %v656 = vunpack.c.l.b16 %v244
    %v657 = vunpack.c.h.b16 %v244
    %v658 = vunpack.c.l.b16 %v245
    %v659 = vunpack.c.h.b16 %v245
    %v660 = vunpack.c.l.b16 %v246
    %v661 = vunpack.c.h.b16 %v246
    %v662 = vunpack.c.l.b16 %v247
    %v663 = vunpack.c.h.b16 %v247
    %v664 = vunpack.c.l.b16 %v248
    %v665 = vunpack.c.h.b16 %v248
    %v666 = vunpack.c.l.b16 %v249
    %v667 = vunpack.c.h.b16 %v249
    %v668 = vunpack.c.l.b16 %v250
    %v669 = vunpack.c.h.b16 %v250
    %v670 = vunpack.c.l.b16 %v251
    %v671 = vunpack.c.h.b16 %v251
    %v672 = vunpack.c.l.b16 %v252
    %v673 = vunpack.c.h.b16 %v252
    %v674 = vunpack.c.l.b16 %v253
    %v675 = vunpack.c.h.b16 %v253
    %v676 = vunpack.c.l.b16 %v254
    %v677 = vunpack.c.h.b16 %v254
    %v678 = vunpack.c.l.b16 %v255
    %v679 = vunpack.c.h.b16 %v255
    %v680 = vunpack.c.l.b16 %v256
    %v681 = vunpack.c.h.b16 %v256
    %v682 = vunpack.c.l.b16 %v257
    %v683 = vunpack.c.h.b16 %v257
    %v684 = vpack.c.b16 %v436, %v428
    %v685 = vpack.c.b16 %v437, %v429
    %v686 = vpack.c.b16 %v438, %v430
    %v687 = vpack.c.b16 %v439, %v431
    %v688 = vpack.c.b16 %v440, %v432
    %v689 = vpack.c.b16 %v441, %v433
    %v690 = vpack.c.b16 %v442, %v434
    %v691 = vpack.c.b16 %v443, %v435
    %v692 = vpack.c.b16 %v452, %v444
    %v693 = vpack.c.b16 %v453, %v445
    %v694 = vpack.c.b16 %v454, %v446
    %v695 = vpack.c.b16 %v455, %v447
    %v696 = vpack.c.b16 %v456, %v448
    %v697 = vpack.c.b16 %v457, %v449
    %v698 = vpack.c.b16 %v458, %v450
    %v699 = vpack.c.b16 %v459, %v451
    %v700 = vpack.c.b16 %v468, %v460
    %v701 = vpack.c.b16 %v469, %v461
    %v702 = vpack.c.b16 %v470, %v462
    %v703 = vpack.c.b16 %v471, %v463
    %v704 = vpack.c.b16 %v472, %v464
    %v705 = vpack.c.b16 %v473, %v465
    %v706 = vpack.c.b16 %v474, %v466
    %v707 = vpack.c.b16 %v475, %v467
    %v708 = vpack.c.b16 %v484, %v476
    %v709 = vpack.c.b16 %v485, %v477
    %v710 = vpack.c.b16 %v486, %v478
    %v711 = vpack.c.b16 %v487, %v479
    %v712 = vpack.c.b16 %v488, %v480
    %v713 = vpack.c.b16 %v489, %v481
    %v714 = vpack.c.b16 %v490, %v482
    %v715 = vpack.c.b16 %v491, %v483
    %v716 = vpack.c.b16 %v500, %v492
    %v717 = vpack.c.b16 %v501, %v493
    %v718 = vpack.c.b16 %v502, %v494
    %v719 = vpack.c.b16 %v503, %v495
    %v720 = vpack.c.b16 %v504, %v496
    %v721 = vpack.c.b16 %v505, %v497
    %v722 = vpack.c.b16 %v506, %v498
    %v723 = vpack.c.b16 %v507, %v499
    %v724 = vpack.c.b16 %v516, %v508
    %v725 = vpack.c.b16 %v517, %v509
    %v726 = vpack.c.b16 %v518, %v510
    %v727 = vpack.c.b16 %v519, %v511
    %v728 = vpack.c.b16 %v520, %v512
    %v729 = vpack.c.b16 %v521, %v513
    %v730 = vpack.c.b16 %v522, %v514
    %v731 = vpack.c.b16 %v523, %v515
    %v732 = vpack.c.b16 %v532, %v524
    %v733 = vpack.c.b16 %v533, %v525
    %v734 = vpack.c.b16 %v534, %v526
    %v735 = vpack.c.b16 %v535, %v527
    %v736 = vpack.c.b16 %v536, %v528
    %v737 = vpack.c.b16 %v537, %v529
    %v738 = vpack.c.b16 %v538, %v530
    %v739 = vpack.c.b16 %v539, %v531
    %v740 = vpack.c.b16 %v548, %v540
    %v741 = vpack.c.b16 %v549, %v541
    %v742 = vpack.c.b16 %v550, %v542
    %v743 = vpack.c.b16 %v551, %v543
    %v744 = vpack.c.b16 %v552, %v544
    %v745 = vpack.c.b16 %v553, %v545
    %v746 = vpack.c.b16 %v554, %v546
    %v747 = vpack.c.b16 %v555, %v547
    %v748 = vpack.c.b16 %v564, %v556
    %v749 = vpack.c.b16 %v565, %v557
    %v750 = vpack.c.b16 %v566, %v558
    %v751 = vpack.c.b16 %v567, %v559
    %v752 = vpack.c.b16 %v568, %v560
    %v753 = vpack.c.b16 %v569, %v561
    %v754 = vpack.c.b16 %v570, %v562
    %v755 = vpack.c.b16 %v571, %v563
    %v756 = vpack.c.b16 %v580, %v572
    %v757 = vpack.c.b16 %v581, %v573
    %v758 = vpack.c.b16 %v582, %v574
    %v759 = vpack.c.b16 %v583, %v575
    %v760 = vpack.c.b16 %v584, %v576
    %v761 = vpack.c.b16 %v585, %v577
    %v762 = vpack.c.b16 %v586, %v578
    %v763 = vpack.c.b16 %v587, %v579
    %v764 = vpack.c.b16 %v596, %v588
    %v765 = vpack.c.b16 %v597, %v589
    %v766 = vpack.c.b16 %v598, %v590
    %v767 = vpack.c.b16 %v599, %v591
    %v768 = vpack.c.b16 %v600, %v592
    %v769 = vpack.c.b16 %v601, %v593
    %v770 = vpack.c.b16 %v602, %v594
    %v771 = vpack.c.b16 %v603, %v595
    %v772 = vpack.c.b16 %v612, %v604
    %v773 = vpack.c.b16 %v613, %v605
    %v774 = vpack.c.b16 %v614, %v606
    %v775 = vpack.c.b16 %v615, %v607
    %v776 = vpack.c.b16 %v616, %v608
    %v777 = vpack.c.b16 %v617, %v609
    %v778 = vpack.c.b16 %v618, %v610
    %v779 = vpack.c.b16 %v619, %v611
    %v780 = vpack.c.b16 %v628, %v620
    %v781 = vpack.c.b16 %v629, %v621
    %v782 = vpack.c.b16 %v630, %v622
    %v783 = vpack.c.b16 %v631, %v623
    %v784 = vpack.c.b16 %v632, %v624
    %v785 = vpack.c.b16 %v633, %v625
    %v786 = vpack.c.b16 %v634, %v626
    %v787 = vpack.c.b16 %v635, %v627
    %v788 = vpack.c.b16 %v644, %v636
    %v789 = vpack.c.b16 %v645, %v637
    %v790 = vpack.c.b16 %v646, %v638
    %v791 = vpack.c.b16 %v647, %v639
    %v792 = vpack.c.b16 %v648, %v640
    %v793 = vpack.c.b16 %v649, %v641
    %v794 = vpack.c.b16 %v650, %v642
    %v795 = vpack.c.b16 %v651, %v643
    %v796 = vpack.c.b16 %v660, %v652
    %v797 = vpack.c.b16 %v661, %v653
    %v798 = vpack.c.b16 %v662, %v654
    %v799 = vpack.c.b16 %v663, %v655
    %v800 = vpack.c.b16 %v664, %v656
    %v801 = vpack.c.b16 %v665, %v657
    %v802 = vpack.c.b16 %v666, %v658
    %v803 = vpack.c.b16 %v667, %v659
    %v804 = vpack.c.b16 %v676, %v668
    %v805 = vpack.c.b16 %v677, %v669
    %v806 = vpack.c.b16 %v678, %v670
    %v807 = vpack.c.b16 %v679, %v671
    %v808 = vpack.c.b16 %v680, %v672
    %v809 = vpack.c.b16 %v681, %v673
    %v810 = vpack.c.b16 %v682, %v674
    %v811 = vpack.c.b16 %v683, %v675
    %940 = vmatprep.subr.bf16.mxu0 %v741
    %941 = vmatpush1.bf16.msra.mxu0 %v740
    %942 = vmatprep.subr.bf16.mxu0 %v733
    %943 = vmatpush1.bf16.msra.mxu0 %v732
    %944 = vmatprep.subr.bf16.mxu0 %v725
    %945 = vmatpush1.bf16.msra.mxu0 %v724
    %946 = vmatprep.subr.bf16.mxu0 %v717
    %947 = vmatpush1.bf16.msra.mxu0 %v716
    %948 = vmatprep.subr.bf16.mxu0 %v709
    %949 = vmatpush1.bf16.msra.mxu0 %v708
    %950 = vmatprep.subr.bf16.mxu0 %v701
    %951 = vmatpush1.bf16.msra.mxu0 %v700
    %952 = vmatprep.subr.bf16.mxu0 %v693
    %953 = vmatpush1.bf16.msra.mxu0 %v692
    %954 = vmatprep.subr.bf16.mxu0 %v685
    %955 = vmatpush1.bf16.msra.mxu0 %v684
    %956 = vmatprep.subr.bf16.mxu0 %v805
    %957 = vmatpush2.bf16.msra.mxu0 %v804
    %958 = vmatprep.subr.bf16.mxu0 %v797
    %959 = vmatpush2.bf16.msra.mxu0 %v796
    %960 = vmatprep.subr.bf16.mxu0 %v789
    %961 = vmatpush2.bf16.msra.mxu0 %v788
    %962 = vmatprep.subr.bf16.mxu0 %v781
    %963 = vmatpush2.bf16.msra.mxu0 %v780
    %964 = vmatprep.subr.bf16.mxu0 %v773
    %965 = vmatpush2.bf16.msra.mxu0 %v772
    %966 = vmatprep.subr.bf16.mxu0 %v765
    %967 = vmatpush2.bf16.msra.mxu0 %v764
    %968 = vmatprep.subr.bf16.mxu0 %v757
    %969 = vmatpush2.bf16.msra.mxu0 %v756
    %970 = vmatprep.subr.bf16.mxu0 %v749
    %971 = vmatpush2.bf16.msra.mxu0 %v748
    %972 = vmatprep.mubr.bf16.mxu0 %v129
    %973 = vmatmul.mubr.bf16.gmra.mxu0 %v128
    %v974 = vpop.f32.mrf.mxu0
    %v975 = vadd.f32 %v263, %v974
    %v976 = vpop.f32.mrf.mxu0
    %v977 = vadd.f32 %v267, %v976
    %v978 = vpop.f32.mrf.mxu0
    %v979 = vpop.f32.mrf.mxu0
    %980 = vdwg.mxu0
    %981 = vmatprep.subr.bf16.mxu0 %v743
    %982 = vmatpush1.bf16.msra.mxu0 %v742
    %983 = vmatprep.subr.bf16.mxu0 %v735
    %984 = vmatpush1.bf16.msra.mxu0 %v734
    %985 = vmatprep.subr.bf16.mxu0 %v727
    %986 = vmatpush1.bf16.msra.mxu0 %v726
    %987 = vmatprep.subr.bf16.mxu0 %v719
    %988 = vmatpush1.bf16.msra.mxu0 %v718
    %989 = vmatprep.subr.bf16.mxu0 %v711
    %990 = vmatpush1.bf16.msra.mxu0 %v710
    %991 = vmatprep.subr.bf16.mxu0 %v703
    %992 = vmatpush1.bf16.msra.mxu0 %v702
    %993 = vmatprep.subr.bf16.mxu0 %v695
    %994 = vmatpush1.bf16.msra.mxu0 %v694
    %995 = vmatprep.subr.bf16.mxu0 %v687
    %996 = vmatpush1.bf16.msra.mxu0 %v686
    %997 = vmatprep.subr.bf16.mxu0 %v807
    %998 = vmatpush2.bf16.msra.mxu0 %v806
    %999 = vmatprep.subr.bf16.mxu0 %v799
    %1000 = vmatpush2.bf16.msra.mxu0 %v798
    %1001 = vmatprep.subr.bf16.mxu0 %v791
    %1002 = vmatpush2.bf16.msra.mxu0 %v790
    %1003 = vmatprep.subr.bf16.mxu0 %v783
    %1004 = vmatpush2.bf16.msra.mxu0 %v782
    %1005 = vmatprep.subr.bf16.mxu0 %v775
    %1006 = vmatpush2.bf16.msra.mxu0 %v774
    %1007 = vmatprep.subr.bf16.mxu0 %v767
    %1008 = vmatpush2.bf16.msra.mxu0 %v766
    %1009 = vmatprep.subr.bf16.mxu0 %v759
    %1010 = vmatpush2.bf16.msra.mxu0 %v758
    %1011 = vmatprep.subr.bf16.mxu0 %v751
    %1012 = vmatpush2.bf16.msra.mxu0 %v750
    %1013 = vmatprep.mubr.bf16.mxu0 %v129
    %1014 = vmatmul.mubr.bf16.gmra.mxu0 %v128
    %v1015 = vpop.f32.mrf.mxu0
    %v1016 = vadd.f32 %v271, %v1015
    %v1017 = vpop.f32.mrf.mxu0
    %v1018 = vadd.f32 %v275, %v1017
    %v1019 = vpop.f32.mrf.mxu0
    %v1020 = vpop.f32.mrf.mxu0
    %1021 = vdwg.mxu0
    %1022 = vmatprep.subr.bf16.mxu0 %v745
    %1023 = vmatpush1.bf16.msra.mxu0 %v744
    %1024 = vmatprep.subr.bf16.mxu0 %v737
    %1025 = vmatpush1.bf16.msra.mxu0 %v736
    %1026 = vmatprep.subr.bf16.mxu0 %v729
    %1027 = vmatpush1.bf16.msra.mxu0 %v728
    %1028 = vmatprep.subr.bf16.mxu0 %v721
    %1029 = vmatpush1.bf16.msra.mxu0 %v720
    %1030 = vmatprep.subr.bf16.mxu0 %v713
    %1031 = vmatpush1.bf16.msra.mxu0 %v712
    %1032 = vmatprep.subr.bf16.mxu0 %v705
    %1033 = vmatpush1.bf16.msra.mxu0 %v704
    %1034 = vmatprep.subr.bf16.mxu0 %v697
    %1035 = vmatpush1.bf16.msra.mxu0 %v696
    %1036 = vmatprep.subr.bf16.mxu0 %v689
    %1037 = vmatpush1.bf16.msra.mxu0 %v688
    %1038 = vmatprep.subr.bf16.mxu0 %v809
    %1039 = vmatpush2.bf16.msra.mxu0 %v808
    %1040 = vmatprep.subr.bf16.mxu0 %v801
    %1041 = vmatpush2.bf16.msra.mxu0 %v800
    %1042 = vmatprep.subr.bf16.mxu0 %v793
    %1043 = vmatpush2.bf16.msra.mxu0 %v792
    %1044 = vmatprep.subr.bf16.mxu0 %v785
    %1045 = vmatpush2.bf16.msra.mxu0 %v784
    %1046 = vmatprep.subr.bf16.mxu0 %v777
    %1047 = vmatpush2.bf16.msra.mxu0 %v776
    %1048 = vmatprep.subr.bf16.mxu0 %v769
    %1049 = vmatpush2.bf16.msra.mxu0 %v768
    %1050 = vmatprep.subr.bf16.mxu0 %v761
    %1051 = vmatpush2.bf16.msra.mxu0 %v760
    %1052 = vmatprep.subr.bf16.mxu0 %v753
    %1053 = vmatpush2.bf16.msra.mxu0 %v752
    %1054 = vmatprep.mubr.bf16.mxu0 %v129
    %1055 = vmatmul.mubr.bf16.gmra.mxu0 %v128
    %v1056 = vpop.f32.mrf.mxu0
    %v1057 = vadd.f32 %v279, %v1056
    %v1058 = vpop.f32.mrf.mxu0
    %v1059 = vadd.f32 %v283, %v1058
    %v1060 = vpop.f32.mrf.mxu0
    %v1061 = vpop.f32.mrf.mxu0
    %1062 = vdwg.mxu0
    %1063 = vmatprep.subr.bf16.mxu0 %v747
    %1064 = vmatpush1.bf16.msra.mxu0 %v746
    %1065 = vmatprep.subr.bf16.mxu0 %v739
    %1066 = vmatpush1.bf16.msra.mxu0 %v738
    %1067 = vmatprep.subr.bf16.mxu0 %v731
    %1068 = vmatpush1.bf16.msra.mxu0 %v730
    %1069 = vmatprep.subr.bf16.mxu0 %v723
    %1070 = vmatpush1.bf16.msra.mxu0 %v722
    %1071 = vmatprep.subr.bf16.mxu0 %v715
    %1072 = vmatpush1.bf16.msra.mxu0 %v714
    %1073 = vmatprep.subr.bf16.mxu0 %v707
    %1074 = vmatpush1.bf16.msra.mxu0 %v706
    %1075 = vmatprep.subr.bf16.mxu0 %v699
    %1076 = vmatpush1.bf16.msra.mxu0 %v698
    %1077 = vmatprep.subr.bf16.mxu0 %v691
    %1078 = vmatpush1.bf16.msra.mxu0 %v690
    %1079 = vmatprep.subr.bf16.mxu0 %v811
    %1080 = vmatpush2.bf16.msra.mxu0 %v810
    %1081 = vmatprep.subr.bf16.mxu0 %v803
    %1082 = vmatpush2.bf16.msra.mxu0 %v802
    %1083 = vmatprep.subr.bf16.mxu0 %v795
    %1084 = vmatpush2.bf16.msra.mxu0 %v794
    %1085 = vmatprep.subr.bf16.mxu0 %v787
    %1086 = vmatpush2.bf16.msra.mxu0 %v786
    %1087 = vmatprep.subr.bf16.mxu0 %v779
    %1088 = vmatpush2.bf16.msra.mxu0 %v778
    %1089 = vmatprep.subr.bf16.mxu0 %v771
    %1090 = vmatpush2.bf16.msra.mxu0 %v770
    %1091 = vmatprep.subr.bf16.mxu0 %v763
    %1092 = vmatpush2.bf16.msra.mxu0 %v762
    %1093 = vmatprep.subr.bf16.mxu0 %v755
    %1094 = vmatpush2.bf16.msra.mxu0 %v754
    %1095 = vmatprep.mubr.bf16.mxu0 %v129
    %1096 = vmatmul.mubr.bf16.gmra.mxu0 %v128
    %v1097 = vpop.f32.mrf.mxu0
    %v1098 = vadd.f32 %v287, %v1097
    %v1099 = vpop.f32.mrf.mxu0
    %v1100 = vadd.f32 %v291, %v1099
    %v1101 = vpop.f32.mrf.mxu0
    %v1102 = vpop.f32.mrf.mxu0
    %1103 = vdwg.mxu0
    %v1104 = vmax.f32 %v975, 0.0
    %v1105 = vmax.f32 %v977, 0.0
    %v1106 = vmax.f32 %v1016, 0.0
    %v1107 = vmax.f32 %v1018, 0.0
    %v1108 = vmax.f32 %v1057, 0.0
    %v1109 = vmax.f32 %v1059, 0.0
    %v1110 = vmax.f32 %v1098, 0.0
    %v1111 = vmax.f32 %v1100, 0.0
    %v1112 = vpack.c.bf16 %v1104, %v1104
    %v1113 = vpack.c.bf16 %v1105, %v1105
    %v1114 = vpack.c.bf16 %v1106, %v1106
    %v1115 = vpack.c.bf16 %v1107, %v1107
    %v1116 = vpack.c.bf16 %v1108, %v1108
    %v1117 = vpack.c.bf16 %v1109, %v1109
    %v1118 = vpack.c.bf16 %v1110, %v1110
    %v1119 = vpack.c.bf16 %v1111, %v1111
    %v1120 = vld [vmem:[#allocation4] sm:$0xff]
    %v1121 = vld [vmem:[#allocation4 + $0x8] sm:$0xff]
    %v1122 = vld [vmem:[#allocation4 + $0x10] sm:$0xff]
    %v1123 = vld [vmem:[#allocation4 + $0x18] sm:$0xff]
    %v1124 = vld [vmem:[#allocation4 + $0x20] sm:$0xff]
    %v1125 = vld [vmem:[#allocation4 + $0x28] sm:$0xff]
    %v1126 = vld [vmem:[#allocation4 + $0x30] sm:$0xff]
    %v1127 = vld [vmem:[#allocation4 + $0x38] sm:$0xff]
    %v1128 = vld [vmem:[#allocation4 + $0x40] sm:$0xff]
    %v1129 = vld [vmem:[#allocation4 + $0x48] sm:$0xff]
    %v1130 = vld [vmem:[#allocation4 + $0x50] sm:$0xff]
    %v1131 = vld [vmem:[#allocation4 + $0x58] sm:$0xff]
    %v1132 = vld [vmem:[#allocation4 + $0x60] sm:$0xff]
    %v1133 = vld [vmem:[#allocation4 + $0x68] sm:$0xff]
    %v1134 = vld [vmem:[#allocation4 + $0x70] sm:$0xff]
    %v1135 = vld [vmem:[#allocation4 + $0x78] sm:$0xff]
    %v1136 = vld [vmem:[#allocation4 + $0x80] sm:$0xff]
    %v1137 = vld [vmem:[#allocation4 + $0x88] sm:$0xff]
    %v1138 = vld [vmem:[#allocation4 + $0x90] sm:$0xff]
    %v1139 = vld [vmem:[#allocation4 + $0x98] sm:$0xff]
    %v1140 = vld [vmem:[#allocation4 + $0xa0] sm:$0xff]
    %v1141 = vld [vmem:[#allocation4 + $0xa8] sm:$0xff]
    %v1142 = vld [vmem:[#allocation4 + $0xb0] sm:$0xff]
    %v1143 = vld [vmem:[#allocation4 + $0xb8] sm:$0xff]
    %v1144 = vld [vmem:[#allocation4 + $0xc0] sm:$0xff]
    %v1145 = vld [vmem:[#allocation4 + $0xc8] sm:$0xff]
    %v1146 = vld [vmem:[#allocation4 + $0xd0] sm:$0xff]
    %v1147 = vld [vmem:[#allocation4 + $0xd8] sm:$0xff]
    %v1148 = vld [vmem:[#allocation4 + $0xe0] sm:$0xff]
    %v1149 = vld [vmem:[#allocation4 + $0xe8] sm:$0xff]
    %v1150 = vld [vmem:[#allocation4 + $0xf0] sm:$0xff]
    %v1151 = vld [vmem:[#allocation4 + $0xf8] sm:$0xff]
    %v1152 = vld [vmem:[#allocation4 + $0x100] sm:$0xff]
    %v1153 = vld [vmem:[#allocation4 + $0x108] sm:$0xff]
    %v1154 = vld [vmem:[#allocation4 + $0x110] sm:$0xff]
    %v1155 = vld [vmem:[#allocation4 + $0x118] sm:$0xff]
    %v1156 = vld [vmem:[#allocation4 + $0x120] sm:$0xff]
    %v1157 = vld [vmem:[#allocation4 + $0x128] sm:$0xff]
    %v1158 = vld [vmem:[#allocation4 + $0x130] sm:$0xff]
    %v1159 = vld [vmem:[#allocation4 + $0x138] sm:$0xff]
    %v1160 = vld [vmem:[#allocation4 + $0x140] sm:$0xff]
    %v1161 = vld [vmem:[#allocation4 + $0x148] sm:$0xff]
    %v1162 = vld [vmem:[#allocation4 + $0x150] sm:$0xff]
    %v1163 = vld [vmem:[#allocation4 + $0x158] sm:$0xff]
    %v1164 = vld [vmem:[#allocation4 + $0x160] sm:$0xff]
    %v1165 = vld [vmem:[#allocation4 + $0x168] sm:$0xff]
    %v1166 = vld [vmem:[#allocation4 + $0x170] sm:$0xff]
    %v1167 = vld [vmem:[#allocation4 + $0x178] sm:$0xff]
    %v1168 = vld [vmem:[#allocation4 + $0x180] sm:$0xff]
    %v1169 = vld [vmem:[#allocation4 + $0x188] sm:$0xff]
    %v1170 = vld [vmem:[#allocation4 + $0x190] sm:$0xff]
    %v1171 = vld [vmem:[#allocation4 + $0x198] sm:$0xff]
    %v1172 = vld [vmem:[#allocation4 + $0x1a0] sm:$0xff]
    %v1173 = vld [vmem:[#allocation4 + $0x1a8] sm:$0xff]
    %v1174 = vld [vmem:[#allocation4 + $0x1b0] sm:$0xff]
    %v1175 = vld [vmem:[#allocation4 + $0x1b8] sm:$0xff]
    %v1176 = vld [vmem:[#allocation4 + $0x1c0] sm:$0xff]
    %v1177 = vld [vmem:[#allocation4 + $0x1c8] sm:$0xff]
    %v1178 = vld [vmem:[#allocation4 + $0x1d0] sm:$0xff]
    %v1179 = vld [vmem:[#allocation4 + $0x1d8] sm:$0xff]
    %v1180 = vld [vmem:[#allocation4 + $0x1e0] sm:$0xff]
    %v1181 = vld [vmem:[#allocation4 + $0x1e8] sm:$0xff]
    %v1182 = vld [vmem:[#allocation4 + $0x1f0] sm:$0xff]
    %v1183 = vld [vmem:[#allocation4 + $0x1f8] sm:$0xff]
    %v1184 = vld [vmem:[#allocation4 + $0x200] sm:$0xff]
    %v1185 = vld [vmem:[#allocation4 + $0x208] sm:$0xff]
    %v1186 = vld [vmem:[#allocation4 + $0x210] sm:$0xff]
    %v1187 = vld [vmem:[#allocation4 + $0x218] sm:$0xff]
    %v1188 = vld [vmem:[#allocation4 + $0x220] sm:$0xff]
    %v1189 = vld [vmem:[#allocation4 + $0x228] sm:$0xff]
    %v1190 = vld [vmem:[#allocation4 + $0x230] sm:$0xff]
    %v1191 = vld [vmem:[#allocation4 + $0x238] sm:$0xff]
    %v1192 = vld [vmem:[#allocation4 + $0x240] sm:$0xff]
    %v1193 = vld [vmem:[#allocation4 + $0x248] sm:$0xff]
    %v1194 = vld [vmem:[#allocation4 + $0x250] sm:$0xff]
    %v1195 = vld [vmem:[#allocation4 + $0x258] sm:$0xff]
    %v1196 = vld [vmem:[#allocation4 + $0x260] sm:$0xff]
    %v1197 = vld [vmem:[#allocation4 + $0x268] sm:$0xff]
    %v1198 = vld [vmem:[#allocation4 + $0x270] sm:$0xff]
    %v1199 = vld [vmem:[#allocation4 + $0x278] sm:$0xff]
    %v1200 = vld [vmem:[#allocation4 + $0x280] sm:$0xff]
    %v1201 = vld [vmem:[#allocation4 + $0x288] sm:$0xff]
    %v1202 = vld [vmem:[#allocation4 + $0x290] sm:$0xff]
    %v1203 = vld [vmem:[#allocation4 + $0x298] sm:$0xff]
    %v1204 = vld [vmem:[#allocation4 + $0x2a0] sm:$0xff]
    %v1205 = vld [vmem:[#allocation4 + $0x2a8] sm:$0xff]
    %v1206 = vld [vmem:[#allocation4 + $0x2b0] sm:$0xff]
    %v1207 = vld [vmem:[#allocation4 + $0x2b8] sm:$0xff]
    %v1208 = vld [vmem:[#allocation4 + $0x2c0] sm:$0xff]
    %v1209 = vld [vmem:[#allocation4 + $0x2c8] sm:$0xff]
    %v1210 = vld [vmem:[#allocation4 + $0x2d0] sm:$0xff]
    %v1211 = vld [vmem:[#allocation4 + $0x2d8] sm:$0xff]
    %v1212 = vld [vmem:[#allocation4 + $0x2e0] sm:$0xff]
    %v1213 = vld [vmem:[#allocation4 + $0x2e8] sm:$0xff]
    %v1214 = vld [vmem:[#allocation4 + $0x2f0] sm:$0xff]
    %v1215 = vld [vmem:[#allocation4 + $0x2f8] sm:$0xff]
    %v1216 = vld [vmem:[#allocation4 + $0x300] sm:$0xff]
    %v1217 = vld [vmem:[#allocation4 + $0x308] sm:$0xff]
    %v1218 = vld [vmem:[#allocation4 + $0x310] sm:$0xff]
    %v1219 = vld [vmem:[#allocation4 + $0x318] sm:$0xff]
    %v1220 = vld [vmem:[#allocation4 + $0x320] sm:$0xff]
    %v1221 = vld [vmem:[#allocation4 + $0x328] sm:$0xff]
    %v1222 = vld [vmem:[#allocation4 + $0x330] sm:$0xff]
    %v1223 = vld [vmem:[#allocation4 + $0x338] sm:$0xff]
    %v1224 = vld [vmem:[#allocation4 + $0x340] sm:$0xff]
    %v1225 = vld [vmem:[#allocation4 + $0x348] sm:$0xff]
    %v1226 = vld [vmem:[#allocation4 + $0x350] sm:$0xff]
    %v1227 = vld [vmem:[#allocation4 + $0x358] sm:$0xff]
    %v1228 = vld [vmem:[#allocation4 + $0x360] sm:$0xff]
    %v1229 = vld [vmem:[#allocation4 + $0x368] sm:$0xff]
    %v1230 = vld [vmem:[#allocation4 + $0x370] sm:$0xff]
    %v1231 = vld [vmem:[#allocation4 + $0x378] sm:$0xff]
    %v1232 = vld [vmem:[#allocation4 + $0x380] sm:$0xff]
    %v1233 = vld [vmem:[#allocation4 + $0x388] sm:$0xff]
    %v1234 = vld [vmem:[#allocation4 + $0x390] sm:$0xff]
    %v1235 = vld [vmem:[#allocation4 + $0x398] sm:$0xff]
    %v1236 = vld [vmem:[#allocation4 + $0x3a0] sm:$0xff]
    %v1237 = vld [vmem:[#allocation4 + $0x3a8] sm:$0xff]
    %v1238 = vld [vmem:[#allocation4 + $0x3b0] sm:$0xff]
    %v1239 = vld [vmem:[#allocation4 + $0x3b8] sm:$0xff]
    %v1240 = vld [vmem:[#allocation4 + $0x3c0] sm:$0xff]
    %v1241 = vld [vmem:[#allocation4 + $0x3c8] sm:$0xff]
    %v1242 = vld [vmem:[#allocation4 + $0x3d0] sm:$0xff]
    %v1243 = vld [vmem:[#allocation4 + $0x3d8] sm:$0xff]
    %v1244 = vld [vmem:[#allocation4 + $0x3e0] sm:$0xff]
    %v1245 = vld [vmem:[#allocation4 + $0x3e8] sm:$0xff]
    %v1246 = vld [vmem:[#allocation4 + $0x3f0] sm:$0xff]
    %v1247 = vld [vmem:[#allocation4 + $0x3f8] sm:$0xff]
    %v1248 = vld [vmem:[#allocation4 + $0x400] sm:$0xff]
    %v1249 = vld [vmem:[#allocation4 + $0x408] sm:$0xff]
    %v1250 = vld [vmem:[#allocation4 + $0x410] sm:$0xff]
    %v1251 = vld [vmem:[#allocation4 + $0x418] sm:$0xff]
    %v1252 = vld [vmem:[#allocation4 + $0x420] sm:$0xff]
    %v1253 = vld [vmem:[#allocation4 + $0x428] sm:$0xff]
    %v1254 = vld [vmem:[#allocation4 + $0x430] sm:$0xff]
    %v1255 = vld [vmem:[#allocation4 + $0x438] sm:$0xff]
    %v1256 = vld [vmem:[#allocation4 + $0x440] sm:$0xff]
    %v1257 = vld [vmem:[#allocation4 + $0x448] sm:$0xff]
    %v1258 = vld [vmem:[#allocation4 + $0x450] sm:$0xff]
    %v1259 = vld [vmem:[#allocation4 + $0x458] sm:$0xff]
    %v1260 = vld [vmem:[#allocation4 + $0x460] sm:$0xff]
    %v1261 = vld [vmem:[#allocation4 + $0x468] sm:$0xff]
    %v1262 = vld [vmem:[#allocation4 + $0x470] sm:$0xff]
    %v1263 = vld [vmem:[#allocation4 + $0x478] sm:$0xff]
    %v1264 = vld [vmem:[#allocation4 + $0x480] sm:$0xff]
    %v1265 = vld [vmem:[#allocation4 + $0x488] sm:$0xff]
    %v1266 = vld [vmem:[#allocation4 + $0x490] sm:$0xff]
    %v1267 = vld [vmem:[#allocation4 + $0x498] sm:$0xff]
    %v1268 = vld [vmem:[#allocation4 + $0x4a0] sm:$0xff]
    %v1269 = vld [vmem:[#allocation4 + $0x4a8] sm:$0xff]
    %v1270 = vld [vmem:[#allocation4 + $0x4b0] sm:$0xff]
    %v1271 = vld [vmem:[#allocation4 + $0x4b8] sm:$0xff]
    %v1272 = vld [vmem:[#allocation4 + $0x4c0] sm:$0xff]
    %v1273 = vld [vmem:[#allocation4 + $0x4c8] sm:$0xff]
    %v1274 = vld [vmem:[#allocation4 + $0x4d0] sm:$0xff]
    %v1275 = vld [vmem:[#allocation4 + $0x4d8] sm:$0xff]
    %v1276 = vld [vmem:[#allocation4 + $0x4e0] sm:$0xff]
    %v1277 = vld [vmem:[#allocation4 + $0x4e8] sm:$0xff]
    %v1278 = vld [vmem:[#allocation4 + $0x4f0] sm:$0xff]
    %v1279 = vld [vmem:[#allocation4 + $0x4f8] sm:$0xff]
    %v1280 = vld [vmem:[#allocation4 + $0x500] sm:$0xff]
    %v1281 = vld [vmem:[#allocation4 + $0x508] sm:$0xff]
    %v1282 = vld [vmem:[#allocation4 + $0x510] sm:$0xff]
    %v1283 = vld [vmem:[#allocation4 + $0x518] sm:$0xff]
    %v1284 = vld [vmem:[#allocation4 + $0x520] sm:$0xff]
    %v1285 = vld [vmem:[#allocation4 + $0x528] sm:$0xff]
    %v1286 = vld [vmem:[#allocation4 + $0x530] sm:$0xff]
    %v1287 = vld [vmem:[#allocation4 + $0x538] sm:$0xff]
    %v1288 = vld [vmem:[#allocation4 + $0x540] sm:$0xff]
    %v1289 = vld [vmem:[#allocation4 + $0x548] sm:$0xff]
    %v1290 = vld [vmem:[#allocation4 + $0x550] sm:$0xff]
    %v1291 = vld [vmem:[#allocation4 + $0x558] sm:$0xff]
    %v1292 = vld [vmem:[#allocation4 + $0x560] sm:$0xff]
    %v1293 = vld [vmem:[#allocation4 + $0x568] sm:$0xff]
    %v1294 = vld [vmem:[#allocation4 + $0x570] sm:$0xff]
    %v1295 = vld [vmem:[#allocation4 + $0x578] sm:$0xff]
    %v1296 = vld [vmem:[#allocation4 + $0x580] sm:$0xff]
    %v1297 = vld [vmem:[#allocation4 + $0x588] sm:$0xff]
    %v1298 = vld [vmem:[#allocation4 + $0x590] sm:$0xff]
    %v1299 = vld [vmem:[#allocation4 + $0x598] sm:$0xff]
    %v1300 = vld [vmem:[#allocation4 + $0x5a0] sm:$0xff]
    %v1301 = vld [vmem:[#allocation4 + $0x5a8] sm:$0xff]
    %v1302 = vld [vmem:[#allocation4 + $0x5b0] sm:$0xff]
    %v1303 = vld [vmem:[#allocation4 + $0x5b8] sm:$0xff]
    %v1304 = vld [vmem:[#allocation4 + $0x5c0] sm:$0xff]
    %v1305 = vld [vmem:[#allocation4 + $0x5c8] sm:$0xff]
    %v1306 = vld [vmem:[#allocation4 + $0x5d0] sm:$0xff]
    %v1307 = vld [vmem:[#allocation4 + $0x5d8] sm:$0xff]
    %v1308 = vld [vmem:[#allocation4 + $0x5e0] sm:$0xff]
    %v1309 = vld [vmem:[#allocation4 + $0x5e8] sm:$0xff]
    %v1310 = vld [vmem:[#allocation4 + $0x5f0] sm:$0xff]
    %v1311 = vld [vmem:[#allocation4 + $0x5f8] sm:$0xff]
    %v1312 = vld [vmem:[#allocation4 + $0x600] sm:$0xff]
    %v1313 = vld [vmem:[#allocation4 + $0x608] sm:$0xff]
    %v1314 = vld [vmem:[#allocation4 + $0x610] sm:$0xff]
    %v1315 = vld [vmem:[#allocation4 + $0x618] sm:$0xff]
    %v1316 = vld [vmem:[#allocation4 + $0x620] sm:$0xff]
    %v1317 = vld [vmem:[#allocation4 + $0x628] sm:$0xff]
    %v1318 = vld [vmem:[#allocation4 + $0x630] sm:$0xff]
    %v1319 = vld [vmem:[#allocation4 + $0x638] sm:$0xff]
    %v1320 = vld [vmem:[#allocation4 + $0x640] sm:$0xff]
    %v1321 = vld [vmem:[#allocation4 + $0x648] sm:$0xff]
    %v1322 = vld [vmem:[#allocation4 + $0x650] sm:$0xff]
    %v1323 = vld [vmem:[#allocation4 + $0x658] sm:$0xff]
    %v1324 = vld [vmem:[#allocation4 + $0x660] sm:$0xff]
    %v1325 = vld [vmem:[#allocation4 + $0x668] sm:$0xff]
    %v1326 = vld [vmem:[#allocation4 + $0x670] sm:$0xff]
    %v1327 = vld [vmem:[#allocation4 + $0x678] sm:$0xff]
    %v1328 = vld [vmem:[#allocation4 + $0x680] sm:$0xff]
    %v1329 = vld [vmem:[#allocation4 + $0x688] sm:$0xff]
    %v1330 = vld [vmem:[#allocation4 + $0x690] sm:$0xff]
    %v1331 = vld [vmem:[#allocation4 + $0x698] sm:$0xff]
    %v1332 = vld [vmem:[#allocation4 + $0x6a0] sm:$0xff]
    %v1333 = vld [vmem:[#allocation4 + $0x6a8] sm:$0xff]
    %v1334 = vld [vmem:[#allocation4 + $0x6b0] sm:$0xff]
    %v1335 = vld [vmem:[#allocation4 + $0x6b8] sm:$0xff]
    %v1336 = vld [vmem:[#allocation4 + $0x6c0] sm:$0xff]
    %v1337 = vld [vmem:[#allocation4 + $0x6c8] sm:$0xff]
    %v1338 = vld [vmem:[#allocation4 + $0x6d0] sm:$0xff]
    %v1339 = vld [vmem:[#allocation4 + $0x6d8] sm:$0xff]
    %v1340 = vld [vmem:[#allocation4 + $0x6e0] sm:$0xff]
    %v1341 = vld [vmem:[#allocation4 + $0x6e8] sm:$0xff]
    %v1342 = vld [vmem:[#allocation4 + $0x6f0] sm:$0xff]
    %v1343 = vld [vmem:[#allocation4 + $0x6f8] sm:$0xff]
    %v1344 = vld [vmem:[#allocation4 + $0x700] sm:$0xff]
    %v1345 = vld [vmem:[#allocation4 + $0x708] sm:$0xff]
    %v1346 = vld [vmem:[#allocation4 + $0x710] sm:$0xff]
    %v1347 = vld [vmem:[#allocation4 + $0x718] sm:$0xff]
    %v1348 = vld [vmem:[#allocation4 + $0x720] sm:$0xff]
    %v1349 = vld [vmem:[#allocation4 + $0x728] sm:$0xff]
    %v1350 = vld [vmem:[#allocation4 + $0x730] sm:$0xff]
    %v1351 = vld [vmem:[#allocation4 + $0x738] sm:$0xff]
    %v1352 = vld [vmem:[#allocation4 + $0x740] sm:$0xff]
    %v1353 = vld [vmem:[#allocation4 + $0x748] sm:$0xff]
    %v1354 = vld [vmem:[#allocation4 + $0x750] sm:$0xff]
    %v1355 = vld [vmem:[#allocation4 + $0x758] sm:$0xff]
    %v1356 = vld [vmem:[#allocation4 + $0x760] sm:$0xff]
    %v1357 = vld [vmem:[#allocation4 + $0x768] sm:$0xff]
    %v1358 = vld [vmem:[#allocation4 + $0x770] sm:$0xff]
    %v1359 = vld [vmem:[#allocation4 + $0x778] sm:$0xff]
    %v1360 = vld [vmem:[#allocation4 + $0x780] sm:$0xff]
    %v1361 = vld [vmem:[#allocation4 + $0x788] sm:$0xff]
    %v1362 = vld [vmem:[#allocation4 + $0x790] sm:$0xff]
    %v1363 = vld [vmem:[#allocation4 + $0x798] sm:$0xff]
    %v1364 = vld [vmem:[#allocation4 + $0x7a0] sm:$0xff]
    %v1365 = vld [vmem:[#allocation4 + $0x7a8] sm:$0xff]
    %v1366 = vld [vmem:[#allocation4 + $0x7b0] sm:$0xff]
    %v1367 = vld [vmem:[#allocation4 + $0x7b8] sm:$0xff]
    %v1368 = vld [vmem:[#allocation4 + $0x7c0] sm:$0xff]
    %v1369 = vld [vmem:[#allocation4 + $0x7c8] sm:$0xff]
    %v1370 = vld [vmem:[#allocation4 + $0x7d0] sm:$0xff]
    %v1371 = vld [vmem:[#allocation4 + $0x7d8] sm:$0xff]
    %v1372 = vld [vmem:[#allocation4 + $0x7e0] sm:$0xff]
    %v1373 = vld [vmem:[#allocation4 + $0x7e8] sm:$0xff]
    %v1374 = vld [vmem:[#allocation4 + $0x7f0] sm:$0xff]
    %v1375 = vld [vmem:[#allocation4 + $0x7f8] sm:$0xff]
    %v1376 = vld [vmem:[%s4] sm:$0xf]
    %v1378 = vlaneseq
    %v1379 = vshrl.u32 %v1378, 7
    %v1380 = vsub.s32 0, %v1379
    %v1381 = vrot.slane %v1376, %v1380
    %v1382 = vlaneseq
    %v1383 = vshrl.u32 %v1382, 7
    %v1384 = vsub.s32 1, %v1383
    %v1385 = vrot.slane %v1376, %v1384
    %v1386 = vlaneseq
    %v1387 = vshrl.u32 %v1386, 7
    %v1388 = vsub.s32 2, %v1387
    %v1389 = vrot.slane %v1376, %v1388
    %v1390 = vlaneseq
    %v1391 = vshrl.u32 %v1390, 7
    %v1392 = vsub.s32 3, %v1391
    %v1393 = vrot.slane %v1376, %v1392
    %v1654 = vunpack.c.l.b16 %v1120
    %v1655 = vunpack.c.h.b16 %v1120
    %v1656 = vunpack.c.l.b16 %v1121
    %v1657 = vunpack.c.h.b16 %v1121
    %v1658 = vunpack.c.l.b16 %v1122
    %v1659 = vunpack.c.h.b16 %v1122
    %v1660 = vunpack.c.l.b16 %v1123
    %v1661 = vunpack.c.h.b16 %v1123
    %v1662 = vunpack.c.l.b16 %v1124
    %v1663 = vunpack.c.h.b16 %v1124
    %v1664 = vunpack.c.l.b16 %v1125
    %v1665 = vunpack.c.h.b16 %v1125
    %v1666 = vunpack.c.l.b16 %v1126
    %v1667 = vunpack.c.h.b16 %v1126
    %v1668 = vunpack.c.l.b16 %v1127
    %v1669 = vunpack.c.h.b16 %v1127
    %v1670 = vunpack.c.l.b16 %v1128
    %v1671 = vunpack.c.h.b16 %v1128
    %v1672 = vunpack.c.l.b16 %v1129
    %v1673 = vunpack.c.h.b16 %v1129
    %v1674 = vunpack.c.l.b16 %v1130
    %v1675 = vunpack.c.h.b16 %v1130
    %v1676 = vunpack.c.l.b16 %v1131
    %v1677 = vunpack.c.h.b16 %v1131
    %v1678 = vunpack.c.l.b16 %v1132
    %v1679 = vunpack.c.h.b16 %v1132
    %v1680 = vunpack.c.l.b16 %v1133
    %v1681 = vunpack.c.h.b16 %v1133
    %v1682 = vunpack.c.l.b16 %v1134
    %v1683 = vunpack.c.h.b16 %v1134
    %v1684 = vunpack.c.l.b16 %v1135
    %v1685 = vunpack.c.h.b16 %v1135
    %v1686 = vunpack.c.l.b16 %v1136
    %v1687 = vunpack.c.h.b16 %v1136
    %v1688 = vunpack.c.l.b16 %v1137
    %v1689 = vunpack.c.h.b16 %v1137
    %v1690 = vunpack.c.l.b16 %v1138
    %v1691 = vunpack.c.h.b16 %v1138
    %v1692 = vunpack.c.l.b16 %v1139
    %v1693 = vunpack.c.h.b16 %v1139
    %v1694 = vunpack.c.l.b16 %v1140
    %v1695 = vunpack.c.h.b16 %v1140
    %v1696 = vunpack.c.l.b16 %v1141
    %v1697 = vunpack.c.h.b16 %v1141
    %v1698 = vunpack.c.l.b16 %v1142
    %v1699 = vunpack.c.h.b16 %v1142
    %v1700 = vunpack.c.l.b16 %v1143
    %v1701 = vunpack.c.h.b16 %v1143
    %v1702 = vunpack.c.l.b16 %v1144
    %v1703 = vunpack.c.h.b16 %v1144
    %v1704 = vunpack.c.l.b16 %v1145
    %v1705 = vunpack.c.h.b16 %v1145
    %v1706 = vunpack.c.l.b16 %v1146
    %v1707 = vunpack.c.h.b16 %v1146
    %v1708 = vunpack.c.l.b16 %v1147
    %v1709 = vunpack.c.h.b16 %v1147
    %v1710 = vunpack.c.l.b16 %v1148
    %v1711 = vunpack.c.h.b16 %v1148
    %v1712 = vunpack.c.l.b16 %v1149
    %v1713 = vunpack.c.h.b16 %v1149
    %v1714 = vunpack.c.l.b16 %v1150
    %v1715 = vunpack.c.h.b16 %v1150
    %v1716 = vunpack.c.l.b16 %v1151
    %v1717 = vunpack.c.h.b16 %v1151
    %v1718 = vunpack.c.l.b16 %v1152
    %v1719 = vunpack.c.h.b16 %v1152
    %v1720 = vunpack.c.l.b16 %v1153
    %v1721 = vunpack.c.h.b16 %v1153
    %v1722 = vunpack.c.l.b16 %v1154
    %v1723 = vunpack.c.h.b16 %v1154
    %v1724 = vunpack.c.l.b16 %v1155
    %v1725 = vunpack.c.h.b16 %v1155
    %v1726 = vunpack.c.l.b16 %v1156
    %v1727 = vunpack.c.h.b16 %v1156
    %v1728 = vunpack.c.l.b16 %v1157
    %v1729 = vunpack.c.h.b16 %v1157
    %v1730 = vunpack.c.l.b16 %v1158
    %v1731 = vunpack.c.h.b16 %v1158
    %v1732 = vunpack.c.l.b16 %v1159
    %v1733 = vunpack.c.h.b16 %v1159
    %v1734 = vunpack.c.l.b16 %v1160
    %v1735 = vunpack.c.h.b16 %v1160
    %v1736 = vunpack.c.l.b16 %v1161
    %v1737 = vunpack.c.h.b16 %v1161
    %v1738 = vunpack.c.l.b16 %v1162
    %v1739 = vunpack.c.h.b16 %v1162
    %v1740 = vunpack.c.l.b16 %v1163
    %v1741 = vunpack.c.h.b16 %v1163
    %v1742 = vunpack.c.l.b16 %v1164
    %v1743 = vunpack.c.h.b16 %v1164
    %v1744 = vunpack.c.l.b16 %v1165
    %v1745 = vunpack.c.h.b16 %v1165
    %v1746 = vunpack.c.l.b16 %v1166
    %v1747 = vunpack.c.h.b16 %v1166
    %v1748 = vunpack.c.l.b16 %v1167
    %v1749 = vunpack.c.h.b16 %v1167
    %v1750 = vunpack.c.l.b16 %v1168
    %v1751 = vunpack.c.h.b16 %v1168
    %v1752 = vunpack.c.l.b16 %v1169
    %v1753 = vunpack.c.h.b16 %v1169
    %v1754 = vunpack.c.l.b16 %v1170
    %v1755 = vunpack.c.h.b16 %v1170
    %v1756 = vunpack.c.l.b16 %v1171
    %v1757 = vunpack.c.h.b16 %v1171
    %v1758 = vunpack.c.l.b16 %v1172
    %v1759 = vunpack.c.h.b16 %v1172
    %v1760 = vunpack.c.l.b16 %v1173
    %v1761 = vunpack.c.h.b16 %v1173
    %v1762 = vunpack.c.l.b16 %v1174
    %v1763 = vunpack.c.h.b16 %v1174
    %v1764 = vunpack.c.l.b16 %v1175
    %v1765 = vunpack.c.h.b16 %v1175
    %v1766 = vunpack.c.l.b16 %v1176
    %v1767 = vunpack.c.h.b16 %v1176
    %v1768 = vunpack.c.l.b16 %v1177
    %v1769 = vunpack.c.h.b16 %v1177
    %v1770 = vunpack.c.l.b16 %v1178
    %v1771 = vunpack.c.h.b16 %v1178
    %v1772 = vunpack.c.l.b16 %v1179
    %v1773 = vunpack.c.h.b16 %v1179
    %v1774 = vunpack.c.l.b16 %v1180
    %v1775 = vunpack.c.h.b16 %v1180
    %v1776 = vunpack.c.l.b16 %v1181
    %v1777 = vunpack.c.h.b16 %v1181
    %v1778 = vunpack.c.l.b16 %v1182
    %v1779 = vunpack.c.h.b16 %v1182
    %v1780 = vunpack.c.l.b16 %v1183
    %v1781 = vunpack.c.h.b16 %v1183
    %v1782 = vunpack.c.l.b16 %v1184
    %v1783 = vunpack.c.h.b16 %v1184
    %v1784 = vunpack.c.l.b16 %v1185
    %v1785 = vunpack.c.h.b16 %v1185
    %v1786 = vunpack.c.l.b16 %v1186
    %v1787 = vunpack.c.h.b16 %v1186
    %v1788 = vunpack.c.l.b16 %v1187
    %v1789 = vunpack.c.h.b16 %v1187
    %v1790 = vunpack.c.l.b16 %v1188
    %v1791 = vunpack.c.h.b16 %v1188
    %v1792 = vunpack.c.l.b16 %v1189
    %v1793 = vunpack.c.h.b16 %v1189
    %v1794 = vunpack.c.l.b16 %v1190
    %v1795 = vunpack.c.h.b16 %v1190
    %v1796 = vunpack.c.l.b16 %v1191
    %v1797 = vunpack.c.h.b16 %v1191
    %v1798 = vunpack.c.l.b16 %v1192
    %v1799 = vunpack.c.h.b16 %v1192
    %v1800 = vunpack.c.l.b16 %v1193
    %v1801 = vunpack.c.h.b16 %v1193
    %v1802 = vunpack.c.l.b16 %v1194
    %v1803 = vunpack.c.h.b16 %v1194
    %v1804 = vunpack.c.l.b16 %v1195
    %v1805 = vunpack.c.h.b16 %v1195
    %v1806 = vunpack.c.l.b16 %v1196
    %v1807 = vunpack.c.h.b16 %v1196
    %v1808 = vunpack.c.l.b16 %v1197
    %v1809 = vunpack.c.h.b16 %v1197
    %v1810 = vunpack.c.l.b16 %v1198
    %v1811 = vunpack.c.h.b16 %v1198
    %v1812 = vunpack.c.l.b16 %v1199
    %v1813 = vunpack.c.h.b16 %v1199
    %v1814 = vunpack.c.l.b16 %v1200
    %v1815 = vunpack.c.h.b16 %v1200
    %v1816 = vunpack.c.l.b16 %v1201
    %v1817 = vunpack.c.h.b16 %v1201
    %v1818 = vunpack.c.l.b16 %v1202
    %v1819 = vunpack.c.h.b16 %v1202
    %v1820 = vunpack.c.l.b16 %v1203
    %v1821 = vunpack.c.h.b16 %v1203
    %v1822 = vunpack.c.l.b16 %v1204
    %v1823 = vunpack.c.h.b16 %v1204
    %v1824 = vunpack.c.l.b16 %v1205
    %v1825 = vunpack.c.h.b16 %v1205
    %v1826 = vunpack.c.l.b16 %v1206
    %v1827 = vunpack.c.h.b16 %v1206
    %v1828 = vunpack.c.l.b16 %v1207
    %v1829 = vunpack.c.h.b16 %v1207
    %v1830 = vunpack.c.l.b16 %v1208
    %v1831 = vunpack.c.h.b16 %v1208
    %v1832 = vunpack.c.l.b16 %v1209
    %v1833 = vunpack.c.h.b16 %v1209
    %v1834 = vunpack.c.l.b16 %v1210
    %v1835 = vunpack.c.h.b16 %v1210
    %v1836 = vunpack.c.l.b16 %v1211
    %v1837 = vunpack.c.h.b16 %v1211
    %v1838 = vunpack.c.l.b16 %v1212
    %v1839 = vunpack.c.h.b16 %v1212
    %v1840 = vunpack.c.l.b16 %v1213
    %v1841 = vunpack.c.h.b16 %v1213
    %v1842 = vunpack.c.l.b16 %v1214
    %v1843 = vunpack.c.h.b16 %v1214
    %v1844 = vunpack.c.l.b16 %v1215
    %v1845 = vunpack.c.h.b16 %v1215
    %v1846 = vunpack.c.l.b16 %v1216
    %v1847 = vunpack.c.h.b16 %v1216
    %v1848 = vunpack.c.l.b16 %v1217
    %v1849 = vunpack.c.h.b16 %v1217
    %v1850 = vunpack.c.l.b16 %v1218
    %v1851 = vunpack.c.h.b16 %v1218
    %v1852 = vunpack.c.l.b16 %v1219
    %v1853 = vunpack.c.h.b16 %v1219
    %v1854 = vunpack.c.l.b16 %v1220
    %v1855 = vunpack.c.h.b16 %v1220
    %v1856 = vunpack.c.l.b16 %v1221
    %v1857 = vunpack.c.h.b16 %v1221
    %v1858 = vunpack.c.l.b16 %v1222
    %v1859 = vunpack.c.h.b16 %v1222
    %v1860 = vunpack.c.l.b16 %v1223
    %v1861 = vunpack.c.h.b16 %v1223
    %v1862 = vunpack.c.l.b16 %v1224
    %v1863 = vunpack.c.h.b16 %v1224
    %v1864 = vunpack.c.l.b16 %v1225
    %v1865 = vunpack.c.h.b16 %v1225
    %v1866 = vunpack.c.l.b16 %v1226
    %v1867 = vunpack.c.h.b16 %v1226
    %v1868 = vunpack.c.l.b16 %v1227
    %v1869 = vunpack.c.h.b16 %v1227
    %v1870 = vunpack.c.l.b16 %v1228
    %v1871 = vunpack.c.h.b16 %v1228
    %v1872 = vunpack.c.l.b16 %v1229
    %v1873 = vunpack.c.h.b16 %v1229
    %v1874 = vunpack.c.l.b16 %v1230
    %v1875 = vunpack.c.h.b16 %v1230
    %v1876 = vunpack.c.l.b16 %v1231
    %v1877 = vunpack.c.h.b16 %v1231
    %v1878 = vunpack.c.l.b16 %v1232
    %v1879 = vunpack.c.h.b16 %v1232
    %v1880 = vunpack.c.l.b16 %v1233
    %v1881 = vunpack.c.h.b16 %v1233
    %v1882 = vunpack.c.l.b16 %v1234
    %v1883 = vunpack.c.h.b16 %v1234
    %v1884 = vunpack.c.l.b16 %v1235
    %v1885 = vunpack.c.h.b16 %v1235
    %v1886 = vunpack.c.l.b16 %v1236
    %v1887 = vunpack.c.h.b16 %v1236
    %v1888 = vunpack.c.l.b16 %v1237
    %v1889 = vunpack.c.h.b16 %v1237
    %v1890 = vunpack.c.l.b16 %v1238
    %v1891 = vunpack.c.h.b16 %v1238
    %v1892 = vunpack.c.l.b16 %v1239
    %v1893 = vunpack.c.h.b16 %v1239
    %v1894 = vunpack.c.l.b16 %v1240
    %v1895 = vunpack.c.h.b16 %v1240
    %v1896 = vunpack.c.l.b16 %v1241
    %v1897 = vunpack.c.h.b16 %v1241
    %v1898 = vunpack.c.l.b16 %v1242
    %v1899 = vunpack.c.h.b16 %v1242
    %v1900 = vunpack.c.l.b16 %v1243
    %v1901 = vunpack.c.h.b16 %v1243
    %v1902 = vunpack.c.l.b16 %v1244
    %v1903 = vunpack.c.h.b16 %v1244
    %v1904 = vunpack.c.l.b16 %v1245
    %v1905 = vunpack.c.h.b16 %v1245
    %v1906 = vunpack.c.l.b16 %v1246
    %v1907 = vunpack.c.h.b16 %v1246
    %v1908 = vunpack.c.l.b16 %v1247
    %v1909 = vunpack.c.h.b16 %v1247
    %v1910 = vunpack.c.l.b16 %v1248
    %v1911 = vunpack.c.h.b16 %v1248
    %v1912 = vunpack.c.l.b16 %v1249
    %v1913 = vunpack.c.h.b16 %v1249
    %v1914 = vunpack.c.l.b16 %v1250
    %v1915 = vunpack.c.h.b16 %v1250
    %v1916 = vunpack.c.l.b16 %v1251
    %v1917 = vunpack.c.h.b16 %v1251
    %v1918 = vunpack.c.l.b16 %v1252
    %v1919 = vunpack.c.h.b16 %v1252
    %v1920 = vunpack.c.l.b16 %v1253
    %v1921 = vunpack.c.h.b16 %v1253
    %v1922 = vunpack.c.l.b16 %v1254
    %v1923 = vunpack.c.h.b16 %v1254
    %v1924 = vunpack.c.l.b16 %v1255
    %v1925 = vunpack.c.h.b16 %v1255
    %v1926 = vunpack.c.l.b16 %v1256
    %v1927 = vunpack.c.h.b16 %v1256
    %v1928 = vunpack.c.l.b16 %v1257
    %v1929 = vunpack.c.h.b16 %v1257
    %v1930 = vunpack.c.l.b16 %v1258
    %v1931 = vunpack.c.h.b16 %v1258
    %v1932 = vunpack.c.l.b16 %v1259
    %v1933 = vunpack.c.h.b16 %v1259
    %v1934 = vunpack.c.l.b16 %v1260
    %v1935 = vunpack.c.h.b16 %v1260
    %v1936 = vunpack.c.l.b16 %v1261
    %v1937 = vunpack.c.h.b16 %v1261
    %v1938 = vunpack.c.l.b16 %v1262
    %v1939 = vunpack.c.h.b16 %v1262
    %v1940 = vunpack.c.l.b16 %v1263
    %v1941 = vunpack.c.h.b16 %v1263
    %v1942 = vunpack.c.l.b16 %v1264
    %v1943 = vunpack.c.h.b16 %v1264
    %v1944 = vunpack.c.l.b16 %v1265
    %v1945 = vunpack.c.h.b16 %v1265
    %v1946 = vunpack.c.l.b16 %v1266
    %v1947 = vunpack.c.h.b16 %v1266
    %v1948 = vunpack.c.l.b16 %v1267
    %v1949 = vunpack.c.h.b16 %v1267
    %v1950 = vunpack.c.l.b16 %v1268
    %v1951 = vunpack.c.h.b16 %v1268
    %v1952 = vunpack.c.l.b16 %v1269
    %v1953 = vunpack.c.h.b16 %v1269
    %v1954 = vunpack.c.l.b16 %v1270
    %v1955 = vunpack.c.h.b16 %v1270
    %v1956 = vunpack.c.l.b16 %v1271
    %v1957 = vunpack.c.h.b16 %v1271
    %v1958 = vunpack.c.l.b16 %v1272
    %v1959 = vunpack.c.h.b16 %v1272
    %v1960 = vunpack.c.l.b16 %v1273
    %v1961 = vunpack.c.h.b16 %v1273
    %v1962 = vunpack.c.l.b16 %v1274
    %v1963 = vunpack.c.h.b16 %v1274
    %v1964 = vunpack.c.l.b16 %v1275
    %v1965 = vunpack.c.h.b16 %v1275
    %v1966 = vunpack.c.l.b16 %v1276
    %v1967 = vunpack.c.h.b16 %v1276
    %v1968 = vunpack.c.l.b16 %v1277
    %v1969 = vunpack.c.h.b16 %v1277
    %v1970 = vunpack.c.l.b16 %v1278
    %v1971 = vunpack.c.h.b16 %v1278
    %v1972 = vunpack.c.l.b16 %v1279
    %v1973 = vunpack.c.h.b16 %v1279
    %v1974 = vunpack.c.l.b16 %v1280
    %v1975 = vunpack.c.h.b16 %v1280
    %v1976 = vunpack.c.l.b16 %v1281
    %v1977 = vunpack.c.h.b16 %v1281
    %v1978 = vunpack.c.l.b16 %v1282
    %v1979 = vunpack.c.h.b16 %v1282
    %v1980 = vunpack.c.l.b16 %v1283
    %v1981 = vunpack.c.h.b16 %v1283
    %v1982 = vunpack.c.l.b16 %v1284
    %v1983 = vunpack.c.h.b16 %v1284
    %v1984 = vunpack.c.l.b16 %v1285
    %v1985 = vunpack.c.h.b16 %v1285
    %v1986 = vunpack.c.l.b16 %v1286
    %v1987 = vunpack.c.h.b16 %v1286
    %v1988 = vunpack.c.l.b16 %v1287
    %v1989 = vunpack.c.h.b16 %v1287
    %v1990 = vunpack.c.l.b16 %v1288
    %v1991 = vunpack.c.h.b16 %v1288
    %v1992 = vunpack.c.l.b16 %v1289
    %v1993 = vunpack.c.h.b16 %v1289
    %v1994 = vunpack.c.l.b16 %v1290
    %v1995 = vunpack.c.h.b16 %v1290
    %v1996 = vunpack.c.l.b16 %v1291
    %v1997 = vunpack.c.h.b16 %v1291
    %v1998 = vunpack.c.l.b16 %v1292
    %v1999 = vunpack.c.h.b16 %v1292
    %v2000 = vunpack.c.l.b16 %v1293
    %v2001 = vunpack.c.h.b16 %v1293
    %v2002 = vunpack.c.l.b16 %v1294
    %v2003 = vunpack.c.h.b16 %v1294
    %v2004 = vunpack.c.l.b16 %v1295
    %v2005 = vunpack.c.h.b16 %v1295
    %v2006 = vunpack.c.l.b16 %v1296
    %v2007 = vunpack.c.h.b16 %v1296
    %v2008 = vunpack.c.l.b16 %v1297
    %v2009 = vunpack.c.h.b16 %v1297
    %v2010 = vunpack.c.l.b16 %v1298
    %v2011 = vunpack.c.h.b16 %v1298
    %v2012 = vunpack.c.l.b16 %v1299
    %v2013 = vunpack.c.h.b16 %v1299
    %v2014 = vunpack.c.l.b16 %v1300
    %v2015 = vunpack.c.h.b16 %v1300
    %v2016 = vunpack.c.l.b16 %v1301
    %v2017 = vunpack.c.h.b16 %v1301
    %v2018 = vunpack.c.l.b16 %v1302
    %v2019 = vunpack.c.h.b16 %v1302
    %v2020 = vunpack.c.l.b16 %v1303
    %v2021 = vunpack.c.h.b16 %v1303
    %v2022 = vunpack.c.l.b16 %v1304
    %v2023 = vunpack.c.h.b16 %v1304
    %v2024 = vunpack.c.l.b16 %v1305
    %v2025 = vunpack.c.h.b16 %v1305
    %v2026 = vunpack.c.l.b16 %v1306
    %v2027 = vunpack.c.h.b16 %v1306
    %v2028 = vunpack.c.l.b16 %v1307
    %v2029 = vunpack.c.h.b16 %v1307
    %v2030 = vunpack.c.l.b16 %v1308
    %v2031 = vunpack.c.h.b16 %v1308
    %v2032 = vunpack.c.l.b16 %v1309
    %v2033 = vunpack.c.h.b16 %v1309
    %v2034 = vunpack.c.l.b16 %v1310
    %v2035 = vunpack.c.h.b16 %v1310
    %v2036 = vunpack.c.l.b16 %v1311
    %v2037 = vunpack.c.h.b16 %v1311
    %v2038 = vunpack.c.l.b16 %v1312
    %v2039 = vunpack.c.h.b16 %v1312
    %v2040 = vunpack.c.l.b16 %v1313
    %v2041 = vunpack.c.h.b16 %v1313
    %v2042 = vunpack.c.l.b16 %v1314
    %v2043 = vunpack.c.h.b16 %v1314
    %v2044 = vunpack.c.l.b16 %v1315
    %v2045 = vunpack.c.h.b16 %v1315
    %v2046 = vunpack.c.l.b16 %v1316
    %v2047 = vunpack.c.h.b16 %v1316
    %v2048 = vunpack.c.l.b16 %v1317
    %v2049 = vunpack.c.h.b16 %v1317
    %v2050 = vunpack.c.l.b16 %v1318
    %v2051 = vunpack.c.h.b16 %v1318
    %v2052 = vunpack.c.l.b16 %v1319
    %v2053 = vunpack.c.h.b16 %v1319
    %v2054 = vunpack.c.l.b16 %v1320
    %v2055 = vunpack.c.h.b16 %v1320
    %v2056 = vunpack.c.l.b16 %v1321
    %v2057 = vunpack.c.h.b16 %v1321
    %v2058 = vunpack.c.l.b16 %v1322
    %v2059 = vunpack.c.h.b16 %v1322
    %v2060 = vunpack.c.l.b16 %v1323
    %v2061 = vunpack.c.h.b16 %v1323
    %v2062 = vunpack.c.l.b16 %v1324
    %v2063 = vunpack.c.h.b16 %v1324
    %v2064 = vunpack.c.l.b16 %v1325
    %v2065 = vunpack.c.h.b16 %v1325
    %v2066 = vunpack.c.l.b16 %v1326
    %v2067 = vunpack.c.h.b16 %v1326
    %v2068 = vunpack.c.l.b16 %v1327
    %v2069 = vunpack.c.h.b16 %v1327
    %v2070 = vunpack.c.l.b16 %v1328
    %v2071 = vunpack.c.h.b16 %v1328
    %v2072 = vunpack.c.l.b16 %v1329
    %v2073 = vunpack.c.h.b16 %v1329
    %v2074 = vunpack.c.l.b16 %v1330
    %v2075 = vunpack.c.h.b16 %v1330
    %v2076 = vunpack.c.l.b16 %v1331
    %v2077 = vunpack.c.h.b16 %v1331
    %v2078 = vunpack.c.l.b16 %v1332
    %v2079 = vunpack.c.h.b16 %v1332
    %v2080 = vunpack.c.l.b16 %v1333
    %v2081 = vunpack.c.h.b16 %v1333
    %v2082 = vunpack.c.l.b16 %v1334
    %v2083 = vunpack.c.h.b16 %v1334
    %v2084 = vunpack.c.l.b16 %v1335
    %v2085 = vunpack.c.h.b16 %v1335
    %v2086 = vunpack.c.l.b16 %v1336
    %v2087 = vunpack.c.h.b16 %v1336
    %v2088 = vunpack.c.l.b16 %v1337
    %v2089 = vunpack.c.h.b16 %v1337
    %v2090 = vunpack.c.l.b16 %v1338
    %v2091 = vunpack.c.h.b16 %v1338
    %v2092 = vunpack.c.l.b16 %v1339
    %v2093 = vunpack.c.h.b16 %v1339
    %v2094 = vunpack.c.l.b16 %v1340
    %v2095 = vunpack.c.h.b16 %v1340
    %v2096 = vunpack.c.l.b16 %v1341
    %v2097 = vunpack.c.h.b16 %v1341
    %v2098 = vunpack.c.l.b16 %v1342
    %v2099 = vunpack.c.h.b16 %v1342
    %v2100 = vunpack.c.l.b16 %v1343
    %v2101 = vunpack.c.h.b16 %v1343
    %v2102 = vunpack.c.l.b16 %v1344
    %v2103 = vunpack.c.h.b16 %v1344
    %v2104 = vunpack.c.l.b16 %v1345
    %v2105 = vunpack.c.h.b16 %v1345
    %v2106 = vunpack.c.l.b16 %v1346
    %v2107 = vunpack.c.h.b16 %v1346
    %v2108 = vunpack.c.l.b16 %v1347
    %v2109 = vunpack.c.h.b16 %v1347
    %v2110 = vunpack.c.l.b16 %v1348
    %v2111 = vunpack.c.h.b16 %v1348
    %v2112 = vunpack.c.l.b16 %v1349
    %v2113 = vunpack.c.h.b16 %v1349
    %v2114 = vunpack.c.l.b16 %v1350
    %v2115 = vunpack.c.h.b16 %v1350
    %v2116 = vunpack.c.l.b16 %v1351
    %v2117 = vunpack.c.h.b16 %v1351
    %v2118 = vunpack.c.l.b16 %v1352
    %v2119 = vunpack.c.h.b16 %v1352
    %v2120 = vunpack.c.l.b16 %v1353
    %v2121 = vunpack.c.h.b16 %v1353
    %v2122 = vunpack.c.l.b16 %v1354
    %v2123 = vunpack.c.h.b16 %v1354
    %v2124 = vunpack.c.l.b16 %v1355
    %v2125 = vunpack.c.h.b16 %v1355
    %v2126 = vunpack.c.l.b16 %v1356
    %v2127 = vunpack.c.h.b16 %v1356
    %v2128 = vunpack.c.l.b16 %v1357
    %v2129 = vunpack.c.h.b16 %v1357
    %v2130 = vunpack.c.l.b16 %v1358
    %v2131 = vunpack.c.h.b16 %v1358
    %v2132 = vunpack.c.l.b16 %v1359
    %v2133 = vunpack.c.h.b16 %v1359
    %v2134 = vunpack.c.l.b16 %v1360
    %v2135 = vunpack.c.h.b16 %v1360
    %v2136 = vunpack.c.l.b16 %v1361
    %v2137 = vunpack.c.h.b16 %v1361
    %v2138 = vunpack.c.l.b16 %v1362
    %v2139 = vunpack.c.h.b16 %v1362
    %v2140 = vunpack.c.l.b16 %v1363
    %v2141 = vunpack.c.h.b16 %v1363
    %v2142 = vunpack.c.l.b16 %v1364
    %v2143 = vunpack.c.h.b16 %v1364
    %v2144 = vunpack.c.l.b16 %v1365
    %v2145 = vunpack.c.h.b16 %v1365
    %v2146 = vunpack.c.l.b16 %v1366
    %v2147 = vunpack.c.h.b16 %v1366
    %v2148 = vunpack.c.l.b16 %v1367
    %v2149 = vunpack.c.h.b16 %v1367
    %v2150 = vunpack.c.l.b16 %v1368
    %v2151 = vunpack.c.h.b16 %v1368
    %v2152 = vunpack.c.l.b16 %v1369
    %v2153 = vunpack.c.h.b16 %v1369
    %v2154 = vunpack.c.l.b16 %v1370
    %v2155 = vunpack.c.h.b16 %v1370
    %v2156 = vunpack.c.l.b16 %v1371
    %v2157 = vunpack.c.h.b16 %v1371
    %v2158 = vunpack.c.l.b16 %v1372
    %v2159 = vunpack.c.h.b16 %v1372
    %v2160 = vunpack.c.l.b16 %v1373
    %v2161 = vunpack.c.h.b16 %v1373
    %v2162 = vunpack.c.l.b16 %v1374
    %v2163 = vunpack.c.h.b16 %v1374
    %v2164 = vunpack.c.l.b16 %v1375
    %v2165 = vunpack.c.h.b16 %v1375
    %v2166 = vpack.c.b16 %v1658, %v1654
    %v2167 = vpack.c.b16 %v1659, %v1655
    %v2168 = vpack.c.b16 %v1660, %v1656
    %v2169 = vpack.c.b16 %v1661, %v1657
    %v2170 = vpack.c.b16 %v1666, %v1662
    %v2171 = vpack.c.b16 %v1667, %v1663
    %v2172 = vpack.c.b16 %v1668, %v1664
    %v2173 = vpack.c.b16 %v1669, %v1665
    %v2174 = vpack.c.b16 %v1674, %v1670
    %v2175 = vpack.c.b16 %v1675, %v1671
    %v2176 = vpack.c.b16 %v1676, %v1672
    %v2177 = vpack.c.b16 %v1677, %v1673
    %v2178 = vpack.c.b16 %v1682, %v1678
    %v2179 = vpack.c.b16 %v1683, %v1679
    %v2180 = vpack.c.b16 %v1684, %v1680
    %v2181 = vpack.c.b16 %v1685, %v1681
    %v2182 = vpack.c.b16 %v1690, %v1686
    %v2183 = vpack.c.b16 %v1691, %v1687
    %v2184 = vpack.c.b16 %v1692, %v1688
    %v2185 = vpack.c.b16 %v1693, %v1689
    %v2186 = vpack.c.b16 %v1698, %v1694
    %v2187 = vpack.c.b16 %v1699, %v1695
    %v2188 = vpack.c.b16 %v1700, %v1696
    %v2189 = vpack.c.b16 %v1701, %v1697
    %v2190 = vpack.c.b16 %v1706, %v1702
    %v2191 = vpack.c.b16 %v1707, %v1703
    %v2192 = vpack.c.b16 %v1708, %v1704
    %v2193 = vpack.c.b16 %v1709, %v1705
    %v2194 = vpack.c.b16 %v1714, %v1710
    %v2195 = vpack.c.b16 %v1715, %v1711
    %v2196 = vpack.c.b16 %v1716, %v1712
    %v2197 = vpack.c.b16 %v1717, %v1713
    %v2198 = vpack.c.b16 %v1722, %v1718
    %v2199 = vpack.c.b16 %v1723, %v1719
    %v2200 = vpack.c.b16 %v1724, %v1720
    %v2201 = vpack.c.b16 %v1725, %v1721
    %v2202 = vpack.c.b16 %v1730, %v1726
    %v2203 = vpack.c.b16 %v1731, %v1727
    %v2204 = vpack.c.b16 %v1732, %v1728
    %v2205 = vpack.c.b16 %v1733, %v1729
    %v2206 = vpack.c.b16 %v1738, %v1734
    %v2207 = vpack.c.b16 %v1739, %v1735
    %v2208 = vpack.c.b16 %v1740, %v1736
    %v2209 = vpack.c.b16 %v1741, %v1737
    %v2210 = vpack.c.b16 %v1746, %v1742
    %v2211 = vpack.c.b16 %v1747, %v1743
    %v2212 = vpack.c.b16 %v1748, %v1744
    %v2213 = vpack.c.b16 %v1749, %v1745
    %v2214 = vpack.c.b16 %v1754, %v1750
    %v2215 = vpack.c.b16 %v1755, %v1751
    %v2216 = vpack.c.b16 %v1756, %v1752
    %v2217 = vpack.c.b16 %v1757, %v1753
    %v2218 = vpack.c.b16 %v1762, %v1758
    %v2219 = vpack.c.b16 %v1763, %v1759
    %v2220 = vpack.c.b16 %v1764, %v1760
    %v2221 = vpack.c.b16 %v1765, %v1761
    %v2222 = vpack.c.b16 %v1770, %v1766
    %v2223 = vpack.c.b16 %v1771, %v1767
    %v2224 = vpack.c.b16 %v1772, %v1768
    %v2225 = vpack.c.b16 %v1773, %v1769
    %v2226 = vpack.c.b16 %v1778, %v1774
    %v2227 = vpack.c.b16 %v1779, %v1775
    %v2228 = vpack.c.b16 %v1780, %v1776
    %v2229 = vpack.c.b16 %v1781, %v1777
    %v2230 = vpack.c.b16 %v1786, %v1782
    %v2231 = vpack.c.b16 %v1787, %v1783
    %v2232 = vpack.c.b16 %v1788, %v1784
    %v2233 = vpack.c.b16 %v1789, %v1785
    %v2234 = vpack.c.b16 %v1794, %v1790
    %v2235 = vpack.c.b16 %v1795, %v1791
    %v2236 = vpack.c.b16 %v1796, %v1792
    %v2237 = vpack.c.b16 %v1797, %v1793
    %v2238 = vpack.c.b16 %v1802, %v1798
    %v2239 = vpack.c.b16 %v1803, %v1799
    %v2240 = vpack.c.b16 %v1804, %v1800
    %v2241 = vpack.c.b16 %v1805, %v1801
    %v2242 = vpack.c.b16 %v1810, %v1806
    %v2243 = vpack.c.b16 %v1811, %v1807
    %v2244 = vpack.c.b16 %v1812, %v1808
    %v2245 = vpack.c.b16 %v1813, %v1809
    %v2246 = vpack.c.b16 %v1818, %v1814
    %v2247 = vpack.c.b16 %v1819, %v1815
    %v2248 = vpack.c.b16 %v1820, %v1816
    %v2249 = vpack.c.b16 %v1821, %v1817
    %v2250 = vpack.c.b16 %v1826, %v1822
    %v2251 = vpack.c.b16 %v1827, %v1823
    %v2252 = vpack.c.b16 %v1828, %v1824
    %v2253 = vpack.c.b16 %v1829, %v1825
    %v2254 = vpack.c.b16 %v1834, %v1830
    %v2255 = vpack.c.b16 %v1835, %v1831
    %v2256 = vpack.c.b16 %v1836, %v1832
    %v2257 = vpack.c.b16 %v1837, %v1833
    %v2258 = vpack.c.b16 %v1842, %v1838
    %v2259 = vpack.c.b16 %v1843, %v1839
    %v2260 = vpack.c.b16 %v1844, %v1840
    %v2261 = vpack.c.b16 %v1845, %v1841
    %v2262 = vpack.c.b16 %v1850, %v1846
    %v2263 = vpack.c.b16 %v1851, %v1847
    %v2264 = vpack.c.b16 %v1852, %v1848
    %v2265 = vpack.c.b16 %v1853, %v1849
    %v2266 = vpack.c.b16 %v1858, %v1854
    %v2267 = vpack.c.b16 %v1859, %v1855
    %v2268 = vpack.c.b16 %v1860, %v1856
    %v2269 = vpack.c.b16 %v1861, %v1857
    %v2270 = vpack.c.b16 %v1866, %v1862
    %v2271 = vpack.c.b16 %v1867, %v1863
    %v2272 = vpack.c.b16 %v1868, %v1864
    %v2273 = vpack.c.b16 %v1869, %v1865
    %v2274 = vpack.c.b16 %v1874, %v1870
    %v2275 = vpack.c.b16 %v1875, %v1871
    %v2276 = vpack.c.b16 %v1876, %v1872
    %v2277 = vpack.c.b16 %v1877, %v1873
    %v2278 = vpack.c.b16 %v1882, %v1878
    %v2279 = vpack.c.b16 %v1883, %v1879
    %v2280 = vpack.c.b16 %v1884, %v1880
    %v2281 = vpack.c.b16 %v1885, %v1881
    %v2282 = vpack.c.b16 %v1890, %v1886
    %v2283 = vpack.c.b16 %v1891, %v1887
    %v2284 = vpack.c.b16 %v1892, %v1888
    %v2285 = vpack.c.b16 %v1893, %v1889
    %v2286 = vpack.c.b16 %v1898, %v1894
    %v2287 = vpack.c.b16 %v1899, %v1895
    %v2288 = vpack.c.b16 %v1900, %v1896
    %v2289 = vpack.c.b16 %v1901, %v1897
    %v2290 = vpack.c.b16 %v1906, %v1902
    %v2291 = vpack.c.b16 %v1907, %v1903
    %v2292 = vpack.c.b16 %v1908, %v1904
    %v2293 = vpack.c.b16 %v1909, %v1905
    %v2294 = vpack.c.b16 %v1914, %v1910
    %v2295 = vpack.c.b16 %v1915, %v1911
    %v2296 = vpack.c.b16 %v1916, %v1912
    %v2297 = vpack.c.b16 %v1917, %v1913
    %v2298 = vpack.c.b16 %v1922, %v1918
    %v2299 = vpack.c.b16 %v1923, %v1919
    %v2300 = vpack.c.b16 %v1924, %v1920
    %v2301 = vpack.c.b16 %v1925, %v1921
    %v2302 = vpack.c.b16 %v1930, %v1926
    %v2303 = vpack.c.b16 %v1931, %v1927
    %v2304 = vpack.c.b16 %v1932, %v1928
    %v2305 = vpack.c.b16 %v1933, %v1929
    %v2306 = vpack.c.b16 %v1938, %v1934
    %v2307 = vpack.c.b16 %v1939, %v1935
    %v2308 = vpack.c.b16 %v1940, %v1936
    %v2309 = vpack.c.b16 %v1941, %v1937
    %v2310 = vpack.c.b16 %v1946, %v1942
    %v2311 = vpack.c.b16 %v1947, %v1943
    %v2312 = vpack.c.b16 %v1948, %v1944
    %v2313 = vpack.c.b16 %v1949, %v1945
    %v2314 = vpack.c.b16 %v1954, %v1950
    %v2315 = vpack.c.b16 %v1955, %v1951
    %v2316 = vpack.c.b16 %v1956, %v1952
    %v2317 = vpack.c.b16 %v1957, %v1953
    %v2318 = vpack.c.b16 %v1962, %v1958
    %v2319 = vpack.c.b16 %v1963, %v1959
    %v2320 = vpack.c.b16 %v1964, %v1960
    %v2321 = vpack.c.b16 %v1965, %v1961
    %v2322 = vpack.c.b16 %v1970, %v1966
    %v2323 = vpack.c.b16 %v1971, %v1967
    %v2324 = vpack.c.b16 %v1972, %v1968
    %v2325 = vpack.c.b16 %v1973, %v1969
    %v2326 = vpack.c.b16 %v1978, %v1974
    %v2327 = vpack.c.b16 %v1979, %v1975
    %v2328 = vpack.c.b16 %v1980, %v1976
    %v2329 = vpack.c.b16 %v1981, %v1977
    %v2330 = vpack.c.b16 %v1986, %v1982
    %v2331 = vpack.c.b16 %v1987, %v1983
    %v2332 = vpack.c.b16 %v1988, %v1984
    %v2333 = vpack.c.b16 %v1989, %v1985
    %v2334 = vpack.c.b16 %v1994, %v1990
    %v2335 = vpack.c.b16 %v1995, %v1991
    %v2336 = vpack.c.b16 %v1996, %v1992
    %v2337 = vpack.c.b16 %v1997, %v1993
    %v2338 = vpack.c.b16 %v2002, %v1998
    %v2339 = vpack.c.b16 %v2003, %v1999
    %v2340 = vpack.c.b16 %v2004, %v2000
    %v2341 = vpack.c.b16 %v2005, %v2001
    %v2342 = vpack.c.b16 %v2010, %v2006
    %v2343 = vpack.c.b16 %v2011, %v2007
    %v2344 = vpack.c.b16 %v2012, %v2008
    %v2345 = vpack.c.b16 %v2013, %v2009
    %v2346 = vpack.c.b16 %v2018, %v2014
    %v2347 = vpack.c.b16 %v2019, %v2015
    %v2348 = vpack.c.b16 %v2020, %v2016
    %v2349 = vpack.c.b16 %v2021, %v2017
    %v2350 = vpack.c.b16 %v2026, %v2022
    %v2351 = vpack.c.b16 %v2027, %v2023
    %v2352 = vpack.c.b16 %v2028, %v2024
    %v2353 = vpack.c.b16 %v2029, %v2025
    %v2354 = vpack.c.b16 %v2034, %v2030
    %v2355 = vpack.c.b16 %v2035, %v2031
    %v2356 = vpack.c.b16 %v2036, %v2032
    %v2357 = vpack.c.b16 %v2037, %v2033
    %v2358 = vpack.c.b16 %v2042, %v2038
    %v2359 = vpack.c.b16 %v2043, %v2039
    %v2360 = vpack.c.b16 %v2044, %v2040
    %v2361 = vpack.c.b16 %v2045, %v2041
    %v2362 = vpack.c.b16 %v2050, %v2046
    %v2363 = vpack.c.b16 %v2051, %v2047
    %v2364 = vpack.c.b16 %v2052, %v2048
    %v2365 = vpack.c.b16 %v2053, %v2049
    %v2366 = vpack.c.b16 %v2058, %v2054
    %v2367 = vpack.c.b16 %v2059, %v2055
    %v2368 = vpack.c.b16 %v2060, %v2056
    %v2369 = vpack.c.b16 %v2061, %v2057
    %v2370 = vpack.c.b16 %v2066, %v2062
    %v2371 = vpack.c.b16 %v2067, %v2063
    %v2372 = vpack.c.b16 %v2068, %v2064
    %v2373 = vpack.c.b16 %v2069, %v2065
    %v2374 = vpack.c.b16 %v2074, %v2070
    %v2375 = vpack.c.b16 %v2075, %v2071
    %v2376 = vpack.c.b16 %v2076, %v2072
    %v2377 = vpack.c.b16 %v2077, %v2073
    %v2378 = vpack.c.b16 %v2082, %v2078
    %v2379 = vpack.c.b16 %v2083, %v2079
    %v2380 = vpack.c.b16 %v2084, %v2080
    %v2381 = vpack.c.b16 %v2085, %v2081
    %v2382 = vpack.c.b16 %v2090, %v2086
    %v2383 = vpack.c.b16 %v2091, %v2087
    %v2384 = vpack.c.b16 %v2092, %v2088
    %v2385 = vpack.c.b16 %v2093, %v2089
    %v2386 = vpack.c.b16 %v2098, %v2094
    %v2387 = vpack.c.b16 %v2099, %v2095
    %v2388 = vpack.c.b16 %v2100, %v2096
    %v2389 = vpack.c.b16 %v2101, %v2097
    %v2390 = vpack.c.b16 %v2106, %v2102
    %v2391 = vpack.c.b16 %v2107, %v2103
    %v2392 = vpack.c.b16 %v2108, %v2104
    %v2393 = vpack.c.b16 %v2109, %v2105
    %v2394 = vpack.c.b16 %v2114, %v2110
    %v2395 = vpack.c.b16 %v2115, %v2111
    %v2396 = vpack.c.b16 %v2116, %v2112
    %v2397 = vpack.c.b16 %v2117, %v2113
    %v2398 = vpack.c.b16 %v2122, %v2118
    %v2399 = vpack.c.b16 %v2123, %v2119
    %v2400 = vpack.c.b16 %v2124, %v2120
    %v2401 = vpack.c.b16 %v2125, %v2121
    %v2402 = vpack.c.b16 %v2130, %v2126
    %v2403 = vpack.c.b16 %v2131, %v2127
    %v2404 = vpack.c.b16 %v2132, %v2128
    %v2405 = vpack.c.b16 %v2133, %v2129
    %v2406 = vpack.c.b16 %v2138, %v2134
    %v2407 = vpack.c.b16 %v2139, %v2135
    %v2408 = vpack.c.b16 %v2140, %v2136
    %v2409 = vpack.c.b16 %v2141, %v2137
    %v2410 = vpack.c.b16 %v2146, %v2142
    %v2411 = vpack.c.b16 %v2147, %v2143
    %v2412 = vpack.c.b16 %v2148, %v2144
    %v2413 = vpack.c.b16 %v2149, %v2145
    %v2414 = vpack.c.b16 %v2154, %v2150
    %v2415 = vpack.c.b16 %v2155, %v2151
    %v2416 = vpack.c.b16 %v2156, %v2152
    %v2417 = vpack.c.b16 %v2157, %v2153
    %v2418 = vpack.c.b16 %v2162, %v2158
    %v2419 = vpack.c.b16 %v2163, %v2159
    %v2420 = vpack.c.b16 %v2164, %v2160
    %v2421 = vpack.c.b16 %v2165, %v2161
    %2678 = vmatprep.subr.bf16.mxu0 %v2195
    %2679 = vmatpush1.bf16.msra.mxu0 %v2194
    %2680 = vmatprep.subr.bf16.mxu0 %v2191
    %2681 = vmatpush1.bf16.msra.mxu0 %v2190
    %2682 = vmatprep.subr.bf16.mxu0 %v2187
    %2683 = vmatpush1.bf16.msra.mxu0 %v2186
    %2684 = vmatprep.subr.bf16.mxu0 %v2183
    %2685 = vmatpush1.bf16.msra.mxu0 %v2182
    %2686 = vmatprep.subr.bf16.mxu0 %v2179
    %2687 = vmatpush1.bf16.msra.mxu0 %v2178
    %2688 = vmatprep.subr.bf16.mxu0 %v2175
    %2689 = vmatpush1.bf16.msra.mxu0 %v2174
    %2690 = vmatprep.subr.bf16.mxu0 %v2171
    %2691 = vmatpush1.bf16.msra.mxu0 %v2170
    %2692 = vmatprep.subr.bf16.mxu0 %v2167
    %2693 = vmatpush1.bf16.msra.mxu0 %v2166
    %2694 = vmatprep.subr.bf16.mxu0 %v2227
    %2695 = vmatpush2.bf16.msra.mxu0 %v2226
    %2696 = vmatprep.subr.bf16.mxu0 %v2223
    %2697 = vmatpush2.bf16.msra.mxu0 %v2222
    %2698 = vmatprep.subr.bf16.mxu0 %v2219
    %2699 = vmatpush2.bf16.msra.mxu0 %v2218
    %2700 = vmatprep.subr.bf16.mxu0 %v2215
    %2701 = vmatpush2.bf16.msra.mxu0 %v2214
    %2702 = vmatprep.subr.bf16.mxu0 %v2211
    %2703 = vmatpush2.bf16.msra.mxu0 %v2210
    %2704 = vmatprep.subr.bf16.mxu0 %v2207
    %2705 = vmatpush2.bf16.msra.mxu0 %v2206
    %2706 = vmatprep.subr.bf16.mxu0 %v2203
    %2707 = vmatpush2.bf16.msra.mxu0 %v2202
    %2708 = vmatprep.subr.bf16.mxu0 %v2199
    %2709 = vmatpush2.bf16.msra.mxu0 %v2198
    %2710 = vmatprep.mubr.bf16.mxu0 %v1113
    %2711 = vmatmul.mubr.bf16.gmra.mxu0 %v1112
    %v2712 = vpop.f32.mrf.mxu0
    %v2713 = vadd.f32 %v1381, %v2712
    %v2714 = vpop.f32.mrf.mxu0
    %v2715 = vadd.f32 %v1385, %v2714
    %v2716 = vpop.f32.mrf.mxu0
    %v2717 = vpop.f32.mrf.mxu0
    %2718 = vdwg.mxu0
    %2719 = vmatprep.subr.bf16.mxu0 %v2259
    %2720 = vmatpush1.bf16.msra.mxu0 %v2258
    %2721 = vmatprep.subr.bf16.mxu0 %v2255
    %2722 = vmatpush1.bf16.msra.mxu0 %v2254
    %2723 = vmatprep.subr.bf16.mxu0 %v2251
    %2724 = vmatpush1.bf16.msra.mxu0 %v2250
    %2725 = vmatprep.subr.bf16.mxu0 %v2247
    %2726 = vmatpush1.bf16.msra.mxu0 %v2246
    %2727 = vmatprep.subr.bf16.mxu0 %v2243
    %2728 = vmatpush1.bf16.msra.mxu0 %v2242
    %2729 = vmatprep.subr.bf16.mxu0 %v2239
    %2730 = vmatpush1.bf16.msra.mxu0 %v2238
    %2731 = vmatprep.subr.bf16.mxu0 %v2235
    %2732 = vmatpush1.bf16.msra.mxu0 %v2234
    %2733 = vmatprep.subr.bf16.mxu0 %v2231
    %2734 = vmatpush1.bf16.msra.mxu0 %v2230
    %2735 = vmatprep.subr.bf16.mxu0 %v2291
    %2736 = vmatpush2.bf16.msra.mxu0 %v2290
    %2737 = vmatprep.subr.bf16.mxu0 %v2287
    %2738 = vmatpush2.bf16.msra.mxu0 %v2286
    %2739 = vmatprep.subr.bf16.mxu0 %v2283
    %2740 = vmatpush2.bf16.msra.mxu0 %v2282
    %2741 = vmatprep.subr.bf16.mxu0 %v2279
    %2742 = vmatpush2.bf16.msra.mxu0 %v2278
    %2743 = vmatprep.subr.bf16.mxu0 %v2275
    %2744 = vmatpush2.bf16.msra.mxu0 %v2274
    %2745 = vmatprep.subr.bf16.mxu0 %v2271
    %2746 = vmatpush2.bf16.msra.mxu0 %v2270
    %2747 = vmatprep.subr.bf16.mxu0 %v2267
    %2748 = vmatpush2.bf16.msra.mxu0 %v2266
    %2749 = vmatprep.subr.bf16.mxu0 %v2263
    %2750 = vmatpush2.bf16.msra.mxu0 %v2262
    %2751 = vmatprep.mubr.bf16.mxu0 %v1115
    %2752 = vmatmul.mubr.bf16.gmra.mxu0 %v1114
    %v2753 = vpop.f32.mrf.mxu0
    %v2754 = vadd.f32 %v2713, %v2753
    %v2755 = vpop.f32.mrf.mxu0
    %v2756 = vadd.f32 %v2715, %v2755
    %v2757 = vpop.f32.mrf.mxu0
    %v2758 = vpop.f32.mrf.mxu0
    %2759 = vdwg.mxu0
    %2760 = vmatprep.subr.bf16.mxu0 %v2323
    %2761 = vmatpush1.bf16.msra.mxu0 %v2322
    %2762 = vmatprep.subr.bf16.mxu0 %v2319
    %2763 = vmatpush1.bf16.msra.mxu0 %v2318
    %2764 = vmatprep.subr.bf16.mxu0 %v2315
    %2765 = vmatpush1.bf16.msra.mxu0 %v2314
    %2766 = vmatprep.subr.bf16.mxu0 %v2311
    %2767 = vmatpush1.bf16.msra.mxu0 %v2310
    %2768 = vmatprep.subr.bf16.mxu0 %v2307
    %2769 = vmatpush1.bf16.msra.mxu0 %v2306
    %2770 = vmatprep.subr.bf16.mxu0 %v2303
    %2771 = vmatpush1.bf16.msra.mxu0 %v2302
    %2772 = vmatprep.subr.bf16.mxu0 %v2299
    %2773 = vmatpush1.bf16.msra.mxu0 %v2298
    %2774 = vmatprep.subr.bf16.mxu0 %v2295
    %2775 = vmatpush1.bf16.msra.mxu0 %v2294
    %2776 = vmatprep.subr.bf16.mxu0 %v2355
    %2777 = vmatpush2.bf16.msra.mxu0 %v2354
    %2778 = vmatprep.subr.bf16.mxu0 %v2351
    %2779 = vmatpush2.bf16.msra.mxu0 %v2350
    %2780 = vmatprep.subr.bf16.mxu0 %v2347
    %2781 = vmatpush2.bf16.msra.mxu0 %v2346
    %2782 = vmatprep.subr.bf16.mxu0 %v2343
    %2783 = vmatpush2.bf16.msra.mxu0 %v2342
    %2784 = vmatprep.subr.bf16.mxu0 %v2339
    %2785 = vmatpush2.bf16.msra.mxu0 %v2338
    %2786 = vmatprep.subr.bf16.mxu0 %v2335
    %2787 = vmatpush2.bf16.msra.mxu0 %v2334
    %2788 = vmatprep.subr.bf16.mxu0 %v2331
    %2789 = vmatpush2.bf16.msra.mxu0 %v2330
    %2790 = vmatprep.subr.bf16.mxu0 %v2327
    %2791 = vmatpush2.bf16.msra.mxu0 %v2326
    %2792 = vmatprep.mubr.bf16.mxu0 %v1117
    %2793 = vmatmul.mubr.bf16.gmra.mxu0 %v1116
    %v2794 = vpop.f32.mrf.mxu0
    %v2795 = vadd.f32 %v2754, %v2794
    %v2796 = vpop.f32.mrf.mxu0
    %v2797 = vadd.f32 %v2756, %v2796
    %v2798 = vpop.f32.mrf.mxu0
    %v2799 = vpop.f32.mrf.mxu0
    %2800 = vdwg.mxu0
    %2801 = vmatprep.subr.bf16.mxu0 %v2387
    %2802 = vmatpush1.bf16.msra.mxu0 %v2386
    %2803 = vmatprep.subr.bf16.mxu0 %v2383
    %2804 = vmatpush1.bf16.msra.mxu0 %v2382
    %2805 = vmatprep.subr.bf16.mxu0 %v2379
    %2806 = vmatpush1.bf16.msra.mxu0 %v2378
    %2807 = vmatprep.subr.bf16.mxu0 %v2375
    %2808 = vmatpush1.bf16.msra.mxu0 %v2374
    %2809 = vmatprep.subr.bf16.mxu0 %v2371
    %2810 = vmatpush1.bf16.msra.mxu0 %v2370
    %2811 = vmatprep.subr.bf16.mxu0 %v2367
    %2812 = vmatpush1.bf16.msra.mxu0 %v2366
    %2813 = vmatprep.subr.bf16.mxu0 %v2363
    %2814 = vmatpush1.bf16.msra.mxu0 %v2362
    %2815 = vmatprep.subr.bf16.mxu0 %v2359
    %2816 = vmatpush1.bf16.msra.mxu0 %v2358
    %2817 = vmatprep.subr.bf16.mxu0 %v2419
    %2818 = vmatpush2.bf16.msra.mxu0 %v2418
    %2819 = vmatprep.subr.bf16.mxu0 %v2415
    %2820 = vmatpush2.bf16.msra.mxu0 %v2414
    %2821 = vmatprep.subr.bf16.mxu0 %v2411
    %2822 = vmatpush2.bf16.msra.mxu0 %v2410
    %2823 = vmatprep.subr.bf16.mxu0 %v2407
    %2824 = vmatpush2.bf16.msra.mxu0 %v2406
    %2825 = vmatprep.subr.bf16.mxu0 %v2403
    %2826 = vmatpush2.bf16.msra.mxu0 %v2402
    %2827 = vmatprep.subr.bf16.mxu0 %v2399
    %2828 = vmatpush2.bf16.msra.mxu0 %v2398
    %2829 = vmatprep.subr.bf16.mxu0 %v2395
    %2830 = vmatpush2.bf16.msra.mxu0 %v2394
    %2831 = vmatprep.subr.bf16.mxu0 %v2391
    %2832 = vmatpush2.bf16.msra.mxu0 %v2390
    %2833 = vmatprep.mubr.bf16.mxu0 %v1119
    %2834 = vmatmul.mubr.bf16.gmra.mxu0 %v1118
    %v2835 = vpop.f32.mrf.mxu0
    %v2836 = vadd.f32 %v2795, %v2835
    %v2837 = vpop.f32.mrf.mxu0
    %v2838 = vadd.f32 %v2797, %v2837
    %v2839 = vpop.f32.mrf.mxu0
    %v2840 = vpop.f32.mrf.mxu0
    %2841 = vdwg.mxu0
    %2842 = vmatprep.subr.bf16.mxu0 %v2197
    %2843 = vmatpush1.bf16.msra.mxu0 %v2196
    %2844 = vmatprep.subr.bf16.mxu0 %v2193
    %2845 = vmatpush1.bf16.msra.mxu0 %v2192
    %2846 = vmatprep.subr.bf16.mxu0 %v2189
    %2847 = vmatpush1.bf16.msra.mxu0 %v2188
    %2848 = vmatprep.subr.bf16.mxu0 %v2185
    %2849 = vmatpush1.bf16.msra.mxu0 %v2184
    %2850 = vmatprep.subr.bf16.mxu0 %v2181
    %2851 = vmatpush1.bf16.msra.mxu0 %v2180
    %2852 = vmatprep.subr.bf16.mxu0 %v2177
    %2853 = vmatpush1.bf16.msra.mxu0 %v2176
    %2854 = vmatprep.subr.bf16.mxu0 %v2173
    %2855 = vmatpush1.bf16.msra.mxu0 %v2172
    %2856 = vmatprep.subr.bf16.mxu0 %v2169
    %2857 = vmatpush1.bf16.msra.mxu0 %v2168
    %2858 = vmatprep.subr.bf16.mxu0 %v2229
    %2859 = vmatpush2.bf16.msra.mxu0 %v2228
    %2860 = vmatprep.subr.bf16.mxu0 %v2225
    %2861 = vmatpush2.bf16.msra.mxu0 %v2224
    %2862 = vmatprep.subr.bf16.mxu0 %v2221
    %2863 = vmatpush2.bf16.msra.mxu0 %v2220
    %2864 = vmatprep.subr.bf16.mxu0 %v2217
    %2865 = vmatpush2.bf16.msra.mxu0 %v2216
    %2866 = vmatprep.subr.bf16.mxu0 %v2213
    %2867 = vmatpush2.bf16.msra.mxu0 %v2212
    %2868 = vmatprep.subr.bf16.mxu0 %v2209
    %2869 = vmatpush2.bf16.msra.mxu0 %v2208
    %2870 = vmatprep.subr.bf16.mxu0 %v2205
    %2871 = vmatpush2.bf16.msra.mxu0 %v2204
    %2872 = vmatprep.subr.bf16.mxu0 %v2201
    %2873 = vmatpush2.bf16.msra.mxu0 %v2200
    %2874 = vmatprep.mubr.bf16.mxu0 %v1113
    %2875 = vmatmul.mubr.bf16.gmra.mxu0 %v1112
    %v2876 = vpop.f32.mrf.mxu0
    %v2877 = vadd.f32 %v1389, %v2876
    %v2878 = vpop.f32.mrf.mxu0
    %v2879 = vadd.f32 %v1393, %v2878
    %v2880 = vpop.f32.mrf.mxu0
    %v2881 = vpop.f32.mrf.mxu0
    %2882 = vdwg.mxu0
    %2883 = vmatprep.subr.bf16.mxu0 %v2261
    %2884 = vmatpush1.bf16.msra.mxu0 %v2260
    %2885 = vmatprep.subr.bf16.mxu0 %v2257
    %2886 = vmatpush1.bf16.msra.mxu0 %v2256
    %2887 = vmatprep.subr.bf16.mxu0 %v2253
    %2888 = vmatpush1.bf16.msra.mxu0 %v2252
    %2889 = vmatprep.subr.bf16.mxu0 %v2249
    %2890 = vmatpush1.bf16.msra.mxu0 %v2248
    %2891 = vmatprep.subr.bf16.mxu0 %v2245
    %2892 = vmatpush1.bf16.msra.mxu0 %v2244
    %2893 = vmatprep.subr.bf16.mxu0 %v2241
    %2894 = vmatpush1.bf16.msra.mxu0 %v2240
    %2895 = vmatprep.subr.bf16.mxu0 %v2237
    %2896 = vmatpush1.bf16.msra.mxu0 %v2236
    %2897 = vmatprep.subr.bf16.mxu0 %v2233
    %2898 = vmatpush1.bf16.msra.mxu0 %v2232
    %2899 = vmatprep.subr.bf16.mxu0 %v2293
    %2900 = vmatpush2.bf16.msra.mxu0 %v2292
    %2901 = vmatprep.subr.bf16.mxu0 %v2289
    %2902 = vmatpush2.bf16.msra.mxu0 %v2288
    %2903 = vmatprep.subr.bf16.mxu0 %v2285
    %2904 = vmatpush2.bf16.msra.mxu0 %v2284
    %2905 = vmatprep.subr.bf16.mxu0 %v2281
    %2906 = vmatpush2.bf16.msra.mxu0 %v2280
    %2907 = vmatprep.subr.bf16.mxu0 %v2277
    %2908 = vmatpush2.bf16.msra.mxu0 %v2276
    %2909 = vmatprep.subr.bf16.mxu0 %v2273
    %2910 = vmatpush2.bf16.msra.mxu0 %v2272
    %2911 = vmatprep.subr.bf16.mxu0 %v2269
    %2912 = vmatpush2.bf16.msra.mxu0 %v2268
    %2913 = vmatprep.subr.bf16.mxu0 %v2265
    %2914 = vmatpush2.bf16.msra.mxu0 %v2264
    %2915 = vmatprep.mubr.bf16.mxu0 %v1115
    %2916 = vmatmul.mubr.bf16.gmra.mxu0 %v1114
    %v2917 = vpop.f32.mrf.mxu0
    %v2918 = vadd.f32 %v2877, %v2917
    %v2919 = vpop.f32.mrf.mxu0
    %v2920 = vadd.f32 %v2879, %v2919
    %v2921 = vpop.f32.mrf.mxu0
    %v2922 = vpop.f32.mrf.mxu0
    %2923 = vdwg.mxu0
    %2924 = vmatprep.subr.bf16.mxu0 %v2325
    %2925 = vmatpush1.bf16.msra.mxu0 %v2324
    %2926 = vmatprep.subr.bf16.mxu0 %v2321
    %2927 = vmatpush1.bf16.msra.mxu0 %v2320
    %2928 = vmatprep.subr.bf16.mxu0 %v2317
    %2929 = vmatpush1.bf16.msra.mxu0 %v2316
    %2930 = vmatprep.subr.bf16.mxu0 %v2313
    %2931 = vmatpush1.bf16.msra.mxu0 %v2312
    %2932 = vmatprep.subr.bf16.mxu0 %v2309
    %2933 = vmatpush1.bf16.msra.mxu0 %v2308
    %2934 = vmatprep.subr.bf16.mxu0 %v2305
    %2935 = vmatpush1.bf16.msra.mxu0 %v2304
    %2936 = vmatprep.subr.bf16.mxu0 %v2301
    %2937 = vmatpush1.bf16.msra.mxu0 %v2300
    %2938 = vmatprep.subr.bf16.mxu0 %v2297
    %2939 = vmatpush1.bf16.msra.mxu0 %v2296
    %2940 = vmatprep.subr.bf16.mxu0 %v2357
    %2941 = vmatpush2.bf16.msra.mxu0 %v2356
    %2942 = vmatprep.subr.bf16.mxu0 %v2353
    %2943 = vmatpush2.bf16.msra.mxu0 %v2352
    %2944 = vmatprep.subr.bf16.mxu0 %v2349
    %2945 = vmatpush2.bf16.msra.mxu0 %v2348
    %2946 = vmatprep.subr.bf16.mxu0 %v2345
    %2947 = vmatpush2.bf16.msra.mxu0 %v2344
    %2948 = vmatprep.subr.bf16.mxu0 %v2341
    %2949 = vmatpush2.bf16.msra.mxu0 %v2340
    %2950 = vmatprep.subr.bf16.mxu0 %v2337
    %2951 = vmatpush2.bf16.msra.mxu0 %v2336
    %2952 = vmatprep.subr.bf16.mxu0 %v2333
    %2953 = vmatpush2.bf16.msra.mxu0 %v2332
    %2954 = vmatprep.subr.bf16.mxu0 %v2329
    %2955 = vmatpush2.bf16.msra.mxu0 %v2328
    %2956 = vmatprep.mubr.bf16.mxu0 %v1117
    %2957 = vmatmul.mubr.bf16.gmra.mxu0 %v1116
    %v2958 = vpop.f32.mrf.mxu0
    %v2959 = vadd.f32 %v2918, %v2958
    %v2960 = vpop.f32.mrf.mxu0
    %v2961 = vadd.f32 %v2920, %v2960
    %v2962 = vpop.f32.mrf.mxu0
    %v2963 = vpop.f32.mrf.mxu0
    %2964 = vdwg.mxu0
    %2965 = vmatprep.subr.bf16.mxu0 %v2389
    %2966 = vmatpush1.bf16.msra.mxu0 %v2388
    %2967 = vmatprep.subr.bf16.mxu0 %v2385
    %2968 = vmatpush1.bf16.msra.mxu0 %v2384
    %2969 = vmatprep.subr.bf16.mxu0 %v2381
    %2970 = vmatpush1.bf16.msra.mxu0 %v2380
    %2971 = vmatprep.subr.bf16.mxu0 %v2377
    %2972 = vmatpush1.bf16.msra.mxu0 %v2376
    %2973 = vmatprep.subr.bf16.mxu0 %v2373
    %2974 = vmatpush1.bf16.msra.mxu0 %v2372
    %2975 = vmatprep.subr.bf16.mxu0 %v2369
    %2976 = vmatpush1.bf16.msra.mxu0 %v2368
    %2977 = vmatprep.subr.bf16.mxu0 %v2365
    %2978 = vmatpush1.bf16.msra.mxu0 %v2364
    %2979 = vmatprep.subr.bf16.mxu0 %v2361
    %2980 = vmatpush1.bf16.msra.mxu0 %v2360
    %2981 = vmatprep.subr.bf16.mxu0 %v2421
    %2982 = vmatpush2.bf16.msra.mxu0 %v2420
    %2983 = vmatprep.subr.bf16.mxu0 %v2417
    %2984 = vmatpush2.bf16.msra.mxu0 %v2416
    %2985 = vmatprep.subr.bf16.mxu0 %v2413
    %2986 = vmatpush2.bf16.msra.mxu0 %v2412
    %2987 = vmatprep.subr.bf16.mxu0 %v2409
    %2988 = vmatpush2.bf16.msra.mxu0 %v2408
    %2989 = vmatprep.subr.bf16.mxu0 %v2405
    %2990 = vmatpush2.bf16.msra.mxu0 %v2404
    %2991 = vmatprep.subr.bf16.mxu0 %v2401
    %2992 = vmatpush2.bf16.msra.mxu0 %v2400
    %2993 = vmatprep.subr.bf16.mxu0 %v2397
    %2994 = vmatpush2.bf16.msra.mxu0 %v2396
    %2995 = vmatprep.subr.bf16.mxu0 %v2393
    %2996 = vmatpush2.bf16.msra.mxu0 %v2392
    %2997 = vmatprep.mubr.bf16.mxu0 %v1119
    %2998 = vmatmul.mubr.bf16.gmra.mxu0 %v1118
    %v2999 = vpop.f32.mrf.mxu0
    %v3000 = vadd.f32 %v2959, %v2999
    %v3001 = vpop.f32.mrf.mxu0
    %v3002 = vadd.f32 %v2961, %v3001
    %v3003 = vpop.f32.mrf.mxu0
    %v3004 = vpop.f32.mrf.mxu0
    %3005 = vdwg.mxu0
    %v3006 = vmax.f32 %v2836, 0.0
    %v3007 = vmax.f32 %v2838, 0.0
    %v3008 = vmax.f32 %v3000, 0.0
    %v3009 = vmax.f32 %v3002, 0.0
    %v3010 = vpack.c.bf16 %v3006, %v3006
    %v3011 = vpack.c.bf16 %v3007, %v3007
    %v3012 = vpack.c.bf16 %v3008, %v3008
    %v3013 = vpack.c.bf16 %v3009, %v3009
    %v3014 = vld [vmem:[#allocation6] sm:$0xff]
    %v3015 = vld [vmem:[#allocation6 + $0x8] sm:$0xff]
    %v3016 = vld [vmem:[#allocation6 + $0x10] sm:$0xff]
    %v3017 = vld [vmem:[#allocation6 + $0x18] sm:$0xff]
    %v3018 = vld [vmem:[#allocation6 + $0x20] sm:$0xff]
    %v3019 = vld [vmem:[#allocation6 + $0x28] sm:$0xff]
    %v3020 = vld [vmem:[#allocation6 + $0x30] sm:$0xff]
    %v3021 = vld [vmem:[#allocation6 + $0x38] sm:$0xff]
    %v3022 = vld [vmem:[#allocation6 + $0x40] sm:$0xff]
    %v3023 = vld [vmem:[#allocation6 + $0x48] sm:$0xff]
    %v3024 = vld [vmem:[#allocation6 + $0x50] sm:$0xff]
    %v3025 = vld [vmem:[#allocation6 + $0x58] sm:$0xff]
    %v3026 = vld [vmem:[#allocation6 + $0x60] sm:$0xff]
    %v3027 = vld [vmem:[#allocation6 + $0x68] sm:$0xff]
    %v3028 = vld [vmem:[#allocation6 + $0x70] sm:$0xff]
    %v3029 = vld [vmem:[#allocation6 + $0x78] sm:$0xff]
    %v3030 = vld [vmem:[#allocation6 + $0x80] sm:$0xff]
    %v3031 = vld [vmem:[#allocation6 + $0x88] sm:$0xff]
    %v3032 = vld [vmem:[#allocation6 + $0x90] sm:$0xff]
    %v3033 = vld [vmem:[#allocation6 + $0x98] sm:$0xff]
    %v3034 = vld [vmem:[#allocation6 + $0xa0] sm:$0xff]
    %v3035 = vld [vmem:[#allocation6 + $0xa8] sm:$0xff]
    %v3036 = vld [vmem:[#allocation6 + $0xb0] sm:$0xff]
    %v3037 = vld [vmem:[#allocation6 + $0xb8] sm:$0xff]
    %v3038 = vld [vmem:[#allocation6 + $0xc0] sm:$0xff]
    %v3039 = vld [vmem:[#allocation6 + $0xc8] sm:$0xff]
    %v3040 = vld [vmem:[#allocation6 + $0xd0] sm:$0xff]
    %v3041 = vld [vmem:[#allocation6 + $0xd8] sm:$0xff]
    %v3042 = vld [vmem:[#allocation6 + $0xe0] sm:$0xff]
    %v3043 = vld [vmem:[#allocation6 + $0xe8] sm:$0xff]
    %v3044 = vld [vmem:[#allocation6 + $0xf0] sm:$0xff]
    %v3045 = vld [vmem:[#allocation6 + $0xf8] sm:$0xff]
    %v3046 = vld [vmem:[#allocation6 + $0x100] sm:$0xff]
    %v3047 = vld [vmem:[#allocation6 + $0x108] sm:$0xff]
    %v3048 = vld [vmem:[#allocation6 + $0x110] sm:$0xff]
    %v3049 = vld [vmem:[#allocation6 + $0x118] sm:$0xff]
    %v3050 = vld [vmem:[#allocation6 + $0x120] sm:$0xff]
    %v3051 = vld [vmem:[#allocation6 + $0x128] sm:$0xff]
    %v3052 = vld [vmem:[#allocation6 + $0x130] sm:$0xff]
    %v3053 = vld [vmem:[#allocation6 + $0x138] sm:$0xff]
    %v3054 = vld [vmem:[#allocation6 + $0x140] sm:$0xff]
    %v3055 = vld [vmem:[#allocation6 + $0x148] sm:$0xff]
    %v3056 = vld [vmem:[#allocation6 + $0x150] sm:$0xff]
    %v3057 = vld [vmem:[#allocation6 + $0x158] sm:$0xff]
    %v3058 = vld [vmem:[#allocation6 + $0x160] sm:$0xff]
    %v3059 = vld [vmem:[#allocation6 + $0x168] sm:$0xff]
    %v3060 = vld [vmem:[#allocation6 + $0x170] sm:$0xff]
    %v3061 = vld [vmem:[#allocation6 + $0x178] sm:$0xff]
    %v3062 = vld [vmem:[#allocation6 + $0x180] sm:$0xff]
    %v3063 = vld [vmem:[#allocation6 + $0x188] sm:$0xff]
    %v3064 = vld [vmem:[#allocation6 + $0x190] sm:$0xff]
    %v3065 = vld [vmem:[#allocation6 + $0x198] sm:$0xff]
    %v3066 = vld [vmem:[#allocation6 + $0x1a0] sm:$0xff]
    %v3067 = vld [vmem:[#allocation6 + $0x1a8] sm:$0xff]
    %v3068 = vld [vmem:[#allocation6 + $0x1b0] sm:$0xff]
    %v3069 = vld [vmem:[#allocation6 + $0x1b8] sm:$0xff]
    %v3070 = vld [vmem:[#allocation6 + $0x1c0] sm:$0xff]
    %v3071 = vld [vmem:[#allocation6 + $0x1c8] sm:$0xff]
    %v3072 = vld [vmem:[#allocation6 + $0x1d0] sm:$0xff]
    %v3073 = vld [vmem:[#allocation6 + $0x1d8] sm:$0xff]
    %v3074 = vld [vmem:[#allocation6 + $0x1e0] sm:$0xff]
    %v3075 = vld [vmem:[#allocation6 + $0x1e8] sm:$0xff]
    %v3076 = vld [vmem:[#allocation6 + $0x1f0] sm:$0xff]
    %v3077 = vld [vmem:[#allocation6 + $0x1f8] sm:$0xff]
    %v3078 = vld [vmem:[%s6] sm:$0x3]
    %v3080 = vlaneseq
    %v3081 = vshrl.u32 %v3080, 7
    %v3082 = vsub.s32 0, %v3081
    %v3083 = vrot.slane %v3078, %v3082
    %v3084 = vlaneseq
    %v3085 = vshrl.u32 %v3084, 7
    %v3086 = vsub.s32 1, %v3085
    %v3087 = vrot.slane %v3078, %v3086
    %v3154 = vunpack.c.l.b16 %v3014
    %v3155 = vunpack.c.h.b16 %v3014
    %v3156 = vunpack.c.l.b16 %v3015
    %v3157 = vunpack.c.h.b16 %v3015
    %v3158 = vunpack.c.l.b16 %v3016
    %v3159 = vunpack.c.h.b16 %v3016
    %v3160 = vunpack.c.l.b16 %v3017
    %v3161 = vunpack.c.h.b16 %v3017
    %v3162 = vunpack.c.l.b16 %v3018
    %v3163 = vunpack.c.h.b16 %v3018
    %v3164 = vunpack.c.l.b16 %v3019
    %v3165 = vunpack.c.h.b16 %v3019
    %v3166 = vunpack.c.l.b16 %v3020
    %v3167 = vunpack.c.h.b16 %v3020
    %v3168 = vunpack.c.l.b16 %v3021
    %v3169 = vunpack.c.h.b16 %v3021
    %v3170 = vunpack.c.l.b16 %v3022
    %v3171 = vunpack.c.h.b16 %v3022
    %v3172 = vunpack.c.l.b16 %v3023
    %v3173 = vunpack.c.h.b16 %v3023
    %v3174 = vunpack.c.l.b16 %v3024
    %v3175 = vunpack.c.h.b16 %v3024
    %v3176 = vunpack.c.l.b16 %v3025
    %v3177 = vunpack.c.h.b16 %v3025
    %v3178 = vunpack.c.l.b16 %v3026
    %v3179 = vunpack.c.h.b16 %v3026
    %v3180 = vunpack.c.l.b16 %v3027
    %v3181 = vunpack.c.h.b16 %v3027
    %v3182 = vunpack.c.l.b16 %v3028
    %v3183 = vunpack.c.h.b16 %v3028
    %v3184 = vunpack.c.l.b16 %v3029
    %v3185 = vunpack.c.h.b16 %v3029
    %v3186 = vunpack.c.l.b16 %v3030
    %v3187 = vunpack.c.h.b16 %v3030
    %v3188 = vunpack.c.l.b16 %v3031
    %v3189 = vunpack.c.h.b16 %v3031
    %v3190 = vunpack.c.l.b16 %v3032
    %v3191 = vunpack.c.h.b16 %v3032
    %v3192 = vunpack.c.l.b16 %v3033
    %v3193 = vunpack.c.h.b16 %v3033
    %v3194 = vunpack.c.l.b16 %v3034
    %v3195 = vunpack.c.h.b16 %v3034
    %v3196 = vunpack.c.l.b16 %v3035
    %v3197 = vunpack.c.h.b16 %v3035
    %v3198 = vunpack.c.l.b16 %v3036
    %v3199 = vunpack.c.h.b16 %v3036
    %v3200 = vunpack.c.l.b16 %v3037
    %v3201 = vunpack.c.h.b16 %v3037
    %v3202 = vunpack.c.l.b16 %v3038
    %v3203 = vunpack.c.h.b16 %v3038
    %v3204 = vunpack.c.l.b16 %v3039
    %v3205 = vunpack.c.h.b16 %v3039
    %v3206 = vunpack.c.l.b16 %v3040
    %v3207 = vunpack.c.h.b16 %v3040
    %v3208 = vunpack.c.l.b16 %v3041
    %v3209 = vunpack.c.h.b16 %v3041
    %v3210 = vunpack.c.l.b16 %v3042
    %v3211 = vunpack.c.h.b16 %v3042
    %v3212 = vunpack.c.l.b16 %v3043
    %v3213 = vunpack.c.h.b16 %v3043
    %v3214 = vunpack.c.l.b16 %v3044
    %v3215 = vunpack.c.h.b16 %v3044
    %v3216 = vunpack.c.l.b16 %v3045
    %v3217 = vunpack.c.h.b16 %v3045
    %v3218 = vunpack.c.l.b16 %v3046
    %v3219 = vunpack.c.h.b16 %v3046
    %v3220 = vunpack.c.l.b16 %v3047
    %v3221 = vunpack.c.h.b16 %v3047
    %v3222 = vunpack.c.l.b16 %v3048
    %v3223 = vunpack.c.h.b16 %v3048
    %v3224 = vunpack.c.l.b16 %v3049
    %v3225 = vunpack.c.h.b16 %v3049
    %v3226 = vunpack.c.l.b16 %v3050
    %v3227 = vunpack.c.h.b16 %v3050
    %v3228 = vunpack.c.l.b16 %v3051
    %v3229 = vunpack.c.h.b16 %v3051
    %v3230 = vunpack.c.l.b16 %v3052
    %v3231 = vunpack.c.h.b16 %v3052
    %v3232 = vunpack.c.l.b16 %v3053
    %v3233 = vunpack.c.h.b16 %v3053
    %v3234 = vunpack.c.l.b16 %v3054
    %v3235 = vunpack.c.h.b16 %v3054
    %v3236 = vunpack.c.l.b16 %v3055
    %v3237 = vunpack.c.h.b16 %v3055
    %v3238 = vunpack.c.l.b16 %v3056
    %v3239 = vunpack.c.h.b16 %v3056
    %v3240 = vunpack.c.l.b16 %v3057
    %v3241 = vunpack.c.h.b16 %v3057
    %v3242 = vunpack.c.l.b16 %v3058
    %v3243 = vunpack.c.h.b16 %v3058
    %v3244 = vunpack.c.l.b16 %v3059
    %v3245 = vunpack.c.h.b16 %v3059
    %v3246 = vunpack.c.l.b16 %v3060
    %v3247 = vunpack.c.h.b16 %v3060
    %v3248 = vunpack.c.l.b16 %v3061
    %v3249 = vunpack.c.h.b16 %v3061
    %v3250 = vunpack.c.l.b16 %v3062
    %v3251 = vunpack.c.h.b16 %v3062
    %v3252 = vunpack.c.l.b16 %v3063
    %v3253 = vunpack.c.h.b16 %v3063
    %v3254 = vunpack.c.l.b16 %v3064
    %v3255 = vunpack.c.h.b16 %v3064
    %v3256 = vunpack.c.l.b16 %v3065
    %v3257 = vunpack.c.h.b16 %v3065
    %v3258 = vunpack.c.l.b16 %v3066
    %v3259 = vunpack.c.h.b16 %v3066
    %v3260 = vunpack.c.l.b16 %v3067
    %v3261 = vunpack.c.h.b16 %v3067
    %v3262 = vunpack.c.l.b16 %v3068
    %v3263 = vunpack.c.h.b16 %v3068
    %v3264 = vunpack.c.l.b16 %v3069
    %v3265 = vunpack.c.h.b16 %v3069
    %v3266 = vunpack.c.l.b16 %v3070
    %v3267 = vunpack.c.h.b16 %v3070
    %v3268 = vunpack.c.l.b16 %v3071
    %v3269 = vunpack.c.h.b16 %v3071
    %v3270 = vunpack.c.l.b16 %v3072
    %v3271 = vunpack.c.h.b16 %v3072
    %v3272 = vunpack.c.l.b16 %v3073
    %v3273 = vunpack.c.h.b16 %v3073
    %v3274 = vunpack.c.l.b16 %v3074
    %v3275 = vunpack.c.h.b16 %v3074
    %v3276 = vunpack.c.l.b16 %v3075
    %v3277 = vunpack.c.h.b16 %v3075
    %v3278 = vunpack.c.l.b16 %v3076
    %v3279 = vunpack.c.h.b16 %v3076
    %v3280 = vunpack.c.l.b16 %v3077
    %v3281 = vunpack.c.h.b16 %v3077
    %v3282 = vpack.c.b16 %v3156, %v3154
    %v3283 = vpack.c.b16 %v3157, %v3155
    %v3284 = vpack.c.b16 %v3160, %v3158
    %v3285 = vpack.c.b16 %v3161, %v3159
    %v3286 = vpack.c.b16 %v3164, %v3162
    %v3287 = vpack.c.b16 %v3165, %v3163
    %v3288 = vpack.c.b16 %v3168, %v3166
    %v3289 = vpack.c.b16 %v3169, %v3167
    %v3290 = vpack.c.b16 %v3172, %v3170
    %v3291 = vpack.c.b16 %v3173, %v3171
    %v3292 = vpack.c.b16 %v3176, %v3174
    %v3293 = vpack.c.b16 %v3177, %v3175
    %v3294 = vpack.c.b16 %v3180, %v3178
    %v3295 = vpack.c.b16 %v3181, %v3179
    %v3296 = vpack.c.b16 %v3184, %v3182
    %v3297 = vpack.c.b16 %v3185, %v3183
    %v3298 = vpack.c.b16 %v3188, %v3186
    %v3299 = vpack.c.b16 %v3189, %v3187
    %v3300 = vpack.c.b16 %v3192, %v3190
    %v3301 = vpack.c.b16 %v3193, %v3191
    %v3302 = vpack.c.b16 %v3196, %v3194
    %v3303 = vpack.c.b16 %v3197, %v3195
    %v3304 = vpack.c.b16 %v3200, %v3198
    %v3305 = vpack.c.b16 %v3201, %v3199
    %v3306 = vpack.c.b16 %v3204, %v3202
    %v3307 = vpack.c.b16 %v3205, %v3203
    %v3308 = vpack.c.b16 %v3208, %v3206
    %v3309 = vpack.c.b16 %v3209, %v3207
    %v3310 = vpack.c.b16 %v3212, %v3210
    %v3311 = vpack.c.b16 %v3213, %v3211
    %v3312 = vpack.c.b16 %v3216, %v3214
    %v3313 = vpack.c.b16 %v3217, %v3215
    %v3314 = vpack.c.b16 %v3220, %v3218
    %v3315 = vpack.c.b16 %v3221, %v3219
    %v3316 = vpack.c.b16 %v3224, %v3222
    %v3317 = vpack.c.b16 %v3225, %v3223
    %v3318 = vpack.c.b16 %v3228, %v3226
    %v3319 = vpack.c.b16 %v3229, %v3227
    %v3320 = vpack.c.b16 %v3232, %v3230
    %v3321 = vpack.c.b16 %v3233, %v3231
    %v3322 = vpack.c.b16 %v3236, %v3234
    %v3323 = vpack.c.b16 %v3237, %v3235
    %v3324 = vpack.c.b16 %v3240, %v3238
    %v3325 = vpack.c.b16 %v3241, %v3239
    %v3326 = vpack.c.b16 %v3244, %v3242
    %v3327 = vpack.c.b16 %v3245, %v3243
    %v3328 = vpack.c.b16 %v3248, %v3246
    %v3329 = vpack.c.b16 %v3249, %v3247
    %v3330 = vpack.c.b16 %v3252, %v3250
    %v3331 = vpack.c.b16 %v3253, %v3251
    %v3332 = vpack.c.b16 %v3256, %v3254
    %v3333 = vpack.c.b16 %v3257, %v3255
    %v3334 = vpack.c.b16 %v3260, %v3258
    %v3335 = vpack.c.b16 %v3261, %v3259
    %v3336 = vpack.c.b16 %v3264, %v3262
    %v3337 = vpack.c.b16 %v3265, %v3263
    %v3338 = vpack.c.b16 %v3268, %v3266
    %v3339 = vpack.c.b16 %v3269, %v3267
    %v3340 = vpack.c.b16 %v3272, %v3270
    %v3341 = vpack.c.b16 %v3273, %v3271
    %v3342 = vpack.c.b16 %v3276, %v3274
    %v3343 = vpack.c.b16 %v3277, %v3275
    %v3344 = vpack.c.b16 %v3280, %v3278
    %v3345 = vpack.c.b16 %v3281, %v3279
    %3410 = vmatprep.subr.bf16.mxu0 %v3297
    %3411 = vmatpush1.bf16.msra.mxu0 %v3296
    %3412 = vmatprep.subr.bf16.mxu0 %v3295
    %3413 = vmatpush1.bf16.msra.mxu0 %v3294
    %3414 = vmatprep.subr.bf16.mxu0 %v3293
    %3415 = vmatpush1.bf16.msra.mxu0 %v3292
    %3416 = vmatprep.subr.bf16.mxu0 %v3291
    %3417 = vmatpush1.bf16.msra.mxu0 %v3290
    %3418 = vmatprep.subr.bf16.mxu0 %v3289
    %3419 = vmatpush1.bf16.msra.mxu0 %v3288
    %3420 = vmatprep.subr.bf16.mxu0 %v3287
    %3421 = vmatpush1.bf16.msra.mxu0 %v3286
    %3422 = vmatprep.subr.bf16.mxu0 %v3285
    %3423 = vmatpush1.bf16.msra.mxu0 %v3284
    %3424 = vmatprep.subr.bf16.mxu0 %v3283
    %3425 = vmatpush1.bf16.msra.mxu0 %v3282
    %3426 = vmatprep.subr.bf16.mxu0 %v3313
    %3427 = vmatpush2.bf16.msra.mxu0 %v3312
    %3428 = vmatprep.subr.bf16.mxu0 %v3311
    %3429 = vmatpush2.bf16.msra.mxu0 %v3310
    %3430 = vmatprep.subr.bf16.mxu0 %v3309
    %3431 = vmatpush2.bf16.msra.mxu0 %v3308
    %3432 = vmatprep.subr.bf16.mxu0 %v3307
    %3433 = vmatpush2.bf16.msra.mxu0 %v3306
    %3434 = vmatprep.subr.bf16.mxu0 %v3305
    %3435 = vmatpush2.bf16.msra.mxu0 %v3304
    %3436 = vmatprep.subr.bf16.mxu0 %v3303
    %3437 = vmatpush2.bf16.msra.mxu0 %v3302
    %3438 = vmatprep.subr.bf16.mxu0 %v3301
    %3439 = vmatpush2.bf16.msra.mxu0 %v3300
    %3440 = vmatprep.subr.bf16.mxu0 %v3299
    %3441 = vmatpush2.bf16.msra.mxu0 %v3298
    %3442 = vmatprep.mubr.bf16.mxu0 %v3011
    %3443 = vmatmul.mubr.bf16.gmra.mxu0 %v3010
    %v3444 = vpop.f32.mrf.mxu0
    %v3445 = vadd.f32 %v3083, %v3444
    %v3446 = vpop.f32.mrf.mxu0
    %v3447 = vadd.f32 %v3087, %v3446
    %v3448 = vpop.f32.mrf.mxu0
    %v3449 = vpop.f32.mrf.mxu0
    %3450 = vdwg.mxu0
    %3451 = vmatprep.subr.bf16.mxu0 %v3329
    %3452 = vmatpush1.bf16.msra.mxu0 %v3328
    %3453 = vmatprep.subr.bf16.mxu0 %v3327
    %3454 = vmatpush1.bf16.msra.mxu0 %v3326
    %3455 = vmatprep.subr.bf16.mxu0 %v3325
    %3456 = vmatpush1.bf16.msra.mxu0 %v3324
    %3457 = vmatprep.subr.bf16.mxu0 %v3323
    %3458 = vmatpush1.bf16.msra.mxu0 %v3322
    %3459 = vmatprep.subr.bf16.mxu0 %v3321
    %3460 = vmatpush1.bf16.msra.mxu0 %v3320
    %3461 = vmatprep.subr.bf16.mxu0 %v3319
    %3462 = vmatpush1.bf16.msra.mxu0 %v3318
    %3463 = vmatprep.subr.bf16.mxu0 %v3317
    %3464 = vmatpush1.bf16.msra.mxu0 %v3316
    %3465 = vmatprep.subr.bf16.mxu0 %v3315
    %3466 = vmatpush1.bf16.msra.mxu0 %v3314
    %3467 = vmatprep.subr.bf16.mxu0 %v3345
    %3468 = vmatpush2.bf16.msra.mxu0 %v3344
    %3469 = vmatprep.subr.bf16.mxu0 %v3343
    %3470 = vmatpush2.bf16.msra.mxu0 %v3342
    %3471 = vmatprep.subr.bf16.mxu0 %v3341
    %3472 = vmatpush2.bf16.msra.mxu0 %v3340
    %3473 = vmatprep.subr.bf16.mxu0 %v3339
    %3474 = vmatpush2.bf16.msra.mxu0 %v3338
    %3475 = vmatprep.subr.bf16.mxu0 %v3337
    %3476 = vmatpush2.bf16.msra.mxu0 %v3336
    %3477 = vmatprep.subr.bf16.mxu0 %v3335
    %3478 = vmatpush2.bf16.msra.mxu0 %v3334
    %3479 = vmatprep.subr.bf16.mxu0 %v3333
    %3480 = vmatpush2.bf16.msra.mxu0 %v3332
    %3481 = vmatprep.subr.bf16.mxu0 %v3331
    %3482 = vmatpush2.bf16.msra.mxu0 %v3330
    %3483 = vmatprep.mubr.bf16.mxu0 %v3013
    %3484 = vmatmul.mubr.bf16.gmra.mxu0 %v3012
    %v3485 = vpop.f32.mrf.mxu0
    %v3486 = vadd.f32 %v3445, %v3485
    %v3487 = vpop.f32.mrf.mxu0
    %v3488 = vadd.f32 %v3447, %v3487
    %v3489 = vpop.f32.mrf.mxu0
    %v3490 = vpop.f32.mrf.mxu0
    %3491 = vdwg.mxu0
    %v3492 = vmax.f32 %v3486, 0.0
    %v3493 = vmax.f32 %v3488, 0.0
    %v3494 = vpack.c.bf16 %v3492, %v3492
    %v3495 = vpack.c.bf16 %v3493, %v3493
    %v3496 = vld [vmem:[#allocation7] sm:$0xff]
    %v3497 = vld [vmem:[#allocation7 + $0x8] sm:$0xff]
    %v3498 = vld [vmem:[#allocation7 + $0x10] sm:$0xff]
    %v3499 = vld [vmem:[#allocation7 + $0x18] sm:$0xff]
    %v3500 = vld [vmem:[#allocation7 + $0x20] sm:$0xff]
    %v3501 = vld [vmem:[#allocation7 + $0x28] sm:$0xff]
    %v3502 = vld [vmem:[#allocation7 + $0x30] sm:$0xff]
    %v3503 = vld [vmem:[#allocation7 + $0x38] sm:$0xff]
    %v3504 = vld [vmem:[#allocation7 + $0x40] sm:$0xff]
    %v3505 = vld [vmem:[#allocation7 + $0x48] sm:$0xff]
    %v3506 = vld [vmem:[#allocation7 + $0x50] sm:$0xff]
    %v3507 = vld [vmem:[#allocation7 + $0x58] sm:$0xff]
    %v3508 = vld [vmem:[#allocation7 + $0x60] sm:$0xff]
    %v3509 = vld [vmem:[#allocation7 + $0x68] sm:$0xff]
    %v3510 = vld [vmem:[#allocation7 + $0x70] sm:$0xff]
    %v3511 = vld [vmem:[#allocation7 + $0x78] sm:$0xff]
    %v3512 = vld [vmem:[#allocation7 + $0x80] sm:$0xff]
    %v3513 = vld [vmem:[#allocation7 + $0x88] sm:$0xff]
    %v3514 = vld [vmem:[#allocation7 + $0x90] sm:$0xff]
    %v3515 = vld [vmem:[#allocation7 + $0x98] sm:$0xff]
    %v3516 = vld [vmem:[#allocation7 + $0xa0] sm:$0xff]
    %v3517 = vld [vmem:[#allocation7 + $0xa8] sm:$0xff]
    %v3518 = vld [vmem:[#allocation7 + $0xb0] sm:$0xff]
    %v3519 = vld [vmem:[#allocation7 + $0xb8] sm:$0xff]
    %v3520 = vld [vmem:[#allocation7 + $0xc0] sm:$0xff]
    %v3521 = vld [vmem:[#allocation7 + $0xc8] sm:$0xff]
    %v3522 = vld [vmem:[#allocation7 + $0xd0] sm:$0xff]
    %v3523 = vld [vmem:[#allocation7 + $0xd8] sm:$0xff]
    %v3524 = vld [vmem:[#allocation7 + $0xe0] sm:$0xff]
    %v3525 = vld [vmem:[#allocation7 + $0xe8] sm:$0xff]
    %v3526 = vld [vmem:[#allocation7 + $0xf0] sm:$0xff]
    %v3527 = vld [vmem:[#allocation7 + $0xf8] sm:$0xff]
    %v3528 = vld [vmem:[#allocation7 + $0x100] sm:$0xff]
    %v3529 = vld [vmem:[#allocation7 + $0x108] sm:$0xff]
    %v3530 = vld [vmem:[#allocation7 + $0x110] sm:$0xff]
    %v3531 = vld [vmem:[#allocation7 + $0x118] sm:$0xff]
    %v3532 = vld [vmem:[#allocation7 + $0x120] sm:$0xff]
    %v3533 = vld [vmem:[#allocation7 + $0x128] sm:$0xff]
    %v3534 = vld [vmem:[#allocation7 + $0x130] sm:$0xff]
    %v3535 = vld [vmem:[#allocation7 + $0x138] sm:$0xff]
    %v3536 = vld [vmem:[#allocation7 + $0x140] sm:$0xff]
    %v3537 = vld [vmem:[#allocation7 + $0x148] sm:$0xff]
    %v3538 = vld [vmem:[#allocation7 + $0x150] sm:$0xff]
    %v3539 = vld [vmem:[#allocation7 + $0x158] sm:$0xff]
    %v3540 = vld [vmem:[#allocation7 + $0x160] sm:$0xff]
    %v3541 = vld [vmem:[#allocation7 + $0x168] sm:$0xff]
    %v3542 = vld [vmem:[#allocation7 + $0x170] sm:$0xff]
    %v3543 = vld [vmem:[#allocation7 + $0x178] sm:$0xff]
    %v3544 = vld [vmem:[#allocation7 + $0x180] sm:$0xff]
    %v3545 = vld [vmem:[#allocation7 + $0x188] sm:$0xff]
    %v3546 = vld [vmem:[#allocation7 + $0x190] sm:$0xff]
    %v3547 = vld [vmem:[#allocation7 + $0x198] sm:$0xff]
    %v3548 = vld [vmem:[#allocation7 + $0x1a0] sm:$0xff]
    %v3549 = vld [vmem:[#allocation7 + $0x1a8] sm:$0xff]
    %v3550 = vld [vmem:[#allocation7 + $0x1b0] sm:$0xff]
    %v3551 = vld [vmem:[#allocation7 + $0x1b8] sm:$0xff]
    %v3552 = vld [vmem:[#allocation7 + $0x1c0] sm:$0xff]
    %v3553 = vld [vmem:[#allocation7 + $0x1c8] sm:$0xff]
    %v3554 = vld [vmem:[#allocation7 + $0x1d0] sm:$0xff]
    %v3555 = vld [vmem:[#allocation7 + $0x1d8] sm:$0xff]
    %v3556 = vld [vmem:[#allocation7 + $0x1e0] sm:$0xff]
    %v3557 = vld [vmem:[#allocation7 + $0x1e8] sm:$0xff]
    %v3558 = vld [vmem:[#allocation7 + $0x1f0] sm:$0xff]
    %v3559 = vld [vmem:[#allocation7 + $0x1f8] sm:$0xff]
    %v3560 = vld [vmem:[%s8] sm:$0xf]
    %v3562 = vlaneseq
    %v3563 = vshrl.u32 %v3562, 7
    %v3564 = vsub.s32 0, %v3563
    %v3565 = vrot.slane %v3560, %v3564
    %v3566 = vlaneseq
    %v3567 = vshrl.u32 %v3566, 7
    %v3568 = vsub.s32 1, %v3567
    %v3569 = vrot.slane %v3560, %v3568
    %v3570 = vlaneseq
    %v3571 = vshrl.u32 %v3570, 7
    %v3572 = vsub.s32 2, %v3571
    %v3573 = vrot.slane %v3560, %v3572
    %v3574 = vlaneseq
    %v3575 = vshrl.u32 %v3574, 7
    %v3576 = vsub.s32 3, %v3575
    %v3577 = vrot.slane %v3560, %v3576
    %v3646 = vunpack.c.l.b16 %v3496
    %v3647 = vunpack.c.h.b16 %v3496
    %v3648 = vunpack.c.l.b16 %v3497
    %v3649 = vunpack.c.h.b16 %v3497
    %v3650 = vunpack.c.l.b16 %v3498
    %v3651 = vunpack.c.h.b16 %v3498
    %v3652 = vunpack.c.l.b16 %v3499
    %v3653 = vunpack.c.h.b16 %v3499
    %v3654 = vunpack.c.l.b16 %v3500
    %v3655 = vunpack.c.h.b16 %v3500
    %v3656 = vunpack.c.l.b16 %v3501
    %v3657 = vunpack.c.h.b16 %v3501
    %v3658 = vunpack.c.l.b16 %v3502
    %v3659 = vunpack.c.h.b16 %v3502
    %v3660 = vunpack.c.l.b16 %v3503
    %v3661 = vunpack.c.h.b16 %v3503
    %v3662 = vunpack.c.l.b16 %v3504
    %v3663 = vunpack.c.h.b16 %v3504
    %v3664 = vunpack.c.l.b16 %v3505
    %v3665 = vunpack.c.h.b16 %v3505
    %v3666 = vunpack.c.l.b16 %v3506
    %v3667 = vunpack.c.h.b16 %v3506
    %v3668 = vunpack.c.l.b16 %v3507
    %v3669 = vunpack.c.h.b16 %v3507
    %v3670 = vunpack.c.l.b16 %v3508
    %v3671 = vunpack.c.h.b16 %v3508
    %v3672 = vunpack.c.l.b16 %v3509
    %v3673 = vunpack.c.h.b16 %v3509
    %v3674 = vunpack.c.l.b16 %v3510
    %v3675 = vunpack.c.h.b16 %v3510
    %v3676 = vunpack.c.l.b16 %v3511
    %v3677 = vunpack.c.h.b16 %v3511
    %v3678 = vunpack.c.l.b16 %v3512
    %v3679 = vunpack.c.h.b16 %v3512
    %v3680 = vunpack.c.l.b16 %v3513
    %v3681 = vunpack.c.h.b16 %v3513
    %v3682 = vunpack.c.l.b16 %v3514
    %v3683 = vunpack.c.h.b16 %v3514
    %v3684 = vunpack.c.l.b16 %v3515
    %v3685 = vunpack.c.h.b16 %v3515
    %v3686 = vunpack.c.l.b16 %v3516
    %v3687 = vunpack.c.h.b16 %v3516
    %v3688 = vunpack.c.l.b16 %v3517
    %v3689 = vunpack.c.h.b16 %v3517
    %v3690 = vunpack.c.l.b16 %v3518
    %v3691 = vunpack.c.h.b16 %v3518
    %v3692 = vunpack.c.l.b16 %v3519
    %v3693 = vunpack.c.h.b16 %v3519
    %v3694 = vunpack.c.l.b16 %v3520
    %v3695 = vunpack.c.h.b16 %v3520
    %v3696 = vunpack.c.l.b16 %v3521
    %v3697 = vunpack.c.h.b16 %v3521
    %v3698 = vunpack.c.l.b16 %v3522
    %v3699 = vunpack.c.h.b16 %v3522
    %v3700 = vunpack.c.l.b16 %v3523
    %v3701 = vunpack.c.h.b16 %v3523
    %v3702 = vunpack.c.l.b16 %v3524
    %v3703 = vunpack.c.h.b16 %v3524
    %v3704 = vunpack.c.l.b16 %v3525
    %v3705 = vunpack.c.h.b16 %v3525
    %v3706 = vunpack.c.l.b16 %v3526
    %v3707 = vunpack.c.h.b16 %v3526
    %v3708 = vunpack.c.l.b16 %v3527
    %v3709 = vunpack.c.h.b16 %v3527
    %v3710 = vunpack.c.l.b16 %v3528
    %v3711 = vunpack.c.h.b16 %v3528
    %v3712 = vunpack.c.l.b16 %v3529
    %v3713 = vunpack.c.h.b16 %v3529
    %v3714 = vunpack.c.l.b16 %v3530
    %v3715 = vunpack.c.h.b16 %v3530
    %v3716 = vunpack.c.l.b16 %v3531
    %v3717 = vunpack.c.h.b16 %v3531
    %v3718 = vunpack.c.l.b16 %v3532
    %v3719 = vunpack.c.h.b16 %v3532
    %v3720 = vunpack.c.l.b16 %v3533
    %v3721 = vunpack.c.h.b16 %v3533
    %v3722 = vunpack.c.l.b16 %v3534
    %v3723 = vunpack.c.h.b16 %v3534
    %v3724 = vunpack.c.l.b16 %v3535
    %v3725 = vunpack.c.h.b16 %v3535
    %v3726 = vunpack.c.l.b16 %v3536
    %v3727 = vunpack.c.h.b16 %v3536
    %v3728 = vunpack.c.l.b16 %v3537
    %v3729 = vunpack.c.h.b16 %v3537
    %v3730 = vunpack.c.l.b16 %v3538
    %v3731 = vunpack.c.h.b16 %v3538
    %v3732 = vunpack.c.l.b16 %v3539
    %v3733 = vunpack.c.h.b16 %v3539
    %v3734 = vunpack.c.l.b16 %v3540
    %v3735 = vunpack.c.h.b16 %v3540
    %v3736 = vunpack.c.l.b16 %v3541
    %v3737 = vunpack.c.h.b16 %v3541
    %v3738 = vunpack.c.l.b16 %v3542
    %v3739 = vunpack.c.h.b16 %v3542
    %v3740 = vunpack.c.l.b16 %v3543
    %v3741 = vunpack.c.h.b16 %v3543
    %v3742 = vunpack.c.l.b16 %v3544
    %v3743 = vunpack.c.h.b16 %v3544
    %v3744 = vunpack.c.l.b16 %v3545
    %v3745 = vunpack.c.h.b16 %v3545
    %v3746 = vunpack.c.l.b16 %v3546
    %v3747 = vunpack.c.h.b16 %v3546
    %v3748 = vunpack.c.l.b16 %v3547
    %v3749 = vunpack.c.h.b16 %v3547
    %v3750 = vunpack.c.l.b16 %v3548
    %v3751 = vunpack.c.h.b16 %v3548
    %v3752 = vunpack.c.l.b16 %v3549
    %v3753 = vunpack.c.h.b16 %v3549
    %v3754 = vunpack.c.l.b16 %v3550
    %v3755 = vunpack.c.h.b16 %v3550
    %v3756 = vunpack.c.l.b16 %v3551
    %v3757 = vunpack.c.h.b16 %v3551
    %v3758 = vunpack.c.l.b16 %v3552
    %v3759 = vunpack.c.h.b16 %v3552
    %v3760 = vunpack.c.l.b16 %v3553
    %v3761 = vunpack.c.h.b16 %v3553
    %v3762 = vunpack.c.l.b16 %v3554
    %v3763 = vunpack.c.h.b16 %v3554
    %v3764 = vunpack.c.l.b16 %v3555
    %v3765 = vunpack.c.h.b16 %v3555
    %v3766 = vunpack.c.l.b16 %v3556
    %v3767 = vunpack.c.h.b16 %v3556
    %v3768 = vunpack.c.l.b16 %v3557
    %v3769 = vunpack.c.h.b16 %v3557
    %v3770 = vunpack.c.l.b16 %v3558
    %v3771 = vunpack.c.h.b16 %v3558
    %v3772 = vunpack.c.l.b16 %v3559
    %v3773 = vunpack.c.h.b16 %v3559
    %v3774 = vpack.c.b16 %v3650, %v3646
    %v3775 = vpack.c.b16 %v3651, %v3647
    %v3776 = vpack.c.b16 %v3652, %v3648
    %v3777 = vpack.c.b16 %v3653, %v3649
    %v3778 = vpack.c.b16 %v3658, %v3654
    %v3779 = vpack.c.b16 %v3659, %v3655
    %v3780 = vpack.c.b16 %v3660, %v3656
    %v3781 = vpack.c.b16 %v3661, %v3657
    %v3782 = vpack.c.b16 %v3666, %v3662
    %v3783 = vpack.c.b16 %v3667, %v3663
    %v3784 = vpack.c.b16 %v3668, %v3664
    %v3785 = vpack.c.b16 %v3669, %v3665
    %v3786 = vpack.c.b16 %v3674, %v3670
    %v3787 = vpack.c.b16 %v3675, %v3671
    %v3788 = vpack.c.b16 %v3676, %v3672
    %v3789 = vpack.c.b16 %v3677, %v3673
    %v3790 = vpack.c.b16 %v3682, %v3678
    %v3791 = vpack.c.b16 %v3683, %v3679
    %v3792 = vpack.c.b16 %v3684, %v3680
    %v3793 = vpack.c.b16 %v3685, %v3681
    %v3794 = vpack.c.b16 %v3690, %v3686
    %v3795 = vpack.c.b16 %v3691, %v3687
    %v3796 = vpack.c.b16 %v3692, %v3688
    %v3797 = vpack.c.b16 %v3693, %v3689
    %v3798 = vpack.c.b16 %v3698, %v3694
    %v3799 = vpack.c.b16 %v3699, %v3695
    %v3800 = vpack.c.b16 %v3700, %v3696
    %v3801 = vpack.c.b16 %v3701, %v3697
    %v3802 = vpack.c.b16 %v3706, %v3702
    %v3803 = vpack.c.b16 %v3707, %v3703
    %v3804 = vpack.c.b16 %v3708, %v3704
    %v3805 = vpack.c.b16 %v3709, %v3705
    %v3806 = vpack.c.b16 %v3714, %v3710
    %v3807 = vpack.c.b16 %v3715, %v3711
    %v3808 = vpack.c.b16 %v3716, %v3712
    %v3809 = vpack.c.b16 %v3717, %v3713
    %v3810 = vpack.c.b16 %v3722, %v3718
    %v3811 = vpack.c.b16 %v3723, %v3719
    %v3812 = vpack.c.b16 %v3724, %v3720
    %v3813 = vpack.c.b16 %v3725, %v3721
    %v3814 = vpack.c.b16 %v3730, %v3726
    %v3815 = vpack.c.b16 %v3731, %v3727
    %v3816 = vpack.c.b16 %v3732, %v3728
    %v3817 = vpack.c.b16 %v3733, %v3729
    %v3818 = vpack.c.b16 %v3738, %v3734
    %v3819 = vpack.c.b16 %v3739, %v3735
    %v3820 = vpack.c.b16 %v3740, %v3736
    %v3821 = vpack.c.b16 %v3741, %v3737
    %v3822 = vpack.c.b16 %v3746, %v3742
    %v3823 = vpack.c.b16 %v3747, %v3743
    %v3824 = vpack.c.b16 %v3748, %v3744
    %v3825 = vpack.c.b16 %v3749, %v3745
    %v3826 = vpack.c.b16 %v3754, %v3750
    %v3827 = vpack.c.b16 %v3755, %v3751
    %v3828 = vpack.c.b16 %v3756, %v3752
    %v3829 = vpack.c.b16 %v3757, %v3753
    %v3830 = vpack.c.b16 %v3762, %v3758
    %v3831 = vpack.c.b16 %v3763, %v3759
    %v3832 = vpack.c.b16 %v3764, %v3760
    %v3833 = vpack.c.b16 %v3765, %v3761
    %v3834 = vpack.c.b16 %v3770, %v3766
    %v3835 = vpack.c.b16 %v3771, %v3767
    %v3836 = vpack.c.b16 %v3772, %v3768
    %v3837 = vpack.c.b16 %v3773, %v3769
    %3902 = vmatprep.subr.bf16.mxu0 %v3803
    %3903 = vmatpush1.bf16.msra.mxu0 %v3802
    %3904 = vmatprep.subr.bf16.mxu0 %v3799
    %3905 = vmatpush1.bf16.msra.mxu0 %v3798
    %3906 = vmatprep.subr.bf16.mxu0 %v3795
    %3907 = vmatpush1.bf16.msra.mxu0 %v3794
    %3908 = vmatprep.subr.bf16.mxu0 %v3791
    %3909 = vmatpush1.bf16.msra.mxu0 %v3790
    %3910 = vmatprep.subr.bf16.mxu0 %v3787
    %3911 = vmatpush1.bf16.msra.mxu0 %v3786
    %3912 = vmatprep.subr.bf16.mxu0 %v3783
    %3913 = vmatpush1.bf16.msra.mxu0 %v3782
    %3914 = vmatprep.subr.bf16.mxu0 %v3779
    %3915 = vmatpush1.bf16.msra.mxu0 %v3778
    %3916 = vmatprep.subr.bf16.mxu0 %v3775
    %3917 = vmatpush1.bf16.msra.mxu0 %v3774
    %3918 = vmatprep.subr.bf16.mxu0 %v3835
    %3919 = vmatpush2.bf16.msra.mxu0 %v3834
    %3920 = vmatprep.subr.bf16.mxu0 %v3831
    %3921 = vmatpush2.bf16.msra.mxu0 %v3830
    %3922 = vmatprep.subr.bf16.mxu0 %v3827
    %3923 = vmatpush2.bf16.msra.mxu0 %v3826
    %3924 = vmatprep.subr.bf16.mxu0 %v3823
    %3925 = vmatpush2.bf16.msra.mxu0 %v3822
    %3926 = vmatprep.subr.bf16.mxu0 %v3819
    %3927 = vmatpush2.bf16.msra.mxu0 %v3818
    %3928 = vmatprep.subr.bf16.mxu0 %v3815
    %3929 = vmatpush2.bf16.msra.mxu0 %v3814
    %3930 = vmatprep.subr.bf16.mxu0 %v3811
    %3931 = vmatpush2.bf16.msra.mxu0 %v3810
    %3932 = vmatprep.subr.bf16.mxu0 %v3807
    %3933 = vmatpush2.bf16.msra.mxu0 %v3806
    %3934 = vmatprep.mubr.bf16.mxu0 %v3495
    %3935 = vmatmul.mubr.bf16.gmra.mxu0 %v3494
    %v3936 = vpop.f32.mrf.mxu0
    %v3937 = vadd.f32 %v3565, %v3936
    %v3938 = vpop.f32.mrf.mxu0
    %v3939 = vadd.f32 %v3569, %v3938
    %v3940 = vpop.f32.mrf.mxu0
    %v3941 = vpop.f32.mrf.mxu0
    %3942 = vdwg.mxu0
    %3943 = vmatprep.subr.bf16.mxu0 %v3805
    %3944 = vmatpush1.bf16.msra.mxu0 %v3804
    %3945 = vmatprep.subr.bf16.mxu0 %v3801
    %3946 = vmatpush1.bf16.msra.mxu0 %v3800
    %3947 = vmatprep.subr.bf16.mxu0 %v3797
    %3948 = vmatpush1.bf16.msra.mxu0 %v3796
    %3949 = vmatprep.subr.bf16.mxu0 %v3793
    %3950 = vmatpush1.bf16.msra.mxu0 %v3792
    %3951 = vmatprep.subr.bf16.mxu0 %v3789
    %3952 = vmatpush1.bf16.msra.mxu0 %v3788
    %3953 = vmatprep.subr.bf16.mxu0 %v3785
    %3954 = vmatpush1.bf16.msra.mxu0 %v3784
    %3955 = vmatprep.subr.bf16.mxu0 %v3781
    %3956 = vmatpush1.bf16.msra.mxu0 %v3780
    %3957 = vmatprep.subr.bf16.mxu0 %v3777
    %3958 = vmatpush1.bf16.msra.mxu0 %v3776
    %3959 = vmatprep.subr.bf16.mxu0 %v3837
    %3960 = vmatpush2.bf16.msra.mxu0 %v3836
    %3961 = vmatprep.subr.bf16.mxu0 %v3833
    %3962 = vmatpush2.bf16.msra.mxu0 %v3832
    %3963 = vmatprep.subr.bf16.mxu0 %v3829
    %3964 = vmatpush2.bf16.msra.mxu0 %v3828
    %3965 = vmatprep.subr.bf16.mxu0 %v3825
    %3966 = vmatpush2.bf16.msra.mxu0 %v3824
    %3967 = vmatprep.subr.bf16.mxu0 %v3821
    %3968 = vmatpush2.bf16.msra.mxu0 %v3820
    %3969 = vmatprep.subr.bf16.mxu0 %v3817
    %3970 = vmatpush2.bf16.msra.mxu0 %v3816
    %3971 = vmatprep.subr.bf16.mxu0 %v3813
    %3972 = vmatpush2.bf16.msra.mxu0 %v3812
    %3973 = vmatprep.subr.bf16.mxu0 %v3809
    %3974 = vmatpush2.bf16.msra.mxu0 %v3808
    %3975 = vmatprep.mubr.bf16.mxu0 %v3495
    %3976 = vmatmul.mubr.bf16.gmra.mxu0 %v3494
    %v3977 = vpop.f32.mrf.mxu0
    %v3978 = vadd.f32 %v3573, %v3977
    %v3979 = vpop.f32.mrf.mxu0
    %v3980 = vadd.f32 %v3577, %v3979
    %v3981 = vpop.f32.mrf.mxu0
    %v3982 = vpop.f32.mrf.mxu0
    %3983 = vdwg.mxu0
    %v3984 = vmax.f32 %v3937, 0.0
    %v3985 = vmax.f32 %v3939, 0.0
    %v3986 = vmax.f32 %v3978, 0.0
    %v3987 = vmax.f32 %v3980, 0.0
    %v3988 = vpack.c.bf16 %v3984, %v3984
    %v3989 = vpack.c.bf16 %v3985, %v3985
    %v3990 = vpack.c.bf16 %v3986, %v3986
    %v3991 = vpack.c.bf16 %v3987, %v3987
    %v3992 = vld [vmem:[#allocation9] sm:$0xff]
    %v3993 = vld [vmem:[#allocation9 + $0x8] sm:$0xff]
    %v3994 = vld [vmem:[#allocation9 + $0x10] sm:$0xff]
    %v3995 = vld [vmem:[#allocation9 + $0x18] sm:$0xff]
    %v3996 = vld [vmem:[#allocation9 + $0x20] sm:$0xff]
    %v3997 = vld [vmem:[#allocation9 + $0x28] sm:$0xff]
    %v3998 = vld [vmem:[#allocation9 + $0x30] sm:$0xff]
    %v3999 = vld [vmem:[#allocation9 + $0x38] sm:$0xff]
    %v4000 = vld [vmem:[#allocation9 + $0x40] sm:$0xff]
    %v4001 = vld [vmem:[#allocation9 + $0x48] sm:$0xff]
    %v4002 = vld [vmem:[#allocation9 + $0x50] sm:$0xff]
    %v4003 = vld [vmem:[#allocation9 + $0x58] sm:$0xff]
    %v4004 = vld [vmem:[#allocation9 + $0x60] sm:$0xff]
    %v4005 = vld [vmem:[#allocation9 + $0x68] sm:$0xff]
    %v4006 = vld [vmem:[#allocation9 + $0x70] sm:$0xff]
    %v4007 = vld [vmem:[#allocation9 + $0x78] sm:$0xff]
    %v4008 = vld [vmem:[#allocation9 + $0x80] sm:$0xff]
    %v4009 = vld [vmem:[#allocation9 + $0x88] sm:$0xff]
    %v4010 = vld [vmem:[#allocation9 + $0x90] sm:$0xff]
    %v4011 = vld [vmem:[#allocation9 + $0x98] sm:$0xff]
    %v4012 = vld [vmem:[#allocation9 + $0xa0] sm:$0xff]
    %v4013 = vld [vmem:[#allocation9 + $0xa8] sm:$0xff]
    %v4014 = vld [vmem:[#allocation9 + $0xb0] sm:$0xff]
    %v4015 = vld [vmem:[#allocation9 + $0xb8] sm:$0xff]
    %v4016 = vld [vmem:[#allocation9 + $0xc0] sm:$0xff]
    %v4017 = vld [vmem:[#allocation9 + $0xc8] sm:$0xff]
    %v4018 = vld [vmem:[#allocation9 + $0xd0] sm:$0xff]
    %v4019 = vld [vmem:[#allocation9 + $0xd8] sm:$0xff]
    %v4020 = vld [vmem:[#allocation9 + $0xe0] sm:$0xff]
    %v4021 = vld [vmem:[#allocation9 + $0xe8] sm:$0xff]
    %v4022 = vld [vmem:[#allocation9 + $0xf0] sm:$0xff]
    %v4023 = vld [vmem:[#allocation9 + $0xf8] sm:$0xff]
    %v4024 = vld [vmem:[#allocation9 + $0x100] sm:$0xff]
    %v4025 = vld [vmem:[#allocation9 + $0x108] sm:$0xff]
    %v4026 = vld [vmem:[#allocation9 + $0x110] sm:$0xff]
    %v4027 = vld [vmem:[#allocation9 + $0x118] sm:$0xff]
    %v4028 = vld [vmem:[#allocation9 + $0x120] sm:$0xff]
    %v4029 = vld [vmem:[#allocation9 + $0x128] sm:$0xff]
    %v4030 = vld [vmem:[#allocation9 + $0x130] sm:$0xff]
    %v4031 = vld [vmem:[#allocation9 + $0x138] sm:$0xff]
    %v4032 = vld [vmem:[#allocation9 + $0x140] sm:$0xff]
    %v4033 = vld [vmem:[#allocation9 + $0x148] sm:$0xff]
    %v4034 = vld [vmem:[#allocation9 + $0x150] sm:$0xff]
    %v4035 = vld [vmem:[#allocation9 + $0x158] sm:$0xff]
    %v4036 = vld [vmem:[#allocation9 + $0x160] sm:$0xff]
    %v4037 = vld [vmem:[#allocation9 + $0x168] sm:$0xff]
    %v4038 = vld [vmem:[#allocation9 + $0x170] sm:$0xff]
    %v4039 = vld [vmem:[#allocation9 + $0x178] sm:$0xff]
    %v4040 = vld [vmem:[#allocation9 + $0x180] sm:$0xff]
    %v4041 = vld [vmem:[#allocation9 + $0x188] sm:$0xff]
    %v4042 = vld [vmem:[#allocation9 + $0x190] sm:$0xff]
    %v4043 = vld [vmem:[#allocation9 + $0x198] sm:$0xff]
    %v4044 = vld [vmem:[#allocation9 + $0x1a0] sm:$0xff]
    %v4045 = vld [vmem:[#allocation9 + $0x1a8] sm:$0xff]
    %v4046 = vld [vmem:[#allocation9 + $0x1b0] sm:$0xff]
    %v4047 = vld [vmem:[#allocation9 + $0x1b8] sm:$0xff]
    %v4048 = vld [vmem:[#allocation9 + $0x1c0] sm:$0xff]
    %v4049 = vld [vmem:[#allocation9 + $0x1c8] sm:$0xff]
    %v4050 = vld [vmem:[#allocation9 + $0x1d0] sm:$0xff]
    %v4051 = vld [vmem:[#allocation9 + $0x1d8] sm:$0xff]
    %v4052 = vld [vmem:[#allocation9 + $0x1e0] sm:$0xff]
    %v4053 = vld [vmem:[#allocation9 + $0x1e8] sm:$0xff]
    %v4054 = vld [vmem:[#allocation9 + $0x1f0] sm:$0xff]
    %v4055 = vld [vmem:[#allocation9 + $0x1f8] sm:$0xff]
    %v4056 = vld [vmem:[#allocation9 + $0x200] sm:$0xff]
    %v4057 = vld [vmem:[#allocation9 + $0x208] sm:$0xff]
    %v4058 = vld [vmem:[#allocation9 + $0x210] sm:$0xff]
    %v4059 = vld [vmem:[#allocation9 + $0x218] sm:$0xff]
    %v4060 = vld [vmem:[#allocation9 + $0x220] sm:$0xff]
    %v4061 = vld [vmem:[#allocation9 + $0x228] sm:$0xff]
    %v4062 = vld [vmem:[#allocation9 + $0x230] sm:$0xff]
    %v4063 = vld [vmem:[#allocation9 + $0x238] sm:$0xff]
    %v4064 = vld [vmem:[#allocation9 + $0x240] sm:$0xff]
    %v4065 = vld [vmem:[#allocation9 + $0x248] sm:$0xff]
    %v4066 = vld [vmem:[#allocation9 + $0x250] sm:$0xff]
    %v4067 = vld [vmem:[#allocation9 + $0x258] sm:$0xff]
    %v4068 = vld [vmem:[#allocation9 + $0x260] sm:$0xff]
    %v4069 = vld [vmem:[#allocation9 + $0x268] sm:$0xff]
    %v4070 = vld [vmem:[#allocation9 + $0x270] sm:$0xff]
    %v4071 = vld [vmem:[#allocation9 + $0x278] sm:$0xff]
    %v4072 = vld [vmem:[#allocation9 + $0x280] sm:$0xff]
    %v4073 = vld [vmem:[#allocation9 + $0x288] sm:$0xff]
    %v4074 = vld [vmem:[#allocation9 + $0x290] sm:$0xff]
    %v4075 = vld [vmem:[#allocation9 + $0x298] sm:$0xff]
    %v4076 = vld [vmem:[#allocation9 + $0x2a0] sm:$0xff]
    %v4077 = vld [vmem:[#allocation9 + $0x2a8] sm:$0xff]
    %v4078 = vld [vmem:[#allocation9 + $0x2b0] sm:$0xff]
    %v4079 = vld [vmem:[#allocation9 + $0x2b8] sm:$0xff]
    %v4080 = vld [vmem:[#allocation9 + $0x2c0] sm:$0xff]
    %v4081 = vld [vmem:[#allocation9 + $0x2c8] sm:$0xff]
    %v4082 = vld [vmem:[#allocation9 + $0x2d0] sm:$0xff]
    %v4083 = vld [vmem:[#allocation9 + $0x2d8] sm:$0xff]
    %v4084 = vld [vmem:[#allocation9 + $0x2e0] sm:$0xff]
    %v4085 = vld [vmem:[#allocation9 + $0x2e8] sm:$0xff]
    %v4086 = vld [vmem:[#allocation9 + $0x2f0] sm:$0xff]
    %v4087 = vld [vmem:[#allocation9 + $0x2f8] sm:$0xff]
    %v4088 = vld [vmem:[#allocation9 + $0x300] sm:$0xff]
    %v4089 = vld [vmem:[#allocation9 + $0x308] sm:$0xff]
    %v4090 = vld [vmem:[#allocation9 + $0x310] sm:$0xff]
    %v4091 = vld [vmem:[#allocation9 + $0x318] sm:$0xff]
    %v4092 = vld [vmem:[#allocation9 + $0x320] sm:$0xff]
    %v4093 = vld [vmem:[#allocation9 + $0x328] sm:$0xff]
    %v4094 = vld [vmem:[#allocation9 + $0x330] sm:$0xff]
    %v4095 = vld [vmem:[#allocation9 + $0x338] sm:$0xff]
    %v4096 = vld [vmem:[#allocation9 + $0x340] sm:$0xff]
    %v4097 = vld [vmem:[#allocation9 + $0x348] sm:$0xff]
    %v4098 = vld [vmem:[#allocation9 + $0x350] sm:$0xff]
    %v4099 = vld [vmem:[#allocation9 + $0x358] sm:$0xff]
    %v4100 = vld [vmem:[#allocation9 + $0x360] sm:$0xff]
    %v4101 = vld [vmem:[#allocation9 + $0x368] sm:$0xff]
    %v4102 = vld [vmem:[#allocation9 + $0x370] sm:$0xff]
    %v4103 = vld [vmem:[#allocation9 + $0x378] sm:$0xff]
    %v4104 = vld [vmem:[#allocation9 + $0x380] sm:$0xff]
    %v4105 = vld [vmem:[#allocation9 + $0x388] sm:$0xff]
    %v4106 = vld [vmem:[#allocation9 + $0x390] sm:$0xff]
    %v4107 = vld [vmem:[#allocation9 + $0x398] sm:$0xff]
    %v4108 = vld [vmem:[#allocation9 + $0x3a0] sm:$0xff]
    %v4109 = vld [vmem:[#allocation9 + $0x3a8] sm:$0xff]
    %v4110 = vld [vmem:[#allocation9 + $0x3b0] sm:$0xff]
    %v4111 = vld [vmem:[#allocation9 + $0x3b8] sm:$0xff]
    %v4112 = vld [vmem:[#allocation9 + $0x3c0] sm:$0xff]
    %v4113 = vld [vmem:[#allocation9 + $0x3c8] sm:$0xff]
    %v4114 = vld [vmem:[#allocation9 + $0x3d0] sm:$0xff]
    %v4115 = vld [vmem:[#allocation9 + $0x3d8] sm:$0xff]
    %v4116 = vld [vmem:[#allocation9 + $0x3e0] sm:$0xff]
    %v4117 = vld [vmem:[#allocation9 + $0x3e8] sm:$0xff]
    %v4118 = vld [vmem:[#allocation9 + $0x3f0] sm:$0xff]
    %v4119 = vld [vmem:[#allocation9 + $0x3f8] sm:$0xff]
    %v4120 = vld [vmem:[#allocation9 + $0x400] sm:$0xff]
    %v4121 = vld [vmem:[#allocation9 + $0x408] sm:$0xff]
    %v4122 = vld [vmem:[#allocation9 + $0x410] sm:$0xff]
    %v4123 = vld [vmem:[#allocation9 + $0x418] sm:$0xff]
    %v4124 = vld [vmem:[#allocation9 + $0x420] sm:$0xff]
    %v4125 = vld [vmem:[#allocation9 + $0x428] sm:$0xff]
    %v4126 = vld [vmem:[#allocation9 + $0x430] sm:$0xff]
    %v4127 = vld [vmem:[#allocation9 + $0x438] sm:$0xff]
    %v4128 = vld [vmem:[#allocation9 + $0x440] sm:$0xff]
    %v4129 = vld [vmem:[#allocation9 + $0x448] sm:$0xff]
    %v4130 = vld [vmem:[#allocation9 + $0x450] sm:$0xff]
    %v4131 = vld [vmem:[#allocation9 + $0x458] sm:$0xff]
    %v4132 = vld [vmem:[#allocation9 + $0x460] sm:$0xff]
    %v4133 = vld [vmem:[#allocation9 + $0x468] sm:$0xff]
    %v4134 = vld [vmem:[#allocation9 + $0x470] sm:$0xff]
    %v4135 = vld [vmem:[#allocation9 + $0x478] sm:$0xff]
    %v4136 = vld [vmem:[#allocation9 + $0x480] sm:$0xff]
    %v4137 = vld [vmem:[#allocation9 + $0x488] sm:$0xff]
    %v4138 = vld [vmem:[#allocation9 + $0x490] sm:$0xff]
    %v4139 = vld [vmem:[#allocation9 + $0x498] sm:$0xff]
    %v4140 = vld [vmem:[#allocation9 + $0x4a0] sm:$0xff]
    %v4141 = vld [vmem:[#allocation9 + $0x4a8] sm:$0xff]
    %v4142 = vld [vmem:[#allocation9 + $0x4b0] sm:$0xff]
    %v4143 = vld [vmem:[#allocation9 + $0x4b8] sm:$0xff]
    %v4144 = vld [vmem:[#allocation9 + $0x4c0] sm:$0xff]
    %v4145 = vld [vmem:[#allocation9 + $0x4c8] sm:$0xff]
    %v4146 = vld [vmem:[#allocation9 + $0x4d0] sm:$0xff]
    %v4147 = vld [vmem:[#allocation9 + $0x4d8] sm:$0xff]
    %v4148 = vld [vmem:[#allocation9 + $0x4e0] sm:$0xff]
    %v4149 = vld [vmem:[#allocation9 + $0x4e8] sm:$0xff]
    %v4150 = vld [vmem:[#allocation9 + $0x4f0] sm:$0xff]
    %v4151 = vld [vmem:[#allocation9 + $0x4f8] sm:$0xff]
    %v4152 = vld [vmem:[#allocation9 + $0x500] sm:$0xff]
    %v4153 = vld [vmem:[#allocation9 + $0x508] sm:$0xff]
    %v4154 = vld [vmem:[#allocation9 + $0x510] sm:$0xff]
    %v4155 = vld [vmem:[#allocation9 + $0x518] sm:$0xff]
    %v4156 = vld [vmem:[#allocation9 + $0x520] sm:$0xff]
    %v4157 = vld [vmem:[#allocation9 + $0x528] sm:$0xff]
    %v4158 = vld [vmem:[#allocation9 + $0x530] sm:$0xff]
    %v4159 = vld [vmem:[#allocation9 + $0x538] sm:$0xff]
    %v4160 = vld [vmem:[#allocation9 + $0x540] sm:$0xff]
    %v4161 = vld [vmem:[#allocation9 + $0x548] sm:$0xff]
    %v4162 = vld [vmem:[#allocation9 + $0x550] sm:$0xff]
    %v4163 = vld [vmem:[#allocation9 + $0x558] sm:$0xff]
    %v4164 = vld [vmem:[#allocation9 + $0x560] sm:$0xff]
    %v4165 = vld [vmem:[#allocation9 + $0x568] sm:$0xff]
    %v4166 = vld [vmem:[#allocation9 + $0x570] sm:$0xff]
    %v4167 = vld [vmem:[#allocation9 + $0x578] sm:$0xff]
    %v4168 = vld [vmem:[#allocation9 + $0x580] sm:$0xff]
    %v4169 = vld [vmem:[#allocation9 + $0x588] sm:$0xff]
    %v4170 = vld [vmem:[#allocation9 + $0x590] sm:$0xff]
    %v4171 = vld [vmem:[#allocation9 + $0x598] sm:$0xff]
    %v4172 = vld [vmem:[#allocation9 + $0x5a0] sm:$0xff]
    %v4173 = vld [vmem:[#allocation9 + $0x5a8] sm:$0xff]
    %v4174 = vld [vmem:[#allocation9 + $0x5b0] sm:$0xff]
    %v4175 = vld [vmem:[#allocation9 + $0x5b8] sm:$0xff]
    %v4176 = vld [vmem:[#allocation9 + $0x5c0] sm:$0xff]
    %v4177 = vld [vmem:[#allocation9 + $0x5c8] sm:$0xff]
    %v4178 = vld [vmem:[#allocation9 + $0x5d0] sm:$0xff]
    %v4179 = vld [vmem:[#allocation9 + $0x5d8] sm:$0xff]
    %v4180 = vld [vmem:[#allocation9 + $0x5e0] sm:$0xff]
    %v4181 = vld [vmem:[#allocation9 + $0x5e8] sm:$0xff]
    %v4182 = vld [vmem:[#allocation9 + $0x5f0] sm:$0xff]
    %v4183 = vld [vmem:[#allocation9 + $0x5f8] sm:$0xff]
    %v4184 = vld [vmem:[#allocation9 + $0x600] sm:$0xff]
    %v4185 = vld [vmem:[#allocation9 + $0x608] sm:$0xff]
    %v4186 = vld [vmem:[#allocation9 + $0x610] sm:$0xff]
    %v4187 = vld [vmem:[#allocation9 + $0x618] sm:$0xff]
    %v4188 = vld [vmem:[#allocation9 + $0x620] sm:$0xff]
    %v4189 = vld [vmem:[#allocation9 + $0x628] sm:$0xff]
    %v4190 = vld [vmem:[#allocation9 + $0x630] sm:$0xff]
    %v4191 = vld [vmem:[#allocation9 + $0x638] sm:$0xff]
    %v4192 = vld [vmem:[#allocation9 + $0x640] sm:$0xff]
    %v4193 = vld [vmem:[#allocation9 + $0x648] sm:$0xff]
    %v4194 = vld [vmem:[#allocation9 + $0x650] sm:$0xff]
    %v4195 = vld [vmem:[#allocation9 + $0x658] sm:$0xff]
    %v4196 = vld [vmem:[#allocation9 + $0x660] sm:$0xff]
    %v4197 = vld [vmem:[#allocation9 + $0x668] sm:$0xff]
    %v4198 = vld [vmem:[#allocation9 + $0x670] sm:$0xff]
    %v4199 = vld [vmem:[#allocation9 + $0x678] sm:$0xff]
    %v4200 = vld [vmem:[#allocation9 + $0x680] sm:$0xff]
    %v4201 = vld [vmem:[#allocation9 + $0x688] sm:$0xff]
    %v4202 = vld [vmem:[#allocation9 + $0x690] sm:$0xff]
    %v4203 = vld [vmem:[#allocation9 + $0x698] sm:$0xff]
    %v4204 = vld [vmem:[#allocation9 + $0x6a0] sm:$0xff]
    %v4205 = vld [vmem:[#allocation9 + $0x6a8] sm:$0xff]
    %v4206 = vld [vmem:[#allocation9 + $0x6b0] sm:$0xff]
    %v4207 = vld [vmem:[#allocation9 + $0x6b8] sm:$0xff]
    %v4208 = vld [vmem:[#allocation9 + $0x6c0] sm:$0xff]
    %v4209 = vld [vmem:[#allocation9 + $0x6c8] sm:$0xff]
    %v4210 = vld [vmem:[#allocation9 + $0x6d0] sm:$0xff]
    %v4211 = vld [vmem:[#allocation9 + $0x6d8] sm:$0xff]
    %v4212 = vld [vmem:[#allocation9 + $0x6e0] sm:$0xff]
    %v4213 = vld [vmem:[#allocation9 + $0x6e8] sm:$0xff]
    %v4214 = vld [vmem:[#allocation9 + $0x6f0] sm:$0xff]
    %v4215 = vld [vmem:[#allocation9 + $0x6f8] sm:$0xff]
    %v4216 = vld [vmem:[#allocation9 + $0x700] sm:$0xff]
    %v4217 = vld [vmem:[#allocation9 + $0x708] sm:$0xff]
    %v4218 = vld [vmem:[#allocation9 + $0x710] sm:$0xff]
    %v4219 = vld [vmem:[#allocation9 + $0x718] sm:$0xff]
    %v4220 = vld [vmem:[#allocation9 + $0x720] sm:$0xff]
    %v4221 = vld [vmem:[#allocation9 + $0x728] sm:$0xff]
    %v4222 = vld [vmem:[#allocation9 + $0x730] sm:$0xff]
    %v4223 = vld [vmem:[#allocation9 + $0x738] sm:$0xff]
    %v4224 = vld [vmem:[#allocation9 + $0x740] sm:$0xff]
    %v4225 = vld [vmem:[#allocation9 + $0x748] sm:$0xff]
    %v4226 = vld [vmem:[#allocation9 + $0x750] sm:$0xff]
    %v4227 = vld [vmem:[#allocation9 + $0x758] sm:$0xff]
    %v4228 = vld [vmem:[#allocation9 + $0x760] sm:$0xff]
    %v4229 = vld [vmem:[#allocation9 + $0x768] sm:$0xff]
    %v4230 = vld [vmem:[#allocation9 + $0x770] sm:$0xff]
    %v4231 = vld [vmem:[#allocation9 + $0x778] sm:$0xff]
    %v4232 = vld [vmem:[#allocation9 + $0x780] sm:$0xff]
    %v4233 = vld [vmem:[#allocation9 + $0x788] sm:$0xff]
    %v4234 = vld [vmem:[#allocation9 + $0x790] sm:$0xff]
    %v4235 = vld [vmem:[#allocation9 + $0x798] sm:$0xff]
    %v4236 = vld [vmem:[#allocation9 + $0x7a0] sm:$0xff]
    %v4237 = vld [vmem:[#allocation9 + $0x7a8] sm:$0xff]
    %v4238 = vld [vmem:[#allocation9 + $0x7b0] sm:$0xff]
    %v4239 = vld [vmem:[#allocation9 + $0x7b8] sm:$0xff]
    %v4240 = vld [vmem:[#allocation9 + $0x7c0] sm:$0xff]
    %v4241 = vld [vmem:[#allocation9 + $0x7c8] sm:$0xff]
    %v4242 = vld [vmem:[#allocation9 + $0x7d0] sm:$0xff]
    %v4243 = vld [vmem:[#allocation9 + $0x7d8] sm:$0xff]
    %v4244 = vld [vmem:[#allocation9 + $0x7e0] sm:$0xff]
    %v4245 = vld [vmem:[#allocation9 + $0x7e8] sm:$0xff]
    %v4246 = vld [vmem:[#allocation9 + $0x7f0] sm:$0xff]
    %v4247 = vld [vmem:[#allocation9 + $0x7f8] sm:$0xff]
    %v4248 = vld [vmem:[%s10] sm:$0xff]
    %v4250 = vlaneseq
    %v4251 = vshrl.u32 %v4250, 7
    %v4252 = vsub.s32 0, %v4251
    %v4253 = vrot.slane %v4248, %v4252
    %v4254 = vlaneseq
    %v4255 = vshrl.u32 %v4254, 7
    %v4256 = vsub.s32 1, %v4255
    %v4257 = vrot.slane %v4248, %v4256
    %v4258 = vlaneseq
    %v4259 = vshrl.u32 %v4258, 7
    %v4260 = vsub.s32 2, %v4259
    %v4261 = vrot.slane %v4248, %v4260
    %v4262 = vlaneseq
    %v4263 = vshrl.u32 %v4262, 7
    %v4264 = vsub.s32 3, %v4263
    %v4265 = vrot.slane %v4248, %v4264
    %v4266 = vlaneseq
    %v4267 = vshrl.u32 %v4266, 7
    %v4268 = vsub.s32 4, %v4267
    %v4269 = vrot.slane %v4248, %v4268
    %v4270 = vlaneseq
    %v4271 = vshrl.u32 %v4270, 7
    %v4272 = vsub.s32 5, %v4271
    %v4273 = vrot.slane %v4248, %v4272
    %v4274 = vlaneseq
    %v4275 = vshrl.u32 %v4274, 7
    %v4276 = vsub.s32 6, %v4275
    %v4277 = vrot.slane %v4248, %v4276
    %v4278 = vlaneseq
    %v4279 = vshrl.u32 %v4278, 7
    %v4280 = vsub.s32 7, %v4279
    %v4281 = vrot.slane %v4248, %v4280
    %v4546 = vunpack.c.l.b16 %v3992
    %v4547 = vunpack.c.h.b16 %v3992
    %v4548 = vunpack.c.l.b16 %v3993
    %v4549 = vunpack.c.h.b16 %v3993
    %v4550 = vunpack.c.l.b16 %v3994
    %v4551 = vunpack.c.h.b16 %v3994
    %v4552 = vunpack.c.l.b16 %v3995
    %v4553 = vunpack.c.h.b16 %v3995
    %v4554 = vunpack.c.l.b16 %v3996
    %v4555 = vunpack.c.h.b16 %v3996
    %v4556 = vunpack.c.l.b16 %v3997
    %v4557 = vunpack.c.h.b16 %v3997
    %v4558 = vunpack.c.l.b16 %v3998
    %v4559 = vunpack.c.h.b16 %v3998
    %v4560 = vunpack.c.l.b16 %v3999
    %v4561 = vunpack.c.h.b16 %v3999
    %v4562 = vunpack.c.l.b16 %v4000
    %v4563 = vunpack.c.h.b16 %v4000
    %v4564 = vunpack.c.l.b16 %v4001
    %v4565 = vunpack.c.h.b16 %v4001
    %v4566 = vunpack.c.l.b16 %v4002
    %v4567 = vunpack.c.h.b16 %v4002
    %v4568 = vunpack.c.l.b16 %v4003
    %v4569 = vunpack.c.h.b16 %v4003
    %v4570 = vunpack.c.l.b16 %v4004
    %v4571 = vunpack.c.h.b16 %v4004
    %v4572 = vunpack.c.l.b16 %v4005
    %v4573 = vunpack.c.h.b16 %v4005
    %v4574 = vunpack.c.l.b16 %v4006
    %v4575 = vunpack.c.h.b16 %v4006
    %v4576 = vunpack.c.l.b16 %v4007
    %v4577 = vunpack.c.h.b16 %v4007
    %v4578 = vunpack.c.l.b16 %v4008
    %v4579 = vunpack.c.h.b16 %v4008
    %v4580 = vunpack.c.l.b16 %v4009
    %v4581 = vunpack.c.h.b16 %v4009
    %v4582 = vunpack.c.l.b16 %v4010
    %v4583 = vunpack.c.h.b16 %v4010
    %v4584 = vunpack.c.l.b16 %v4011
    %v4585 = vunpack.c.h.b16 %v4011
    %v4586 = vunpack.c.l.b16 %v4012
    %v4587 = vunpack.c.h.b16 %v4012
    %v4588 = vunpack.c.l.b16 %v4013
    %v4589 = vunpack.c.h.b16 %v4013
    %v4590 = vunpack.c.l.b16 %v4014
    %v4591 = vunpack.c.h.b16 %v4014
    %v4592 = vunpack.c.l.b16 %v4015
    %v4593 = vunpack.c.h.b16 %v4015
    %v4594 = vunpack.c.l.b16 %v4016
    %v4595 = vunpack.c.h.b16 %v4016
    %v4596 = vunpack.c.l.b16 %v4017
    %v4597 = vunpack.c.h.b16 %v4017
    %v4598 = vunpack.c.l.b16 %v4018
    %v4599 = vunpack.c.h.b16 %v4018
    %v4600 = vunpack.c.l.b16 %v4019
    %v4601 = vunpack.c.h.b16 %v4019
    %v4602 = vunpack.c.l.b16 %v4020
    %v4603 = vunpack.c.h.b16 %v4020
    %v4604 = vunpack.c.l.b16 %v4021
    %v4605 = vunpack.c.h.b16 %v4021
    %v4606 = vunpack.c.l.b16 %v4022
    %v4607 = vunpack.c.h.b16 %v4022
    %v4608 = vunpack.c.l.b16 %v4023
    %v4609 = vunpack.c.h.b16 %v4023
    %v4610 = vunpack.c.l.b16 %v4024
    %v4611 = vunpack.c.h.b16 %v4024
    %v4612 = vunpack.c.l.b16 %v4025
    %v4613 = vunpack.c.h.b16 %v4025
    %v4614 = vunpack.c.l.b16 %v4026
    %v4615 = vunpack.c.h.b16 %v4026
    %v4616 = vunpack.c.l.b16 %v4027
    %v4617 = vunpack.c.h.b16 %v4027
    %v4618 = vunpack.c.l.b16 %v4028
    %v4619 = vunpack.c.h.b16 %v4028
    %v4620 = vunpack.c.l.b16 %v4029
    %v4621 = vunpack.c.h.b16 %v4029
    %v4622 = vunpack.c.l.b16 %v4030
    %v4623 = vunpack.c.h.b16 %v4030
    %v4624 = vunpack.c.l.b16 %v4031
    %v4625 = vunpack.c.h.b16 %v4031
    %v4626 = vunpack.c.l.b16 %v4032
    %v4627 = vunpack.c.h.b16 %v4032
    %v4628 = vunpack.c.l.b16 %v4033
    %v4629 = vunpack.c.h.b16 %v4033
    %v4630 = vunpack.c.l.b16 %v4034
    %v4631 = vunpack.c.h.b16 %v4034
    %v4632 = vunpack.c.l.b16 %v4035
    %v4633 = vunpack.c.h.b16 %v4035
    %v4634 = vunpack.c.l.b16 %v4036
    %v4635 = vunpack.c.h.b16 %v4036
    %v4636 = vunpack.c.l.b16 %v4037
    %v4637 = vunpack.c.h.b16 %v4037
    %v4638 = vunpack.c.l.b16 %v4038
    %v4639 = vunpack.c.h.b16 %v4038
    %v4640 = vunpack.c.l.b16 %v4039
    %v4641 = vunpack.c.h.b16 %v4039
    %v4642 = vunpack.c.l.b16 %v4040
    %v4643 = vunpack.c.h.b16 %v4040
    %v4644 = vunpack.c.l.b16 %v4041
    %v4645 = vunpack.c.h.b16 %v4041
    %v4646 = vunpack.c.l.b16 %v4042
    %v4647 = vunpack.c.h.b16 %v4042
    %v4648 = vunpack.c.l.b16 %v4043
    %v4649 = vunpack.c.h.b16 %v4043
    %v4650 = vunpack.c.l.b16 %v4044
    %v4651 = vunpack.c.h.b16 %v4044
    %v4652 = vunpack.c.l.b16 %v4045
    %v4653 = vunpack.c.h.b16 %v4045
    %v4654 = vunpack.c.l.b16 %v4046
    %v4655 = vunpack.c.h.b16 %v4046
    %v4656 = vunpack.c.l.b16 %v4047
    %v4657 = vunpack.c.h.b16 %v4047
    %v4658 = vunpack.c.l.b16 %v4048
    %v4659 = vunpack.c.h.b16 %v4048
    %v4660 = vunpack.c.l.b16 %v4049
    %v4661 = vunpack.c.h.b16 %v4049
    %v4662 = vunpack.c.l.b16 %v4050
    %v4663 = vunpack.c.h.b16 %v4050
    %v4664 = vunpack.c.l.b16 %v4051
    %v4665 = vunpack.c.h.b16 %v4051
    %v4666 = vunpack.c.l.b16 %v4052
    %v4667 = vunpack.c.h.b16 %v4052
    %v4668 = vunpack.c.l.b16 %v4053
    %v4669 = vunpack.c.h.b16 %v4053
    %v4670 = vunpack.c.l.b16 %v4054
    %v4671 = vunpack.c.h.b16 %v4054
    %v4672 = vunpack.c.l.b16 %v4055
    %v4673 = vunpack.c.h.b16 %v4055
    %v4674 = vunpack.c.l.b16 %v4056
    %v4675 = vunpack.c.h.b16 %v4056
    %v4676 = vunpack.c.l.b16 %v4057
    %v4677 = vunpack.c.h.b16 %v4057
    %v4678 = vunpack.c.l.b16 %v4058
    %v4679 = vunpack.c.h.b16 %v4058
    %v4680 = vunpack.c.l.b16 %v4059
    %v4681 = vunpack.c.h.b16 %v4059
    %v4682 = vunpack.c.l.b16 %v4060
    %v4683 = vunpack.c.h.b16 %v4060
    %v4684 = vunpack.c.l.b16 %v4061
    %v4685 = vunpack.c.h.b16 %v4061
    %v4686 = vunpack.c.l.b16 %v4062
    %v4687 = vunpack.c.h.b16 %v4062
    %v4688 = vunpack.c.l.b16 %v4063
    %v4689 = vunpack.c.h.b16 %v4063
    %v4690 = vunpack.c.l.b16 %v4064
    %v4691 = vunpack.c.h.b16 %v4064
    %v4692 = vunpack.c.l.b16 %v4065
    %v4693 = vunpack.c.h.b16 %v4065
    %v4694 = vunpack.c.l.b16 %v4066
    %v4695 = vunpack.c.h.b16 %v4066
    %v4696 = vunpack.c.l.b16 %v4067
    %v4697 = vunpack.c.h.b16 %v4067
    %v4698 = vunpack.c.l.b16 %v4068
    %v4699 = vunpack.c.h.b16 %v4068
    %v4700 = vunpack.c.l.b16 %v4069
    %v4701 = vunpack.c.h.b16 %v4069
    %v4702 = vunpack.c.l.b16 %v4070
    %v4703 = vunpack.c.h.b16 %v4070
    %v4704 = vunpack.c.l.b16 %v4071
    %v4705 = vunpack.c.h.b16 %v4071
    %v4706 = vunpack.c.l.b16 %v4072
    %v4707 = vunpack.c.h.b16 %v4072
    %v4708 = vunpack.c.l.b16 %v4073
    %v4709 = vunpack.c.h.b16 %v4073
    %v4710 = vunpack.c.l.b16 %v4074
    %v4711 = vunpack.c.h.b16 %v4074
    %v4712 = vunpack.c.l.b16 %v4075
    %v4713 = vunpack.c.h.b16 %v4075
    %v4714 = vunpack.c.l.b16 %v4076
    %v4715 = vunpack.c.h.b16 %v4076
    %v4716 = vunpack.c.l.b16 %v4077
    %v4717 = vunpack.c.h.b16 %v4077
    %v4718 = vunpack.c.l.b16 %v4078
    %v4719 = vunpack.c.h.b16 %v4078
    %v4720 = vunpack.c.l.b16 %v4079
    %v4721 = vunpack.c.h.b16 %v4079
    %v4722 = vunpack.c.l.b16 %v4080
    %v4723 = vunpack.c.h.b16 %v4080
    %v4724 = vunpack.c.l.b16 %v4081
    %v4725 = vunpack.c.h.b16 %v4081
    %v4726 = vunpack.c.l.b16 %v4082
    %v4727 = vunpack.c.h.b16 %v4082
    %v4728 = vunpack.c.l.b16 %v4083
    %v4729 = vunpack.c.h.b16 %v4083
    %v4730 = vunpack.c.l.b16 %v4084
    %v4731 = vunpack.c.h.b16 %v4084
    %v4732 = vunpack.c.l.b16 %v4085
    %v4733 = vunpack.c.h.b16 %v4085
    %v4734 = vunpack.c.l.b16 %v4086
    %v4735 = vunpack.c.h.b16 %v4086
    %v4736 = vunpack.c.l.b16 %v4087
    %v4737 = vunpack.c.h.b16 %v4087
    %v4738 = vunpack.c.l.b16 %v4088
    %v4739 = vunpack.c.h.b16 %v4088
    %v4740 = vunpack.c.l.b16 %v4089
    %v4741 = vunpack.c.h.b16 %v4089
    %v4742 = vunpack.c.l.b16 %v4090
    %v4743 = vunpack.c.h.b16 %v4090
    %v4744 = vunpack.c.l.b16 %v4091
    %v4745 = vunpack.c.h.b16 %v4091
    %v4746 = vunpack.c.l.b16 %v4092
    %v4747 = vunpack.c.h.b16 %v4092
    %v4748 = vunpack.c.l.b16 %v4093
    %v4749 = vunpack.c.h.b16 %v4093
    %v4750 = vunpack.c.l.b16 %v4094
    %v4751 = vunpack.c.h.b16 %v4094
    %v4752 = vunpack.c.l.b16 %v4095
    %v4753 = vunpack.c.h.b16 %v4095
    %v4754 = vunpack.c.l.b16 %v4096
    %v4755 = vunpack.c.h.b16 %v4096
    %v4756 = vunpack.c.l.b16 %v4097
    %v4757 = vunpack.c.h.b16 %v4097
    %v4758 = vunpack.c.l.b16 %v4098
    %v4759 = vunpack.c.h.b16 %v4098
    %v4760 = vunpack.c.l.b16 %v4099
    %v4761 = vunpack.c.h.b16 %v4099
    %v4762 = vunpack.c.l.b16 %v4100
    %v4763 = vunpack.c.h.b16 %v4100
    %v4764 = vunpack.c.l.b16 %v4101
    %v4765 = vunpack.c.h.b16 %v4101
    %v4766 = vunpack.c.l.b16 %v4102
    %v4767 = vunpack.c.h.b16 %v4102
    %v4768 = vunpack.c.l.b16 %v4103
    %v4769 = vunpack.c.h.b16 %v4103
    %v4770 = vunpack.c.l.b16 %v4104
    %v4771 = vunpack.c.h.b16 %v4104
    %v4772 = vunpack.c.l.b16 %v4105
    %v4773 = vunpack.c.h.b16 %v4105
    %v4774 = vunpack.c.l.b16 %v4106
    %v4775 = vunpack.c.h.b16 %v4106
    %v4776 = vunpack.c.l.b16 %v4107
    %v4777 = vunpack.c.h.b16 %v4107
    %v4778 = vunpack.c.l.b16 %v4108
    %v4779 = vunpack.c.h.b16 %v4108
    %v4780 = vunpack.c.l.b16 %v4109
    %v4781 = vunpack.c.h.b16 %v4109
    %v4782 = vunpack.c.l.b16 %v4110
    %v4783 = vunpack.c.h.b16 %v4110
    %v4784 = vunpack.c.l.b16 %v4111
    %v4785 = vunpack.c.h.b16 %v4111
    %v4786 = vunpack.c.l.b16 %v4112
    %v4787 = vunpack.c.h.b16 %v4112
    %v4788 = vunpack.c.l.b16 %v4113
    %v4789 = vunpack.c.h.b16 %v4113
    %v4790 = vunpack.c.l.b16 %v4114
    %v4791 = vunpack.c.h.b16 %v4114
    %v4792 = vunpack.c.l.b16 %v4115
    %v4793 = vunpack.c.h.b16 %v4115
    %v4794 = vunpack.c.l.b16 %v4116
    %v4795 = vunpack.c.h.b16 %v4116
    %v4796 = vunpack.c.l.b16 %v4117
    %v4797 = vunpack.c.h.b16 %v4117
    %v4798 = vunpack.c.l.b16 %v4118
    %v4799 = vunpack.c.h.b16 %v4118
    %v4800 = vunpack.c.l.b16 %v4119
    %v4801 = vunpack.c.h.b16 %v4119
    %v4802 = vunpack.c.l.b16 %v4120
    %v4803 = vunpack.c.h.b16 %v4120
    %v4804 = vunpack.c.l.b16 %v4121
    %v4805 = vunpack.c.h.b16 %v4121
    %v4806 = vunpack.c.l.b16 %v4122
    %v4807 = vunpack.c.h.b16 %v4122
    %v4808 = vunpack.c.l.b16 %v4123
    %v4809 = vunpack.c.h.b16 %v4123
    %v4810 = vunpack.c.l.b16 %v4124
    %v4811 = vunpack.c.h.b16 %v4124
    %v4812 = vunpack.c.l.b16 %v4125
    %v4813 = vunpack.c.h.b16 %v4125
    %v4814 = vunpack.c.l.b16 %v4126
    %v4815 = vunpack.c.h.b16 %v4126
    %v4816 = vunpack.c.l.b16 %v4127
    %v4817 = vunpack.c.h.b16 %v4127
    %v4818 = vunpack.c.l.b16 %v4128
    %v4819 = vunpack.c.h.b16 %v4128
    %v4820 = vunpack.c.l.b16 %v4129
    %v4821 = vunpack.c.h.b16 %v4129
    %v4822 = vunpack.c.l.b16 %v4130
    %v4823 = vunpack.c.h.b16 %v4130
    %v4824 = vunpack.c.l.b16 %v4131
    %v4825 = vunpack.c.h.b16 %v4131
    %v4826 = vunpack.c.l.b16 %v4132
    %v4827 = vunpack.c.h.b16 %v4132
    %v4828 = vunpack.c.l.b16 %v4133
    %v4829 = vunpack.c.h.b16 %v4133
    %v4830 = vunpack.c.l.b16 %v4134
    %v4831 = vunpack.c.h.b16 %v4134
    %v4832 = vunpack.c.l.b16 %v4135
    %v4833 = vunpack.c.h.b16 %v4135
    %v4834 = vunpack.c.l.b16 %v4136
    %v4835 = vunpack.c.h.b16 %v4136
    %v4836 = vunpack.c.l.b16 %v4137
    %v4837 = vunpack.c.h.b16 %v4137
    %v4838 = vunpack.c.l.b16 %v4138
    %v4839 = vunpack.c.h.b16 %v4138
    %v4840 = vunpack.c.l.b16 %v4139
    %v4841 = vunpack.c.h.b16 %v4139
    %v4842 = vunpack.c.l.b16 %v4140
    %v4843 = vunpack.c.h.b16 %v4140
    %v4844 = vunpack.c.l.b16 %v4141
    %v4845 = vunpack.c.h.b16 %v4141
    %v4846 = vunpack.c.l.b16 %v4142
    %v4847 = vunpack.c.h.b16 %v4142
    %v4848 = vunpack.c.l.b16 %v4143
    %v4849 = vunpack.c.h.b16 %v4143
    %v4850 = vunpack.c.l.b16 %v4144
    %v4851 = vunpack.c.h.b16 %v4144
    %v4852 = vunpack.c.l.b16 %v4145
    %v4853 = vunpack.c.h.b16 %v4145
    %v4854 = vunpack.c.l.b16 %v4146
    %v4855 = vunpack.c.h.b16 %v4146
    %v4856 = vunpack.c.l.b16 %v4147
    %v4857 = vunpack.c.h.b16 %v4147
    %v4858 = vunpack.c.l.b16 %v4148
    %v4859 = vunpack.c.h.b16 %v4148
    %v4860 = vunpack.c.l.b16 %v4149
    %v4861 = vunpack.c.h.b16 %v4149
    %v4862 = vunpack.c.l.b16 %v4150
    %v4863 = vunpack.c.h.b16 %v4150
    %v4864 = vunpack.c.l.b16 %v4151
    %v4865 = vunpack.c.h.b16 %v4151
    %v4866 = vunpack.c.l.b16 %v4152
    %v4867 = vunpack.c.h.b16 %v4152
    %v4868 = vunpack.c.l.b16 %v4153
    %v4869 = vunpack.c.h.b16 %v4153
    %v4870 = vunpack.c.l.b16 %v4154
    %v4871 = vunpack.c.h.b16 %v4154
    %v4872 = vunpack.c.l.b16 %v4155
    %v4873 = vunpack.c.h.b16 %v4155
    %v4874 = vunpack.c.l.b16 %v4156
    %v4875 = vunpack.c.h.b16 %v4156
    %v4876 = vunpack.c.l.b16 %v4157
    %v4877 = vunpack.c.h.b16 %v4157
    %v4878 = vunpack.c.l.b16 %v4158
    %v4879 = vunpack.c.h.b16 %v4158
    %v4880 = vunpack.c.l.b16 %v4159
    %v4881 = vunpack.c.h.b16 %v4159
    %v4882 = vunpack.c.l.b16 %v4160
    %v4883 = vunpack.c.h.b16 %v4160
    %v4884 = vunpack.c.l.b16 %v4161
    %v4885 = vunpack.c.h.b16 %v4161
    %v4886 = vunpack.c.l.b16 %v4162
    %v4887 = vunpack.c.h.b16 %v4162
    %v4888 = vunpack.c.l.b16 %v4163
    %v4889 = vunpack.c.h.b16 %v4163
    %v4890 = vunpack.c.l.b16 %v4164
    %v4891 = vunpack.c.h.b16 %v4164
    %v4892 = vunpack.c.l.b16 %v4165
    %v4893 = vunpack.c.h.b16 %v4165
    %v4894 = vunpack.c.l.b16 %v4166
    %v4895 = vunpack.c.h.b16 %v4166
    %v4896 = vunpack.c.l.b16 %v4167
    %v4897 = vunpack.c.h.b16 %v4167
    %v4898 = vunpack.c.l.b16 %v4168
    %v4899 = vunpack.c.h.b16 %v4168
    %v4900 = vunpack.c.l.b16 %v4169
    %v4901 = vunpack.c.h.b16 %v4169
    %v4902 = vunpack.c.l.b16 %v4170
    %v4903 = vunpack.c.h.b16 %v4170
    %v4904 = vunpack.c.l.b16 %v4171
    %v4905 = vunpack.c.h.b16 %v4171
    %v4906 = vunpack.c.l.b16 %v4172
    %v4907 = vunpack.c.h.b16 %v4172
    %v4908 = vunpack.c.l.b16 %v4173
    %v4909 = vunpack.c.h.b16 %v4173
    %v4910 = vunpack.c.l.b16 %v4174
    %v4911 = vunpack.c.h.b16 %v4174
    %v4912 = vunpack.c.l.b16 %v4175
    %v4913 = vunpack.c.h.b16 %v4175
    %v4914 = vunpack.c.l.b16 %v4176
    %v4915 = vunpack.c.h.b16 %v4176
    %v4916 = vunpack.c.l.b16 %v4177
    %v4917 = vunpack.c.h.b16 %v4177
    %v4918 = vunpack.c.l.b16 %v4178
    %v4919 = vunpack.c.h.b16 %v4178
    %v4920 = vunpack.c.l.b16 %v4179
    %v4921 = vunpack.c.h.b16 %v4179
    %v4922 = vunpack.c.l.b16 %v4180
    %v4923 = vunpack.c.h.b16 %v4180
    %v4924 = vunpack.c.l.b16 %v4181
    %v4925 = vunpack.c.h.b16 %v4181
    %v4926 = vunpack.c.l.b16 %v4182
    %v4927 = vunpack.c.h.b16 %v4182
    %v4928 = vunpack.c.l.b16 %v4183
    %v4929 = vunpack.c.h.b16 %v4183
    %v4930 = vunpack.c.l.b16 %v4184
    %v4931 = vunpack.c.h.b16 %v4184
    %v4932 = vunpack.c.l.b16 %v4185
    %v4933 = vunpack.c.h.b16 %v4185
    %v4934 = vunpack.c.l.b16 %v4186
    %v4935 = vunpack.c.h.b16 %v4186
    %v4936 = vunpack.c.l.b16 %v4187
    %v4937 = vunpack.c.h.b16 %v4187
    %v4938 = vunpack.c.l.b16 %v4188
    %v4939 = vunpack.c.h.b16 %v4188
    %v4940 = vunpack.c.l.b16 %v4189
    %v4941 = vunpack.c.h.b16 %v4189
    %v4942 = vunpack.c.l.b16 %v4190
    %v4943 = vunpack.c.h.b16 %v4190
    %v4944 = vunpack.c.l.b16 %v4191
    %v4945 = vunpack.c.h.b16 %v4191
    %v4946 = vunpack.c.l.b16 %v4192
    %v4947 = vunpack.c.h.b16 %v4192
    %v4948 = vunpack.c.l.b16 %v4193
    %v4949 = vunpack.c.h.b16 %v4193
    %v4950 = vunpack.c.l.b16 %v4194
    %v4951 = vunpack.c.h.b16 %v4194
    %v4952 = vunpack.c.l.b16 %v4195
    %v4953 = vunpack.c.h.b16 %v4195
    %v4954 = vunpack.c.l.b16 %v4196
    %v4955 = vunpack.c.h.b16 %v4196
    %v4956 = vunpack.c.l.b16 %v4197
    %v4957 = vunpack.c.h.b16 %v4197
    %v4958 = vunpack.c.l.b16 %v4198
    %v4959 = vunpack.c.h.b16 %v4198
    %v4960 = vunpack.c.l.b16 %v4199
    %v4961 = vunpack.c.h.b16 %v4199
    %v4962 = vunpack.c.l.b16 %v4200
    %v4963 = vunpack.c.h.b16 %v4200
    %v4964 = vunpack.c.l.b16 %v4201
    %v4965 = vunpack.c.h.b16 %v4201
    %v4966 = vunpack.c.l.b16 %v4202
    %v4967 = vunpack.c.h.b16 %v4202
    %v4968 = vunpack.c.l.b16 %v4203
    %v4969 = vunpack.c.h.b16 %v4203
    %v4970 = vunpack.c.l.b16 %v4204
    %v4971 = vunpack.c.h.b16 %v4204
    %v4972 = vunpack.c.l.b16 %v4205
    %v4973 = vunpack.c.h.b16 %v4205
    %v4974 = vunpack.c.l.b16 %v4206
    %v4975 = vunpack.c.h.b16 %v4206
    %v4976 = vunpack.c.l.b16 %v4207
    %v4977 = vunpack.c.h.b16 %v4207
    %v4978 = vunpack.c.l.b16 %v4208
    %v4979 = vunpack.c.h.b16 %v4208
    %v4980 = vunpack.c.l.b16 %v4209
    %v4981 = vunpack.c.h.b16 %v4209
    %v4982 = vunpack.c.l.b16 %v4210
    %v4983 = vunpack.c.h.b16 %v4210
    %v4984 = vunpack.c.l.b16 %v4211
    %v4985 = vunpack.c.h.b16 %v4211
    %v4986 = vunpack.c.l.b16 %v4212
    %v4987 = vunpack.c.h.b16 %v4212
    %v4988 = vunpack.c.l.b16 %v4213
    %v4989 = vunpack.c.h.b16 %v4213
    %v4990 = vunpack.c.l.b16 %v4214
    %v4991 = vunpack.c.h.b16 %v4214
    %v4992 = vunpack.c.l.b16 %v4215
    %v4993 = vunpack.c.h.b16 %v4215
    %v4994 = vunpack.c.l.b16 %v4216
    %v4995 = vunpack.c.h.b16 %v4216
    %v4996 = vunpack.c.l.b16 %v4217
    %v4997 = vunpack.c.h.b16 %v4217
    %v4998 = vunpack.c.l.b16 %v4218
    %v4999 = vunpack.c.h.b16 %v4218
    %v5000 = vunpack.c.l.b16 %v4219
    %v5001 = vunpack.c.h.b16 %v4219
    %v5002 = vunpack.c.l.b16 %v4220
    %v5003 = vunpack.c.h.b16 %v4220
    %v5004 = vunpack.c.l.b16 %v4221
    %v5005 = vunpack.c.h.b16 %v4221
    %v5006 = vunpack.c.l.b16 %v4222
    %v5007 = vunpack.c.h.b16 %v4222
    %v5008 = vunpack.c.l.b16 %v4223
    %v5009 = vunpack.c.h.b16 %v4223
    %v5010 = vunpack.c.l.b16 %v4224
    %v5011 = vunpack.c.h.b16 %v4224
    %v5012 = vunpack.c.l.b16 %v4225
    %v5013 = vunpack.c.h.b16 %v4225
    %v5014 = vunpack.c.l.b16 %v4226
    %v5015 = vunpack.c.h.b16 %v4226
    %v5016 = vunpack.c.l.b16 %v4227
    %v5017 = vunpack.c.h.b16 %v4227
    %v5018 = vunpack.c.l.b16 %v4228
    %v5019 = vunpack.c.h.b16 %v4228
    %v5020 = vunpack.c.l.b16 %v4229
    %v5021 = vunpack.c.h.b16 %v4229
    %v5022 = vunpack.c.l.b16 %v4230
    %v5023 = vunpack.c.h.b16 %v4230
    %v5024 = vunpack.c.l.b16 %v4231
    %v5025 = vunpack.c.h.b16 %v4231
    %v5026 = vunpack.c.l.b16 %v4232
    %v5027 = vunpack.c.h.b16 %v4232
    %v5028 = vunpack.c.l.b16 %v4233
    %v5029 = vunpack.c.h.b16 %v4233
    %v5030 = vunpack.c.l.b16 %v4234
    %v5031 = vunpack.c.h.b16 %v4234
    %v5032 = vunpack.c.l.b16 %v4235
    %v5033 = vunpack.c.h.b16 %v4235
    %v5034 = vunpack.c.l.b16 %v4236
    %v5035 = vunpack.c.h.b16 %v4236
    %v5036 = vunpack.c.l.b16 %v4237
    %v5037 = vunpack.c.h.b16 %v4237
    %v5038 = vunpack.c.l.b16 %v4238
    %v5039 = vunpack.c.h.b16 %v4238
    %v5040 = vunpack.c.l.b16 %v4239
    %v5041 = vunpack.c.h.b16 %v4239
    %v5042 = vunpack.c.l.b16 %v4240
    %v5043 = vunpack.c.h.b16 %v4240
    %v5044 = vunpack.c.l.b16 %v4241
    %v5045 = vunpack.c.h.b16 %v4241
    %v5046 = vunpack.c.l.b16 %v4242
    %v5047 = vunpack.c.h.b16 %v4242
    %v5048 = vunpack.c.l.b16 %v4243
    %v5049 = vunpack.c.h.b16 %v4243
    %v5050 = vunpack.c.l.b16 %v4244
    %v5051 = vunpack.c.h.b16 %v4244
    %v5052 = vunpack.c.l.b16 %v4245
    %v5053 = vunpack.c.h.b16 %v4245
    %v5054 = vunpack.c.l.b16 %v4246
    %v5055 = vunpack.c.h.b16 %v4246
    %v5056 = vunpack.c.l.b16 %v4247
    %v5057 = vunpack.c.h.b16 %v4247
    %v5058 = vpack.c.b16 %v4554, %v4546
    %v5059 = vpack.c.b16 %v4555, %v4547
    %v5060 = vpack.c.b16 %v4556, %v4548
    %v5061 = vpack.c.b16 %v4557, %v4549
    %v5062 = vpack.c.b16 %v4558, %v4550
    %v5063 = vpack.c.b16 %v4559, %v4551
    %v5064 = vpack.c.b16 %v4560, %v4552
    %v5065 = vpack.c.b16 %v4561, %v4553
    %v5066 = vpack.c.b16 %v4570, %v4562
    %v5067 = vpack.c.b16 %v4571, %v4563
    %v5068 = vpack.c.b16 %v4572, %v4564
    %v5069 = vpack.c.b16 %v4573, %v4565
    %v5070 = vpack.c.b16 %v4574, %v4566
    %v5071 = vpack.c.b16 %v4575, %v4567
    %v5072 = vpack.c.b16 %v4576, %v4568
    %v5073 = vpack.c.b16 %v4577, %v4569
    %v5074 = vpack.c.b16 %v4586, %v4578
    %v5075 = vpack.c.b16 %v4587, %v4579
    %v5076 = vpack.c.b16 %v4588, %v4580
    %v5077 = vpack.c.b16 %v4589, %v4581
    %v5078 = vpack.c.b16 %v4590, %v4582
    %v5079 = vpack.c.b16 %v4591, %v4583
    %v5080 = vpack.c.b16 %v4592, %v4584
    %v5081 = vpack.c.b16 %v4593, %v4585
    %v5082 = vpack.c.b16 %v4602, %v4594
    %v5083 = vpack.c.b16 %v4603, %v4595
    %v5084 = vpack.c.b16 %v4604, %v4596
    %v5085 = vpack.c.b16 %v4605, %v4597
    %v5086 = vpack.c.b16 %v4606, %v4598
    %v5087 = vpack.c.b16 %v4607, %v4599
    %v5088 = vpack.c.b16 %v4608, %v4600
    %v5089 = vpack.c.b16 %v4609, %v4601
    %v5090 = vpack.c.b16 %v4618, %v4610
    %v5091 = vpack.c.b16 %v4619, %v4611
    %v5092 = vpack.c.b16 %v4620, %v4612
    %v5093 = vpack.c.b16 %v4621, %v4613
    %v5094 = vpack.c.b16 %v4622, %v4614
    %v5095 = vpack.c.b16 %v4623, %v4615
    %v5096 = vpack.c.b16 %v4624, %v4616
    %v5097 = vpack.c.b16 %v4625, %v4617
    %v5098 = vpack.c.b16 %v4634, %v4626
    %v5099 = vpack.c.b16 %v4635, %v4627
    %v5100 = vpack.c.b16 %v4636, %v4628
    %v5101 = vpack.c.b16 %v4637, %v4629
    %v5102 = vpack.c.b16 %v4638, %v4630
    %v5103 = vpack.c.b16 %v4639, %v4631
    %v5104 = vpack.c.b16 %v4640, %v4632
    %v5105 = vpack.c.b16 %v4641, %v4633
    %v5106 = vpack.c.b16 %v4650, %v4642
    %v5107 = vpack.c.b16 %v4651, %v4643
    %v5108 = vpack.c.b16 %v4652, %v4644
    %v5109 = vpack.c.b16 %v4653, %v4645
    %v5110 = vpack.c.b16 %v4654, %v4646
    %v5111 = vpack.c.b16 %v4655, %v4647
    %v5112 = vpack.c.b16 %v4656, %v4648
    %v5113 = vpack.c.b16 %v4657, %v4649
    %v5114 = vpack.c.b16 %v4666, %v4658
    %v5115 = vpack.c.b16 %v4667, %v4659
    %v5116 = vpack.c.b16 %v4668, %v4660
    %v5117 = vpack.c.b16 %v4669, %v4661
    %v5118 = vpack.c.b16 %v4670, %v4662
    %v5119 = vpack.c.b16 %v4671, %v4663
    %v5120 = vpack.c.b16 %v4672, %v4664
    %v5121 = vpack.c.b16 %v4673, %v4665
    %v5122 = vpack.c.b16 %v4682, %v4674
    %v5123 = vpack.c.b16 %v4683, %v4675
    %v5124 = vpack.c.b16 %v4684, %v4676
    %v5125 = vpack.c.b16 %v4685, %v4677
    %v5126 = vpack.c.b16 %v4686, %v4678
    %v5127 = vpack.c.b16 %v4687, %v4679
    %v5128 = vpack.c.b16 %v4688, %v4680
    %v5129 = vpack.c.b16 %v4689, %v4681
    %v5130 = vpack.c.b16 %v4698, %v4690
    %v5131 = vpack.c.b16 %v4699, %v4691
    %v5132 = vpack.c.b16 %v4700, %v4692
    %v5133 = vpack.c.b16 %v4701, %v4693
    %v5134 = vpack.c.b16 %v4702, %v4694
    %v5135 = vpack.c.b16 %v4703, %v4695
    %v5136 = vpack.c.b16 %v4704, %v4696
    %v5137 = vpack.c.b16 %v4705, %v4697
    %v5138 = vpack.c.b16 %v4714, %v4706
    %v5139 = vpack.c.b16 %v4715, %v4707
    %v5140 = vpack.c.b16 %v4716, %v4708
    %v5141 = vpack.c.b16 %v4717, %v4709
    %v5142 = vpack.c.b16 %v4718, %v4710
    %v5143 = vpack.c.b16 %v4719, %v4711
    %v5144 = vpack.c.b16 %v4720, %v4712
    %v5145 = vpack.c.b16 %v4721, %v4713
    %v5146 = vpack.c.b16 %v4730, %v4722
    %v5147 = vpack.c.b16 %v4731, %v4723
    %v5148 = vpack.c.b16 %v4732, %v4724
    %v5149 = vpack.c.b16 %v4733, %v4725
    %v5150 = vpack.c.b16 %v4734, %v4726
    %v5151 = vpack.c.b16 %v4735, %v4727
    %v5152 = vpack.c.b16 %v4736, %v4728
    %v5153 = vpack.c.b16 %v4737, %v4729
    %v5154 = vpack.c.b16 %v4746, %v4738
    %v5155 = vpack.c.b16 %v4747, %v4739
    %v5156 = vpack.c.b16 %v4748, %v4740
    %v5157 = vpack.c.b16 %v4749, %v4741
    %v5158 = vpack.c.b16 %v4750, %v4742
    %v5159 = vpack.c.b16 %v4751, %v4743
    %v5160 = vpack.c.b16 %v4752, %v4744
    %v5161 = vpack.c.b16 %v4753, %v4745
    %v5162 = vpack.c.b16 %v4762, %v4754
    %v5163 = vpack.c.b16 %v4763, %v4755
    %v5164 = vpack.c.b16 %v4764, %v4756
    %v5165 = vpack.c.b16 %v4765, %v4757
    %v5166 = vpack.c.b16 %v4766, %v4758
    %v5167 = vpack.c.b16 %v4767, %v4759
    %v5168 = vpack.c.b16 %v4768, %v4760
    %v5169 = vpack.c.b16 %v4769, %v4761
    %v5170 = vpack.c.b16 %v4778, %v4770
    %v5171 = vpack.c.b16 %v4779, %v4771
    %v5172 = vpack.c.b16 %v4780, %v4772
    %v5173 = vpack.c.b16 %v4781, %v4773
    %v5174 = vpack.c.b16 %v4782, %v4774
    %v5175 = vpack.c.b16 %v4783, %v4775
    %v5176 = vpack.c.b16 %v4784, %v4776
    %v5177 = vpack.c.b16 %v4785, %v4777
    %v5178 = vpack.c.b16 %v4794, %v4786
    %v5179 = vpack.c.b16 %v4795, %v4787
    %v5180 = vpack.c.b16 %v4796, %v4788
    %v5181 = vpack.c.b16 %v4797, %v4789
    %v5182 = vpack.c.b16 %v4798, %v4790
    %v5183 = vpack.c.b16 %v4799, %v4791
    %v5184 = vpack.c.b16 %v4800, %v4792
    %v5185 = vpack.c.b16 %v4801, %v4793
    %v5186 = vpack.c.b16 %v4810, %v4802
    %v5187 = vpack.c.b16 %v4811, %v4803
    %v5188 = vpack.c.b16 %v4812, %v4804
    %v5189 = vpack.c.b16 %v4813, %v4805
    %v5190 = vpack.c.b16 %v4814, %v4806
    %v5191 = vpack.c.b16 %v4815, %v4807
    %v5192 = vpack.c.b16 %v4816, %v4808
    %v5193 = vpack.c.b16 %v4817, %v4809
    %v5194 = vpack.c.b16 %v4826, %v4818
    %v5195 = vpack.c.b16 %v4827, %v4819
    %v5196 = vpack.c.b16 %v4828, %v4820
    %v5197 = vpack.c.b16 %v4829, %v4821
    %v5198 = vpack.c.b16 %v4830, %v4822
    %v5199 = vpack.c.b16 %v4831, %v4823
    %v5200 = vpack.c.b16 %v4832, %v4824
    %v5201 = vpack.c.b16 %v4833, %v4825
    %v5202 = vpack.c.b16 %v4842, %v4834
    %v5203 = vpack.c.b16 %v4843, %v4835
    %v5204 = vpack.c.b16 %v4844, %v4836
    %v5205 = vpack.c.b16 %v4845, %v4837
    %v5206 = vpack.c.b16 %v4846, %v4838
    %v5207 = vpack.c.b16 %v4847, %v4839
    %v5208 = vpack.c.b16 %v4848, %v4840
    %v5209 = vpack.c.b16 %v4849, %v4841
    %v5210 = vpack.c.b16 %v4858, %v4850
    %v5211 = vpack.c.b16 %v4859, %v4851
    %v5212 = vpack.c.b16 %v4860, %v4852
    %v5213 = vpack.c.b16 %v4861, %v4853
    %v5214 = vpack.c.b16 %v4862, %v4854
    %v5215 = vpack.c.b16 %v4863, %v4855
    %v5216 = vpack.c.b16 %v4864, %v4856
    %v5217 = vpack.c.b16 %v4865, %v4857
    %v5218 = vpack.c.b16 %v4874, %v4866
    %v5219 = vpack.c.b16 %v4875, %v4867
    %v5220 = vpack.c.b16 %v4876, %v4868
    %v5221 = vpack.c.b16 %v4877, %v4869
    %v5222 = vpack.c.b16 %v4878, %v4870
    %v5223 = vpack.c.b16 %v4879, %v4871
    %v5224 = vpack.c.b16 %v4880, %v4872
    %v5225 = vpack.c.b16 %v4881, %v4873
    %v5226 = vpack.c.b16 %v4890, %v4882
    %v5227 = vpack.c.b16 %v4891, %v4883
    %v5228 = vpack.c.b16 %v4892, %v4884
    %v5229 = vpack.c.b16 %v4893, %v4885
    %v5230 = vpack.c.b16 %v4894, %v4886
    %v5231 = vpack.c.b16 %v4895, %v4887
    %v5232 = vpack.c.b16 %v4896, %v4888
    %v5233 = vpack.c.b16 %v4897, %v4889
    %v5234 = vpack.c.b16 %v4906, %v4898
    %v5235 = vpack.c.b16 %v4907, %v4899
    %v5236 = vpack.c.b16 %v4908, %v4900
    %v5237 = vpack.c.b16 %v4909, %v4901
    %v5238 = vpack.c.b16 %v4910, %v4902
    %v5239 = vpack.c.b16 %v4911, %v4903
    %v5240 = vpack.c.b16 %v4912, %v4904
    %v5241 = vpack.c.b16 %v4913, %v4905
    %v5242 = vpack.c.b16 %v4922, %v4914
    %v5243 = vpack.c.b16 %v4923, %v4915
    %v5244 = vpack.c.b16 %v4924, %v4916
    %v5245 = vpack.c.b16 %v4925, %v4917
    %v5246 = vpack.c.b16 %v4926, %v4918
    %v5247 = vpack.c.b16 %v4927, %v4919
    %v5248 = vpack.c.b16 %v4928, %v4920
    %v5249 = vpack.c.b16 %v4929, %v4921
    %v5250 = vpack.c.b16 %v4938, %v4930
    %v5251 = vpack.c.b16 %v4939, %v4931
    %v5252 = vpack.c.b16 %v4940, %v4932
    %v5253 = vpack.c.b16 %v4941, %v4933
    %v5254 = vpack.c.b16 %v4942, %v4934
    %v5255 = vpack.c.b16 %v4943, %v4935
    %v5256 = vpack.c.b16 %v4944, %v4936
    %v5257 = vpack.c.b16 %v4945, %v4937
    %v5258 = vpack.c.b16 %v4954, %v4946
    %v5259 = vpack.c.b16 %v4955, %v4947
    %v5260 = vpack.c.b16 %v4956, %v4948
    %v5261 = vpack.c.b16 %v4957, %v4949
    %v5262 = vpack.c.b16 %v4958, %v4950
    %v5263 = vpack.c.b16 %v4959, %v4951
    %v5264 = vpack.c.b16 %v4960, %v4952
    %v5265 = vpack.c.b16 %v4961, %v4953
    %v5266 = vpack.c.b16 %v4970, %v4962
    %v5267 = vpack.c.b16 %v4971, %v4963
    %v5268 = vpack.c.b16 %v4972, %v4964
    %v5269 = vpack.c.b16 %v4973, %v4965
    %v5270 = vpack.c.b16 %v4974, %v4966
    %v5271 = vpack.c.b16 %v4975, %v4967
    %v5272 = vpack.c.b16 %v4976, %v4968
    %v5273 = vpack.c.b16 %v4977, %v4969
    %v5274 = vpack.c.b16 %v4986, %v4978
    %v5275 = vpack.c.b16 %v4987, %v4979
    %v5276 = vpack.c.b16 %v4988, %v4980
    %v5277 = vpack.c.b16 %v4989, %v4981
    %v5278 = vpack.c.b16 %v4990, %v4982
    %v5279 = vpack.c.b16 %v4991, %v4983
    %v5280 = vpack.c.b16 %v4992, %v4984
    %v5281 = vpack.c.b16 %v4993, %v4985
    %v5282 = vpack.c.b16 %v5002, %v4994
    %v5283 = vpack.c.b16 %v5003, %v4995
    %v5284 = vpack.c.b16 %v5004, %v4996
    %v5285 = vpack.c.b16 %v5005, %v4997
    %v5286 = vpack.c.b16 %v5006, %v4998
    %v5287 = vpack.c.b16 %v5007, %v4999
    %v5288 = vpack.c.b16 %v5008, %v5000
    %v5289 = vpack.c.b16 %v5009, %v5001
    %v5290 = vpack.c.b16 %v5018, %v5010
    %v5291 = vpack.c.b16 %v5019, %v5011
    %v5292 = vpack.c.b16 %v5020, %v5012
    %v5293 = vpack.c.b16 %v5021, %v5013
    %v5294 = vpack.c.b16 %v5022, %v5014
    %v5295 = vpack.c.b16 %v5023, %v5015
    %v5296 = vpack.c.b16 %v5024, %v5016
    %v5297 = vpack.c.b16 %v5025, %v5017
    %v5298 = vpack.c.b16 %v5034, %v5026
    %v5299 = vpack.c.b16 %v5035, %v5027
    %v5300 = vpack.c.b16 %v5036, %v5028
    %v5301 = vpack.c.b16 %v5037, %v5029
    %v5302 = vpack.c.b16 %v5038, %v5030
    %v5303 = vpack.c.b16 %v5039, %v5031
    %v5304 = vpack.c.b16 %v5040, %v5032
    %v5305 = vpack.c.b16 %v5041, %v5033
    %v5306 = vpack.c.b16 %v5050, %v5042
    %v5307 = vpack.c.b16 %v5051, %v5043
    %v5308 = vpack.c.b16 %v5052, %v5044
    %v5309 = vpack.c.b16 %v5053, %v5045
    %v5310 = vpack.c.b16 %v5054, %v5046
    %v5311 = vpack.c.b16 %v5055, %v5047
    %v5312 = vpack.c.b16 %v5056, %v5048
    %v5313 = vpack.c.b16 %v5057, %v5049
    %5570 = vmatprep.subr.bf16.mxu0 %v5115
    %5571 = vmatpush1.bf16.msra.mxu0 %v5114
    %5572 = vmatprep.subr.bf16.mxu0 %v5107
    %5573 = vmatpush1.bf16.msra.mxu0 %v5106
    %5574 = vmatprep.subr.bf16.mxu0 %v5099
    %5575 = vmatpush1.bf16.msra.mxu0 %v5098
    %5576 = vmatprep.subr.bf16.mxu0 %v5091
    %5577 = vmatpush1.bf16.msra.mxu0 %v5090
    %5578 = vmatprep.subr.bf16.mxu0 %v5083
    %5579 = vmatpush1.bf16.msra.mxu0 %v5082
    %5580 = vmatprep.subr.bf16.mxu0 %v5075
    %5581 = vmatpush1.bf16.msra.mxu0 %v5074
    %5582 = vmatprep.subr.bf16.mxu0 %v5067
    %5583 = vmatpush1.bf16.msra.mxu0 %v5066
    %5584 = vmatprep.subr.bf16.mxu0 %v5059
    %5585 = vmatpush1.bf16.msra.mxu0 %v5058
    %5586 = vmatprep.subr.bf16.mxu0 %v5179
    %5587 = vmatpush2.bf16.msra.mxu0 %v5178
    %5588 = vmatprep.subr.bf16.mxu0 %v5171
    %5589 = vmatpush2.bf16.msra.mxu0 %v5170
    %5590 = vmatprep.subr.bf16.mxu0 %v5163
    %5591 = vmatpush2.bf16.msra.mxu0 %v5162
    %5592 = vmatprep.subr.bf16.mxu0 %v5155
    %5593 = vmatpush2.bf16.msra.mxu0 %v5154
    %5594 = vmatprep.subr.bf16.mxu0 %v5147
    %5595 = vmatpush2.bf16.msra.mxu0 %v5146
    %5596 = vmatprep.subr.bf16.mxu0 %v5139
    %5597 = vmatpush2.bf16.msra.mxu0 %v5138
    %5598 = vmatprep.subr.bf16.mxu0 %v5131
    %5599 = vmatpush2.bf16.msra.mxu0 %v5130
    %5600 = vmatprep.subr.bf16.mxu0 %v5123
    %5601 = vmatpush2.bf16.msra.mxu0 %v5122
    %5602 = vmatprep.mubr.bf16.mxu0 %v3989
    %5603 = vmatmul.mubr.bf16.gmra.mxu0 %v3988
    %v5604 = vpop.f32.mrf.mxu0
    %v5605 = vadd.f32 %v4253, %v5604
    %v5606 = vpop.f32.mrf.mxu0
    %v5607 = vadd.f32 %v4257, %v5606
    %v5608 = vpop.f32.mrf.mxu0
    %v5609 = vpop.f32.mrf.mxu0
    %5610 = vdwg.mxu0
    %5611 = vmatprep.subr.bf16.mxu0 %v5243
    %5612 = vmatpush1.bf16.msra.mxu0 %v5242
    %5613 = vmatprep.subr.bf16.mxu0 %v5235
    %5614 = vmatpush1.bf16.msra.mxu0 %v5234
    %5615 = vmatprep.subr.bf16.mxu0 %v5227
    %5616 = vmatpush1.bf16.msra.mxu0 %v5226
    %5617 = vmatprep.subr.bf16.mxu0 %v5219
    %5618 = vmatpush1.bf16.msra.mxu0 %v5218
    %5619 = vmatprep.subr.bf16.mxu0 %v5211
    %5620 = vmatpush1.bf16.msra.mxu0 %v5210
    %5621 = vmatprep.subr.bf16.mxu0 %v5203
    %5622 = vmatpush1.bf16.msra.mxu0 %v5202
    %5623 = vmatprep.subr.bf16.mxu0 %v5195
    %5624 = vmatpush1.bf16.msra.mxu0 %v5194
    %5625 = vmatprep.subr.bf16.mxu0 %v5187
    %5626 = vmatpush1.bf16.msra.mxu0 %v5186
    %5627 = vmatprep.subr.bf16.mxu0 %v5307
    %5628 = vmatpush2.bf16.msra.mxu0 %v5306
    %5629 = vmatprep.subr.bf16.mxu0 %v5299
    %5630 = vmatpush2.bf16.msra.mxu0 %v5298
    %5631 = vmatprep.subr.bf16.mxu0 %v5291
    %5632 = vmatpush2.bf16.msra.mxu0 %v5290
    %5633 = vmatprep.subr.bf16.mxu0 %v5283
    %5634 = vmatpush2.bf16.msra.mxu0 %v5282
    %5635 = vmatprep.subr.bf16.mxu0 %v5275
    %5636 = vmatpush2.bf16.msra.mxu0 %v5274
    %5637 = vmatprep.subr.bf16.mxu0 %v5267
    %5638 = vmatpush2.bf16.msra.mxu0 %v5266
    %5639 = vmatprep.subr.bf16.mxu0 %v5259
    %5640 = vmatpush2.bf16.msra.mxu0 %v5258
    %5641 = vmatprep.subr.bf16.mxu0 %v5251
    %5642 = vmatpush2.bf16.msra.mxu0 %v5250
    %5643 = vmatprep.mubr.bf16.mxu0 %v3991
    %5644 = vmatmul.mubr.bf16.gmra.mxu0 %v3990
    %v5645 = vpop.f32.mrf.mxu0
    %v5646 = vadd.f32 %v5605, %v5645
    %v5647 = vpop.f32.mrf.mxu0
    %v5648 = vadd.f32 %v5607, %v5647
    %v5649 = vpop.f32.mrf.mxu0
    %v5650 = vpop.f32.mrf.mxu0
    %5651 = vdwg.mxu0
    %5652 = vmatprep.subr.bf16.mxu0 %v5117
    %5653 = vmatpush1.bf16.msra.mxu0 %v5116
    %5654 = vmatprep.subr.bf16.mxu0 %v5109
    %5655 = vmatpush1.bf16.msra.mxu0 %v5108
    %5656 = vmatprep.subr.bf16.mxu0 %v5101
    %5657 = vmatpush1.bf16.msra.mxu0 %v5100
    %5658 = vmatprep.subr.bf16.mxu0 %v5093
    %5659 = vmatpush1.bf16.msra.mxu0 %v5092
    %5660 = vmatprep.subr.bf16.mxu0 %v5085
    %5661 = vmatpush1.bf16.msra.mxu0 %v5084
    %5662 = vmatprep.subr.bf16.mxu0 %v5077
    %5663 = vmatpush1.bf16.msra.mxu0 %v5076
    %5664 = vmatprep.subr.bf16.mxu0 %v5069
    %5665 = vmatpush1.bf16.msra.mxu0 %v5068
    %5666 = vmatprep.subr.bf16.mxu0 %v5061
    %5667 = vmatpush1.bf16.msra.mxu0 %v5060
    %5668 = vmatprep.subr.bf16.mxu0 %v5181
    %5669 = vmatpush2.bf16.msra.mxu0 %v5180
    %5670 = vmatprep.subr.bf16.mxu0 %v5173
    %5671 = vmatpush2.bf16.msra.mxu0 %v5172
    %5672 = vmatprep.subr.bf16.mxu0 %v5165
    %5673 = vmatpush2.bf16.msra.mxu0 %v5164
    %5674 = vmatprep.subr.bf16.mxu0 %v5157
    %5675 = vmatpush2.bf16.msra.mxu0 %v5156
    %5676 = vmatprep.subr.bf16.mxu0 %v5149
    %5677 = vmatpush2.bf16.msra.mxu0 %v5148
    %5678 = vmatprep.subr.bf16.mxu0 %v5141
    %5679 = vmatpush2.bf16.msra.mxu0 %v5140
    %5680 = vmatprep.subr.bf16.mxu0 %v5133
    %5681 = vmatpush2.bf16.msra.mxu0 %v5132
    %5682 = vmatprep.subr.bf16.mxu0 %v5125
    %5683 = vmatpush2.bf16.msra.mxu0 %v5124
    %5684 = vmatprep.mubr.bf16.mxu0 %v3989
    %5685 = vmatmul.mubr.bf16.gmra.mxu0 %v3988
    %v5686 = vpop.f32.mrf.mxu0
    %v5687 = vadd.f32 %v4261, %v5686
    %v5688 = vpop.f32.mrf.mxu0
    %v5689 = vadd.f32 %v4265, %v5688
    %v5690 = vpop.f32.mrf.mxu0
    %v5691 = vpop.f32.mrf.mxu0
    %5692 = vdwg.mxu0
    %5693 = vmatprep.subr.bf16.mxu0 %v5245
    %5694 = vmatpush1.bf16.msra.mxu0 %v5244
    %5695 = vmatprep.subr.bf16.mxu0 %v5237
    %5696 = vmatpush1.bf16.msra.mxu0 %v5236
    %5697 = vmatprep.subr.bf16.mxu0 %v5229
    %5698 = vmatpush1.bf16.msra.mxu0 %v5228
    %5699 = vmatprep.subr.bf16.mxu0 %v5221
    %5700 = vmatpush1.bf16.msra.mxu0 %v5220
    %5701 = vmatprep.subr.bf16.mxu0 %v5213
    %5702 = vmatpush1.bf16.msra.mxu0 %v5212
    %5703 = vmatprep.subr.bf16.mxu0 %v5205
    %5704 = vmatpush1.bf16.msra.mxu0 %v5204
    %5705 = vmatprep.subr.bf16.mxu0 %v5197
    %5706 = vmatpush1.bf16.msra.mxu0 %v5196
    %5707 = vmatprep.subr.bf16.mxu0 %v5189
    %5708 = vmatpush1.bf16.msra.mxu0 %v5188
    %5709 = vmatprep.subr.bf16.mxu0 %v5309
    %5710 = vmatpush2.bf16.msra.mxu0 %v5308
    %5711 = vmatprep.subr.bf16.mxu0 %v5301
    %5712 = vmatpush2.bf16.msra.mxu0 %v5300
    %5713 = vmatprep.subr.bf16.mxu0 %v5293
    %5714 = vmatpush2.bf16.msra.mxu0 %v5292
    %5715 = vmatprep.subr.bf16.mxu0 %v5285
    %5716 = vmatpush2.bf16.msra.mxu0 %v5284
    %5717 = vmatprep.subr.bf16.mxu0 %v5277
    %5718 = vmatpush2.bf16.msra.mxu0 %v5276
    %5719 = vmatprep.subr.bf16.mxu0 %v5269
    %5720 = vmatpush2.bf16.msra.mxu0 %v5268
    %5721 = vmatprep.subr.bf16.mxu0 %v5261
    %5722 = vmatpush2.bf16.msra.mxu0 %v5260
    %5723 = vmatprep.subr.bf16.mxu0 %v5253
    %5724 = vmatpush2.bf16.msra.mxu0 %v5252
    %5725 = vmatprep.mubr.bf16.mxu0 %v3991
    %5726 = vmatmul.mubr.bf16.gmra.mxu0 %v3990
    %v5727 = vpop.f32.mrf.mxu0
    %v5728 = vadd.f32 %v5687, %v5727
    %v5729 = vpop.f32.mrf.mxu0
    %v5730 = vadd.f32 %v5689, %v5729
    %v5731 = vpop.f32.mrf.mxu0
    %v5732 = vpop.f32.mrf.mxu0
    %5733 = vdwg.mxu0
    %5734 = vmatprep.subr.bf16.mxu0 %v5119
    %5735 = vmatpush1.bf16.msra.mxu0 %v5118
    %5736 = vmatprep.subr.bf16.mxu0 %v5111
    %5737 = vmatpush1.bf16.msra.mxu0 %v5110
    %5738 = vmatprep.subr.bf16.mxu0 %v5103
    %5739 = vmatpush1.bf16.msra.mxu0 %v5102
    %5740 = vmatprep.subr.bf16.mxu0 %v5095
    %5741 = vmatpush1.bf16.msra.mxu0 %v5094
    %5742 = vmatprep.subr.bf16.mxu0 %v5087
    %5743 = vmatpush1.bf16.msra.mxu0 %v5086
    %5744 = vmatprep.subr.bf16.mxu0 %v5079
    %5745 = vmatpush1.bf16.msra.mxu0 %v5078
    %5746 = vmatprep.subr.bf16.mxu0 %v5071
    %5747 = vmatpush1.bf16.msra.mxu0 %v5070
    %5748 = vmatprep.subr.bf16.mxu0 %v5063
    %5749 = vmatpush1.bf16.msra.mxu0 %v5062
    %5750 = vmatprep.subr.bf16.mxu0 %v5183
    %5751 = vmatpush2.bf16.msra.mxu0 %v5182
    %5752 = vmatprep.subr.bf16.mxu0 %v5175
    %5753 = vmatpush2.bf16.msra.mxu0 %v5174
    %5754 = vmatprep.subr.bf16.mxu0 %v5167
    %5755 = vmatpush2.bf16.msra.mxu0 %v5166
    %5756 = vmatprep.subr.bf16.mxu0 %v5159
    %5757 = vmatpush2.bf16.msra.mxu0 %v5158
    %5758 = vmatprep.subr.bf16.mxu0 %v5151
    %5759 = vmatpush2.bf16.msra.mxu0 %v5150
    %5760 = vmatprep.subr.bf16.mxu0 %v5143
    %5761 = vmatpush2.bf16.msra.mxu0 %v5142
    %5762 = vmatprep.subr.bf16.mxu0 %v5135
    %5763 = vmatpush2.bf16.msra.mxu0 %v5134
    %5764 = vmatprep.subr.bf16.mxu0 %v5127
    %5765 = vmatpush2.bf16.msra.mxu0 %v5126
    %5766 = vmatprep.mubr.bf16.mxu0 %v3989
    %5767 = vmatmul.mubr.bf16.gmra.mxu0 %v3988
    %v5768 = vpop.f32.mrf.mxu0
    %v5769 = vadd.f32 %v4269, %v5768
    %v5770 = vpop.f32.mrf.mxu0
    %v5771 = vadd.f32 %v4273, %v5770
    %v5772 = vpop.f32.mrf.mxu0
    %v5773 = vpop.f32.mrf.mxu0
    %5774 = vdwg.mxu0
    %5775 = vmatprep.subr.bf16.mxu0 %v5247
    %5776 = vmatpush1.bf16.msra.mxu0 %v5246
    %5777 = vmatprep.subr.bf16.mxu0 %v5239
    %5778 = vmatpush1.bf16.msra.mxu0 %v5238
    %5779 = vmatprep.subr.bf16.mxu0 %v5231
    %5780 = vmatpush1.bf16.msra.mxu0 %v5230
    %5781 = vmatprep.subr.bf16.mxu0 %v5223
    %5782 = vmatpush1.bf16.msra.mxu0 %v5222
    %5783 = vmatprep.subr.bf16.mxu0 %v5215
    %5784 = vmatpush1.bf16.msra.mxu0 %v5214
    %5785 = vmatprep.subr.bf16.mxu0 %v5207
    %5786 = vmatpush1.bf16.msra.mxu0 %v5206
    %5787 = vmatprep.subr.bf16.mxu0 %v5199
    %5788 = vmatpush1.bf16.msra.mxu0 %v5198
    %5789 = vmatprep.subr.bf16.mxu0 %v5191
    %5790 = vmatpush1.bf16.msra.mxu0 %v5190
    %5791 = vmatprep.subr.bf16.mxu0 %v5311
    %5792 = vmatpush2.bf16.msra.mxu0 %v5310
    %5793 = vmatprep.subr.bf16.mxu0 %v5303
    %5794 = vmatpush2.bf16.msra.mxu0 %v5302
    %5795 = vmatprep.subr.bf16.mxu0 %v5295
    %5796 = vmatpush2.bf16.msra.mxu0 %v5294
    %5797 = vmatprep.subr.bf16.mxu0 %v5287
    %5798 = vmatpush2.bf16.msra.mxu0 %v5286
    %5799 = vmatprep.subr.bf16.mxu0 %v5279
    %5800 = vmatpush2.bf16.msra.mxu0 %v5278
    %5801 = vmatprep.subr.bf16.mxu0 %v5271
    %5802 = vmatpush2.bf16.msra.mxu0 %v5270
    %5803 = vmatprep.subr.bf16.mxu0 %v5263
    %5804 = vmatpush2.bf16.msra.mxu0 %v5262
    %5805 = vmatprep.subr.bf16.mxu0 %v5255
    %5806 = vmatpush2.bf16.msra.mxu0 %v5254
    %5807 = vmatprep.mubr.bf16.mxu0 %v3991
    %5808 = vmatmul.mubr.bf16.gmra.mxu0 %v3990
    %v5809 = vpop.f32.mrf.mxu0
    %v5810 = vadd.f32 %v5769, %v5809
    %v5811 = vpop.f32.mrf.mxu0
    %v5812 = vadd.f32 %v5771, %v5811
    %v5813 = vpop.f32.mrf.mxu0
    %v5814 = vpop.f32.mrf.mxu0
    %5815 = vdwg.mxu0
    %5816 = vmatprep.subr.bf16.mxu0 %v5121
    %5817 = vmatpush1.bf16.msra.mxu0 %v5120
    %5818 = vmatprep.subr.bf16.mxu0 %v5113
    %5819 = vmatpush1.bf16.msra.mxu0 %v5112
    %5820 = vmatprep.subr.bf16.mxu0 %v5105
    %5821 = vmatpush1.bf16.msra.mxu0 %v5104
    %5822 = vmatprep.subr.bf16.mxu0 %v5097
    %5823 = vmatpush1.bf16.msra.mxu0 %v5096
    %5824 = vmatprep.subr.bf16.mxu0 %v5089
    %5825 = vmatpush1.bf16.msra.mxu0 %v5088
    %5826 = vmatprep.subr.bf16.mxu0 %v5081
    %5827 = vmatpush1.bf16.msra.mxu0 %v5080
    %5828 = vmatprep.subr.bf16.mxu0 %v5073
    %5829 = vmatpush1.bf16.msra.mxu0 %v5072
    %5830 = vmatprep.subr.bf16.mxu0 %v5065
    %5831 = vmatpush1.bf16.msra.mxu0 %v5064
    %5832 = vmatprep.subr.bf16.mxu0 %v5185
    %5833 = vmatpush2.bf16.msra.mxu0 %v5184
    %5834 = vmatprep.subr.bf16.mxu0 %v5177
    %5835 = vmatpush2.bf16.msra.mxu0 %v5176
    %5836 = vmatprep.subr.bf16.mxu0 %v5169
    %5837 = vmatpush2.bf16.msra.mxu0 %v5168
    %5838 = vmatprep.subr.bf16.mxu0 %v5161
    %5839 = vmatpush2.bf16.msra.mxu0 %v5160
    %5840 = vmatprep.subr.bf16.mxu0 %v5153
    %5841 = vmatpush2.bf16.msra.mxu0 %v5152
    %5842 = vmatprep.subr.bf16.mxu0 %v5145
    %5843 = vmatpush2.bf16.msra.mxu0 %v5144
    %5844 = vmatprep.subr.bf16.mxu0 %v5137
    %5845 = vmatpush2.bf16.msra.mxu0 %v5136
    %5846 = vmatprep.subr.bf16.mxu0 %v5129
    %5847 = vmatpush2.bf16.msra.mxu0 %v5128
    %5848 = vmatprep.mubr.bf16.mxu0 %v3989
    %5849 = vmatmul.mubr.bf16.gmra.mxu0 %v3988
    %v5850 = vpop.f32.mrf.mxu0
    %v5851 = vadd.f32 %v4277, %v5850
    %v5852 = vpop.f32.mrf.mxu0
    %v5853 = vadd.f32 %v4281, %v5852
    %v5854 = vpop.f32.mrf.mxu0
    %v5855 = vpop.f32.mrf.mxu0
    %5856 = vdwg.mxu0
    %5857 = vmatprep.subr.bf16.mxu0 %v5249
    %5858 = vmatpush1.bf16.msra.mxu0 %v5248
    %5859 = vmatprep.subr.bf16.mxu0 %v5241
    %5860 = vmatpush1.bf16.msra.mxu0 %v5240
    %5861 = vmatprep.subr.bf16.mxu0 %v5233
    %5862 = vmatpush1.bf16.msra.mxu0 %v5232
    %5863 = vmatprep.subr.bf16.mxu0 %v5225
    %5864 = vmatpush1.bf16.msra.mxu0 %v5224
    %5865 = vmatprep.subr.bf16.mxu0 %v5217
    %5866 = vmatpush1.bf16.msra.mxu0 %v5216
    %5867 = vmatprep.subr.bf16.mxu0 %v5209
    %5868 = vmatpush1.bf16.msra.mxu0 %v5208
    %5869 = vmatprep.subr.bf16.mxu0 %v5201
    %5870 = vmatpush1.bf16.msra.mxu0 %v5200
    %5871 = vmatprep.subr.bf16.mxu0 %v5193
    %5872 = vmatpush1.bf16.msra.mxu0 %v5192
    %5873 = vmatprep.subr.bf16.mxu0 %v5313
    %5874 = vmatpush2.bf16.msra.mxu0 %v5312
    %5875 = vmatprep.subr.bf16.mxu0 %v5305
    %5876 = vmatpush2.bf16.msra.mxu0 %v5304
    %5877 = vmatprep.subr.bf16.mxu0 %v5297
    %5878 = vmatpush2.bf16.msra.mxu0 %v5296
    %5879 = vmatprep.subr.bf16.mxu0 %v5289
    %5880 = vmatpush2.bf16.msra.mxu0 %v5288
    %5881 = vmatprep.subr.bf16.mxu0 %v5281
    %5882 = vmatpush2.bf16.msra.mxu0 %v5280
    %5883 = vmatprep.subr.bf16.mxu0 %v5273
    %5884 = vmatpush2.bf16.msra.mxu0 %v5272
    %5885 = vmatprep.subr.bf16.mxu0 %v5265
    %5886 = vmatpush2.bf16.msra.mxu0 %v5264
    %5887 = vmatprep.subr.bf16.mxu0 %v5257
    %5888 = vmatpush2.bf16.msra.mxu0 %v5256
    %5889 = vmatprep.mubr.bf16.mxu0 %v3991
    %5890 = vmatmul.mubr.bf16.gmra.mxu0 %v3990
    %v5891 = vpop.f32.mrf.mxu0
    %v5892 = vadd.f32 %v5851, %v5891
    %v5893 = vpop.f32.mrf.mxu0
    %v5894 = vadd.f32 %v5853, %v5893
    %v5895 = vpop.f32.mrf.mxu0
    %v5896 = vpop.f32.mrf.mxu0
    %5897 = vdwg.mxu0
    %v5898 = vmax.f32 %v5646, 0.0
    %v5899 = vmax.f32 %v5648, 0.0
    %v5900 = vmax.f32 %v5728, 0.0
    %v5901 = vmax.f32 %v5730, 0.0
    %v5902 = vmax.f32 %v5810, 0.0
    %v5903 = vmax.f32 %v5812, 0.0
    %v5904 = vmax.f32 %v5892, 0.0
    %v5905 = vmax.f32 %v5894, 0.0
    %v5906 = vpack.c.bf16 %v5898, %v5898
    %v5907 = vpack.c.bf16 %v5899, %v5899
    %v5908 = vpack.c.bf16 %v5900, %v5900
    %v5909 = vpack.c.bf16 %v5901, %v5901
    %v5910 = vpack.c.bf16 %v5902, %v5902
    %v5911 = vpack.c.bf16 %v5903, %v5903
    %v5912 = vpack.c.bf16 %v5904, %v5904
    %v5913 = vpack.c.bf16 %v5905, %v5905
    %v5914 = vld [vmem:[#allocation10] sm:$0xff]
    %v5915 = vld [vmem:[#allocation10 + $0x8] sm:$0xff]
    %v5916 = vld [vmem:[#allocation10 + $0x10] sm:$0xff]
    %v5917 = vld [vmem:[#allocation10 + $0x18] sm:$0xff]
    %v5918 = vld [vmem:[#allocation10 + $0x20] sm:$0xff]
    %v5919 = vld [vmem:[#allocation10 + $0x28] sm:$0xff]
    %v5920 = vld [vmem:[#allocation10 + $0x30] sm:$0xff]
    %v5921 = vld [vmem:[#allocation10 + $0x38] sm:$0xff]
    %v5922 = vld [vmem:[#allocation10 + $0x40] sm:$0xff]
    %v5923 = vld [vmem:[#allocation10 + $0x48] sm:$0xff]
    %v5924 = vld [vmem:[#allocation10 + $0x50] sm:$0xff]
    %v5925 = vld [vmem:[#allocation10 + $0x58] sm:$0xff]
    %v5926 = vld [vmem:[#allocation10 + $0x60] sm:$0xff]
    %v5927 = vld [vmem:[#allocation10 + $0x68] sm:$0xff]
    %v5928 = vld [vmem:[#allocation10 + $0x70] sm:$0xff]
    %v5929 = vld [vmem:[#allocation10 + $0x78] sm:$0xff]
    %v5930 = vld [vmem:[#allocation10 + $0x80] sm:$0xff]
    %v5931 = vld [vmem:[#allocation10 + $0x88] sm:$0xff]
    %v5932 = vld [vmem:[#allocation10 + $0x90] sm:$0xff]
    %v5933 = vld [vmem:[#allocation10 + $0x98] sm:$0xff]
    %v5934 = vld [vmem:[#allocation10 + $0xa0] sm:$0xff]
    %v5935 = vld [vmem:[#allocation10 + $0xa8] sm:$0xff]
    %v5936 = vld [vmem:[#allocation10 + $0xb0] sm:$0xff]
    %v5937 = vld [vmem:[#allocation10 + $0xb8] sm:$0xff]
    %v5938 = vld [vmem:[#allocation10 + $0xc0] sm:$0xff]
    %v5939 = vld [vmem:[#allocation10 + $0xc8] sm:$0xff]
    %v5940 = vld [vmem:[#allocation10 + $0xd0] sm:$0xff]
    %v5941 = vld [vmem:[#allocation10 + $0xd8] sm:$0xff]
    %v5942 = vld [vmem:[#allocation10 + $0xe0] sm:$0xff]
    %v5943 = vld [vmem:[#allocation10 + $0xe8] sm:$0xff]
    %v5944 = vld [vmem:[#allocation10 + $0xf0] sm:$0xff]
    %v5945 = vld [vmem:[#allocation10 + $0xf8] sm:$0xff]
    %v5946 = vld [vmem:[#allocation10 + $0x100] sm:$0xff]
    %v5947 = vld [vmem:[#allocation10 + $0x108] sm:$0xff]
    %v5948 = vld [vmem:[#allocation10 + $0x110] sm:$0xff]
    %v5949 = vld [vmem:[#allocation10 + $0x118] sm:$0xff]
    %v5950 = vld [vmem:[#allocation10 + $0x120] sm:$0xff]
    %v5951 = vld [vmem:[#allocation10 + $0x128] sm:$0xff]
    %v5952 = vld [vmem:[#allocation10 + $0x130] sm:$0xff]
    %v5953 = vld [vmem:[#allocation10 + $0x138] sm:$0xff]
    %v5954 = vld [vmem:[#allocation10 + $0x140] sm:$0xff]
    %v5955 = vld [vmem:[#allocation10 + $0x148] sm:$0xff]
    %v5956 = vld [vmem:[#allocation10 + $0x150] sm:$0xff]
    %v5957 = vld [vmem:[#allocation10 + $0x158] sm:$0xff]
    %v5958 = vld [vmem:[#allocation10 + $0x160] sm:$0xff]
    %v5959 = vld [vmem:[#allocation10 + $0x168] sm:$0xff]
    %v5960 = vld [vmem:[#allocation10 + $0x170] sm:$0xff]
    %v5961 = vld [vmem:[#allocation10 + $0x178] sm:$0xff]
    %v5962 = vld [vmem:[#allocation10 + $0x180] sm:$0xff]
    %v5963 = vld [vmem:[#allocation10 + $0x188] sm:$0xff]
    %v5964 = vld [vmem:[#allocation10 + $0x190] sm:$0xff]
    %v5965 = vld [vmem:[#allocation10 + $0x198] sm:$0xff]
    %v5966 = vld [vmem:[#allocation10 + $0x1a0] sm:$0xff]
    %v5967 = vld [vmem:[#allocation10 + $0x1a8] sm:$0xff]
    %v5968 = vld [vmem:[#allocation10 + $0x1b0] sm:$0xff]
    %v5969 = vld [vmem:[#allocation10 + $0x1b8] sm:$0xff]
    %v5970 = vld [vmem:[#allocation10 + $0x1c0] sm:$0xff]
    %v5971 = vld [vmem:[#allocation10 + $0x1c8] sm:$0xff]
    %v5972 = vld [vmem:[#allocation10 + $0x1d0] sm:$0xff]
    %v5973 = vld [vmem:[#allocation10 + $0x1d8] sm:$0xff]
    %v5974 = vld [vmem:[#allocation10 + $0x1e0] sm:$0xff]
    %v5975 = vld [vmem:[#allocation10 + $0x1e8] sm:$0xff]
    %v5976 = vld [vmem:[#allocation10 + $0x1f0] sm:$0xff]
    %v5977 = vld [vmem:[#allocation10 + $0x1f8] sm:$0xff]
    %v5978 = vld [vmem:[#allocation10 + $0x200] sm:$0xff]
    %v5979 = vld [vmem:[#allocation10 + $0x208] sm:$0xff]
    %v5980 = vld [vmem:[#allocation10 + $0x210] sm:$0xff]
    %v5981 = vld [vmem:[#allocation10 + $0x218] sm:$0xff]
    %v5982 = vld [vmem:[#allocation10 + $0x220] sm:$0xff]
    %v5983 = vld [vmem:[#allocation10 + $0x228] sm:$0xff]
    %v5984 = vld [vmem:[#allocation10 + $0x230] sm:$0xff]
    %v5985 = vld [vmem:[#allocation10 + $0x238] sm:$0xff]
    %v5986 = vld [vmem:[#allocation10 + $0x240] sm:$0xff]
    %v5987 = vld [vmem:[#allocation10 + $0x248] sm:$0xff]
    %v5988 = vld [vmem:[#allocation10 + $0x250] sm:$0xff]
    %v5989 = vld [vmem:[#allocation10 + $0x258] sm:$0xff]
    %v5990 = vld [vmem:[#allocation10 + $0x260] sm:$0xff]
    %v5991 = vld [vmem:[#allocation10 + $0x268] sm:$0xff]
    %v5992 = vld [vmem:[#allocation10 + $0x270] sm:$0xff]
    %v5993 = vld [vmem:[#allocation10 + $0x278] sm:$0xff]
    %v5994 = vld [vmem:[#allocation10 + $0x280] sm:$0xff]
    %v5995 = vld [vmem:[#allocation10 + $0x288] sm:$0xff]
    %v5996 = vld [vmem:[#allocation10 + $0x290] sm:$0xff]
    %v5997 = vld [vmem:[#allocation10 + $0x298] sm:$0xff]
    %v5998 = vld [vmem:[#allocation10 + $0x2a0] sm:$0xff]
    %v5999 = vld [vmem:[#allocation10 + $0x2a8] sm:$0xff]
    %v6000 = vld [vmem:[#allocation10 + $0x2b0] sm:$0xff]
    %v6001 = vld [vmem:[#allocation10 + $0x2b8] sm:$0xff]
    %v6002 = vld [vmem:[#allocation10 + $0x2c0] sm:$0xff]
    %v6003 = vld [vmem:[#allocation10 + $0x2c8] sm:$0xff]
    %v6004 = vld [vmem:[#allocation10 + $0x2d0] sm:$0xff]
    %v6005 = vld [vmem:[#allocation10 + $0x2d8] sm:$0xff]
    %v6006 = vld [vmem:[#allocation10 + $0x2e0] sm:$0xff]
    %v6007 = vld [vmem:[#allocation10 + $0x2e8] sm:$0xff]
    %v6008 = vld [vmem:[#allocation10 + $0x2f0] sm:$0xff]
    %v6009 = vld [vmem:[#allocation10 + $0x2f8] sm:$0xff]
    %v6010 = vld [vmem:[#allocation10 + $0x300] sm:$0xff]
    %v6011 = vld [vmem:[#allocation10 + $0x308] sm:$0xff]
    %v6012 = vld [vmem:[#allocation10 + $0x310] sm:$0xff]
    %v6013 = vld [vmem:[#allocation10 + $0x318] sm:$0xff]
    %v6014 = vld [vmem:[#allocation10 + $0x320] sm:$0xff]
    %v6015 = vld [vmem:[#allocation10 + $0x328] sm:$0xff]
    %v6016 = vld [vmem:[#allocation10 + $0x330] sm:$0xff]
    %v6017 = vld [vmem:[#allocation10 + $0x338] sm:$0xff]
    %v6018 = vld [vmem:[#allocation10 + $0x340] sm:$0xff]
    %v6019 = vld [vmem:[#allocation10 + $0x348] sm:$0xff]
    %v6020 = vld [vmem:[#allocation10 + $0x350] sm:$0xff]
    %v6021 = vld [vmem:[#allocation10 + $0x358] sm:$0xff]
    %v6022 = vld [vmem:[#allocation10 + $0x360] sm:$0xff]
    %v6023 = vld [vmem:[#allocation10 + $0x368] sm:$0xff]
    %v6024 = vld [vmem:[#allocation10 + $0x370] sm:$0xff]
    %v6025 = vld [vmem:[#allocation10 + $0x378] sm:$0xff]
    %v6026 = vld [vmem:[#allocation10 + $0x380] sm:$0xff]
    %v6027 = vld [vmem:[#allocation10 + $0x388] sm:$0xff]
    %v6028 = vld [vmem:[#allocation10 + $0x390] sm:$0xff]
    %v6029 = vld [vmem:[#allocation10 + $0x398] sm:$0xff]
    %v6030 = vld [vmem:[#allocation10 + $0x3a0] sm:$0xff]
    %v6031 = vld [vmem:[#allocation10 + $0x3a8] sm:$0xff]
    %v6032 = vld [vmem:[#allocation10 + $0x3b0] sm:$0xff]
    %v6033 = vld [vmem:[#allocation10 + $0x3b8] sm:$0xff]
    %v6034 = vld [vmem:[#allocation10 + $0x3c0] sm:$0xff]
    %v6035 = vld [vmem:[#allocation10 + $0x3c8] sm:$0xff]
    %v6036 = vld [vmem:[#allocation10 + $0x3d0] sm:$0xff]
    %v6037 = vld [vmem:[#allocation10 + $0x3d8] sm:$0xff]
    %v6038 = vld [vmem:[#allocation10 + $0x3e0] sm:$0xff]
    %v6039 = vld [vmem:[#allocation10 + $0x3e8] sm:$0xff]
    %v6040 = vld [vmem:[#allocation10 + $0x3f0] sm:$0xff]
    %v6041 = vld [vmem:[#allocation10 + $0x3f8] sm:$0xff]
    %v6042 = vld [vmem:[%s12] sm:$0x3]
    %v6044 = vlaneseq
    %v6045 = vshrl.u32 %v6044, 7
    %v6046 = vsub.s32 0, %v6045
    %v6047 = vrot.slane %v6042, %v6046
    %v6048 = vlaneseq
    %v6049 = vshrl.u32 %v6048, 7
    %v6050 = vsub.s32 1, %v6049
    %v6051 = vrot.slane %v6042, %v6050
    %v6182 = vunpack.c.l.b16 %v5914
    %v6183 = vunpack.c.h.b16 %v5914
    %v6184 = vunpack.c.l.b16 %v5915
    %v6185 = vunpack.c.h.b16 %v5915
    %v6186 = vunpack.c.l.b16 %v5916
    %v6187 = vunpack.c.h.b16 %v5916
    %v6188 = vunpack.c.l.b16 %v5917
    %v6189 = vunpack.c.h.b16 %v5917
    %v6190 = vunpack.c.l.b16 %v5918
    %v6191 = vunpack.c.h.b16 %v5918
    %v6192 = vunpack.c.l.b16 %v5919
    %v6193 = vunpack.c.h.b16 %v5919
    %v6194 = vunpack.c.l.b16 %v5920
    %v6195 = vunpack.c.h.b16 %v5920
    %v6196 = vunpack.c.l.b16 %v5921
    %v6197 = vunpack.c.h.b16 %v5921
    %v6198 = vunpack.c.l.b16 %v5922
    %v6199 = vunpack.c.h.b16 %v5922
    %v6200 = vunpack.c.l.b16 %v5923
    %v6201 = vunpack.c.h.b16 %v5923
    %v6202 = vunpack.c.l.b16 %v5924
    %v6203 = vunpack.c.h.b16 %v5924
    %v6204 = vunpack.c.l.b16 %v5925
    %v6205 = vunpack.c.h.b16 %v5925
    %v6206 = vunpack.c.l.b16 %v5926
    %v6207 = vunpack.c.h.b16 %v5926
    %v6208 = vunpack.c.l.b16 %v5927
    %v6209 = vunpack.c.h.b16 %v5927
    %v6210 = vunpack.c.l.b16 %v5928
    %v6211 = vunpack.c.h.b16 %v5928
    %v6212 = vunpack.c.l.b16 %v5929
    %v6213 = vunpack.c.h.b16 %v5929
    %v6214 = vunpack.c.l.b16 %v5930
    %v6215 = vunpack.c.h.b16 %v5930
    %v6216 = vunpack.c.l.b16 %v5931
    %v6217 = vunpack.c.h.b16 %v5931
    %v6218 = vunpack.c.l.b16 %v5932
    %v6219 = vunpack.c.h.b16 %v5932
    %v6220 = vunpack.c.l.b16 %v5933
    %v6221 = vunpack.c.h.b16 %v5933
    %v6222 = vunpack.c.l.b16 %v5934
    %v6223 = vunpack.c.h.b16 %v5934
    %v6224 = vunpack.c.l.b16 %v5935
    %v6225 = vunpack.c.h.b16 %v5935
    %v6226 = vunpack.c.l.b16 %v5936
    %v6227 = vunpack.c.h.b16 %v5936
    %v6228 = vunpack.c.l.b16 %v5937
    %v6229 = vunpack.c.h.b16 %v5937
    %v6230 = vunpack.c.l.b16 %v5938
    %v6231 = vunpack.c.h.b16 %v5938
    %v6232 = vunpack.c.l.b16 %v5939
    %v6233 = vunpack.c.h.b16 %v5939
    %v6234 = vunpack.c.l.b16 %v5940
    %v6235 = vunpack.c.h.b16 %v5940
    %v6236 = vunpack.c.l.b16 %v5941
    %v6237 = vunpack.c.h.b16 %v5941
    %v6238 = vunpack.c.l.b16 %v5942
    %v6239 = vunpack.c.h.b16 %v5942
    %v6240 = vunpack.c.l.b16 %v5943
    %v6241 = vunpack.c.h.b16 %v5943
    %v6242 = vunpack.c.l.b16 %v5944
    %v6243 = vunpack.c.h.b16 %v5944
    %v6244 = vunpack.c.l.b16 %v5945
    %v6245 = vunpack.c.h.b16 %v5945
    %v6246 = vunpack.c.l.b16 %v5946
    %v6247 = vunpack.c.h.b16 %v5946
    %v6248 = vunpack.c.l.b16 %v5947
    %v6249 = vunpack.c.h.b16 %v5947
    %v6250 = vunpack.c.l.b16 %v5948
    %v6251 = vunpack.c.h.b16 %v5948
    %v6252 = vunpack.c.l.b16 %v5949
    %v6253 = vunpack.c.h.b16 %v5949
    %v6254 = vunpack.c.l.b16 %v5950
    %v6255 = vunpack.c.h.b16 %v5950
    %v6256 = vunpack.c.l.b16 %v5951
    %v6257 = vunpack.c.h.b16 %v5951
    %v6258 = vunpack.c.l.b16 %v5952
    %v6259 = vunpack.c.h.b16 %v5952
    %v6260 = vunpack.c.l.b16 %v5953
    %v6261 = vunpack.c.h.b16 %v5953
    %v6262 = vunpack.c.l.b16 %v5954
    %v6263 = vunpack.c.h.b16 %v5954
    %v6264 = vunpack.c.l.b16 %v5955
    %v6265 = vunpack.c.h.b16 %v5955
    %v6266 = vunpack.c.l.b16 %v5956
    %v6267 = vunpack.c.h.b16 %v5956
    %v6268 = vunpack.c.l.b16 %v5957
    %v6269 = vunpack.c.h.b16 %v5957
    %v6270 = vunpack.c.l.b16 %v5958
    %v6271 = vunpack.c.h.b16 %v5958
    %v6272 = vunpack.c.l.b16 %v5959
    %v6273 = vunpack.c.h.b16 %v5959
    %v6274 = vunpack.c.l.b16 %v5960
    %v6275 = vunpack.c.h.b16 %v5960
    %v6276 = vunpack.c.l.b16 %v5961
    %v6277 = vunpack.c.h.b16 %v5961
    %v6278 = vunpack.c.l.b16 %v5962
    %v6279 = vunpack.c.h.b16 %v5962
    %v6280 = vunpack.c.l.b16 %v5963
    %v6281 = vunpack.c.h.b16 %v5963
    %v6282 = vunpack.c.l.b16 %v5964
    %v6283 = vunpack.c.h.b16 %v5964
    %v6284 = vunpack.c.l.b16 %v5965
    %v6285 = vunpack.c.h.b16 %v5965
    %v6286 = vunpack.c.l.b16 %v5966
    %v6287 = vunpack.c.h.b16 %v5966
    %v6288 = vunpack.c.l.b16 %v5967
    %v6289 = vunpack.c.h.b16 %v5967
    %v6290 = vunpack.c.l.b16 %v5968
    %v6291 = vunpack.c.h.b16 %v5968
    %v6292 = vunpack.c.l.b16 %v5969
    %v6293 = vunpack.c.h.b16 %v5969
    %v6294 = vunpack.c.l.b16 %v5970
    %v6295 = vunpack.c.h.b16 %v5970
    %v6296 = vunpack.c.l.b16 %v5971
    %v6297 = vunpack.c.h.b16 %v5971
    %v6298 = vunpack.c.l.b16 %v5972
    %v6299 = vunpack.c.h.b16 %v5972
    %v6300 = vunpack.c.l.b16 %v5973
    %v6301 = vunpack.c.h.b16 %v5973
    %v6302 = vunpack.c.l.b16 %v5974
    %v6303 = vunpack.c.h.b16 %v5974
    %v6304 = vunpack.c.l.b16 %v5975
    %v6305 = vunpack.c.h.b16 %v5975
    %v6306 = vunpack.c.l.b16 %v5976
    %v6307 = vunpack.c.h.b16 %v5976
    %v6308 = vunpack.c.l.b16 %v5977
    %v6309 = vunpack.c.h.b16 %v5977
    %v6310 = vunpack.c.l.b16 %v5978
    %v6311 = vunpack.c.h.b16 %v5978
    %v6312 = vunpack.c.l.b16 %v5979
    %v6313 = vunpack.c.h.b16 %v5979
    %v6314 = vunpack.c.l.b16 %v5980
    %v6315 = vunpack.c.h.b16 %v5980
    %v6316 = vunpack.c.l.b16 %v5981
    %v6317 = vunpack.c.h.b16 %v5981
    %v6318 = vunpack.c.l.b16 %v5982
    %v6319 = vunpack.c.h.b16 %v5982
    %v6320 = vunpack.c.l.b16 %v5983
    %v6321 = vunpack.c.h.b16 %v5983
    %v6322 = vunpack.c.l.b16 %v5984
    %v6323 = vunpack.c.h.b16 %v5984
    %v6324 = vunpack.c.l.b16 %v5985
    %v6325 = vunpack.c.h.b16 %v5985
    %v6326 = vunpack.c.l.b16 %v5986
    %v6327 = vunpack.c.h.b16 %v5986
    %v6328 = vunpack.c.l.b16 %v5987
    %v6329 = vunpack.c.h.b16 %v5987
    %v6330 = vunpack.c.l.b16 %v5988
    %v6331 = vunpack.c.h.b16 %v5988
    %v6332 = vunpack.c.l.b16 %v5989
    %v6333 = vunpack.c.h.b16 %v5989
    %v6334 = vunpack.c.l.b16 %v5990
    %v6335 = vunpack.c.h.b16 %v5990
    %v6336 = vunpack.c.l.b16 %v5991
    %v6337 = vunpack.c.h.b16 %v5991
    %v6338 = vunpack.c.l.b16 %v5992
    %v6339 = vunpack.c.h.b16 %v5992
    %v6340 = vunpack.c.l.b16 %v5993
    %v6341 = vunpack.c.h.b16 %v5993
    %v6342 = vunpack.c.l.b16 %v5994
    %v6343 = vunpack.c.h.b16 %v5994
    %v6344 = vunpack.c.l.b16 %v5995
    %v6345 = vunpack.c.h.b16 %v5995
    %v6346 = vunpack.c.l.b16 %v5996
    %v6347 = vunpack.c.h.b16 %v5996
    %v6348 = vunpack.c.l.b16 %v5997
    %v6349 = vunpack.c.h.b16 %v5997
    %v6350 = vunpack.c.l.b16 %v5998
    %v6351 = vunpack.c.h.b16 %v5998
    %v6352 = vunpack.c.l.b16 %v5999
    %v6353 = vunpack.c.h.b16 %v5999
    %v6354 = vunpack.c.l.b16 %v6000
    %v6355 = vunpack.c.h.b16 %v6000
    %v6356 = vunpack.c.l.b16 %v6001
    %v6357 = vunpack.c.h.b16 %v6001
    %v6358 = vunpack.c.l.b16 %v6002
    %v6359 = vunpack.c.h.b16 %v6002
    %v6360 = vunpack.c.l.b16 %v6003
    %v6361 = vunpack.c.h.b16 %v6003
    %v6362 = vunpack.c.l.b16 %v6004
    %v6363 = vunpack.c.h.b16 %v6004
    %v6364 = vunpack.c.l.b16 %v6005
    %v6365 = vunpack.c.h.b16 %v6005
    %v6366 = vunpack.c.l.b16 %v6006
    %v6367 = vunpack.c.h.b16 %v6006
    %v6368 = vunpack.c.l.b16 %v6007
    %v6369 = vunpack.c.h.b16 %v6007
    %v6370 = vunpack.c.l.b16 %v6008
    %v6371 = vunpack.c.h.b16 %v6008
    %v6372 = vunpack.c.l.b16 %v6009
    %v6373 = vunpack.c.h.b16 %v6009
    %v6374 = vunpack.c.l.b16 %v6010
    %v6375 = vunpack.c.h.b16 %v6010
    %v6376 = vunpack.c.l.b16 %v6011
    %v6377 = vunpack.c.h.b16 %v6011
    %v6378 = vunpack.c.l.b16 %v6012
    %v6379 = vunpack.c.h.b16 %v6012
    %v6380 = vunpack.c.l.b16 %v6013
    %v6381 = vunpack.c.h.b16 %v6013
    %v6382 = vunpack.c.l.b16 %v6014
    %v6383 = vunpack.c.h.b16 %v6014
    %v6384 = vunpack.c.l.b16 %v6015
    %v6385 = vunpack.c.h.b16 %v6015
    %v6386 = vunpack.c.l.b16 %v6016
    %v6387 = vunpack.c.h.b16 %v6016
    %v6388 = vunpack.c.l.b16 %v6017
    %v6389 = vunpack.c.h.b16 %v6017
    %v6390 = vunpack.c.l.b16 %v6018
    %v6391 = vunpack.c.h.b16 %v6018
    %v6392 = vunpack.c.l.b16 %v6019
    %v6393 = vunpack.c.h.b16 %v6019
    %v6394 = vunpack.c.l.b16 %v6020
    %v6395 = vunpack.c.h.b16 %v6020
    %v6396 = vunpack.c.l.b16 %v6021
    %v6397 = vunpack.c.h.b16 %v6021
    %v6398 = vunpack.c.l.b16 %v6022
    %v6399 = vunpack.c.h.b16 %v6022
    %v6400 = vunpack.c.l.b16 %v6023
    %v6401 = vunpack.c.h.b16 %v6023
    %v6402 = vunpack.c.l.b16 %v6024
    %v6403 = vunpack.c.h.b16 %v6024
    %v6404 = vunpack.c.l.b16 %v6025
    %v6405 = vunpack.c.h.b16 %v6025
    %v6406 = vunpack.c.l.b16 %v6026
    %v6407 = vunpack.c.h.b16 %v6026
    %v6408 = vunpack.c.l.b16 %v6027
    %v6409 = vunpack.c.h.b16 %v6027
    %v6410 = vunpack.c.l.b16 %v6028
    %v6411 = vunpack.c.h.b16 %v6028
    %v6412 = vunpack.c.l.b16 %v6029
    %v6413 = vunpack.c.h.b16 %v6029
    %v6414 = vunpack.c.l.b16 %v6030
    %v6415 = vunpack.c.h.b16 %v6030
    %v6416 = vunpack.c.l.b16 %v6031
    %v6417 = vunpack.c.h.b16 %v6031
    %v6418 = vunpack.c.l.b16 %v6032
    %v6419 = vunpack.c.h.b16 %v6032
    %v6420 = vunpack.c.l.b16 %v6033
    %v6421 = vunpack.c.h.b16 %v6033
    %v6422 = vunpack.c.l.b16 %v6034
    %v6423 = vunpack.c.h.b16 %v6034
    %v6424 = vunpack.c.l.b16 %v6035
    %v6425 = vunpack.c.h.b16 %v6035
    %v6426 = vunpack.c.l.b16 %v6036
    %v6427 = vunpack.c.h.b16 %v6036
    %v6428 = vunpack.c.l.b16 %v6037
    %v6429 = vunpack.c.h.b16 %v6037
    %v6430 = vunpack.c.l.b16 %v6038
    %v6431 = vunpack.c.h.b16 %v6038
    %v6432 = vunpack.c.l.b16 %v6039
    %v6433 = vunpack.c.h.b16 %v6039
    %v6434 = vunpack.c.l.b16 %v6040
    %v6435 = vunpack.c.h.b16 %v6040
    %v6436 = vunpack.c.l.b16 %v6041
    %v6437 = vunpack.c.h.b16 %v6041
    %v6438 = vpack.c.b16 %v6184, %v6182
    %v6439 = vpack.c.b16 %v6185, %v6183
    %v6440 = vpack.c.b16 %v6188, %v6186
    %v6441 = vpack.c.b16 %v6189, %v6187
    %v6442 = vpack.c.b16 %v6192, %v6190
    %v6443 = vpack.c.b16 %v6193, %v6191
    %v6444 = vpack.c.b16 %v6196, %v6194
    %v6445 = vpack.c.b16 %v6197, %v6195
    %v6446 = vpack.c.b16 %v6200, %v6198
    %v6447 = vpack.c.b16 %v6201, %v6199
    %v6448 = vpack.c.b16 %v6204, %v6202
    %v6449 = vpack.c.b16 %v6205, %v6203
    %v6450 = vpack.c.b16 %v6208, %v6206
    %v6451 = vpack.c.b16 %v6209, %v6207
    %v6452 = vpack.c.b16 %v6212, %v6210
    %v6453 = vpack.c.b16 %v6213, %v6211
    %v6454 = vpack.c.b16 %v6216, %v6214
    %v6455 = vpack.c.b16 %v6217, %v6215
    %v6456 = vpack.c.b16 %v6220, %v6218
    %v6457 = vpack.c.b16 %v6221, %v6219
    %v6458 = vpack.c.b16 %v6224, %v6222
    %v6459 = vpack.c.b16 %v6225, %v6223
    %v6460 = vpack.c.b16 %v6228, %v6226
    %v6461 = vpack.c.b16 %v6229, %v6227
    %v6462 = vpack.c.b16 %v6232, %v6230
    %v6463 = vpack.c.b16 %v6233, %v6231
    %v6464 = vpack.c.b16 %v6236, %v6234
    %v6465 = vpack.c.b16 %v6237, %v6235
    %v6466 = vpack.c.b16 %v6240, %v6238
    %v6467 = vpack.c.b16 %v6241, %v6239
    %v6468 = vpack.c.b16 %v6244, %v6242
    %v6469 = vpack.c.b16 %v6245, %v6243
    %v6470 = vpack.c.b16 %v6248, %v6246
    %v6471 = vpack.c.b16 %v6249, %v6247
    %v6472 = vpack.c.b16 %v6252, %v6250
    %v6473 = vpack.c.b16 %v6253, %v6251
    %v6474 = vpack.c.b16 %v6256, %v6254
    %v6475 = vpack.c.b16 %v6257, %v6255
    %v6476 = vpack.c.b16 %v6260, %v6258
    %v6477 = vpack.c.b16 %v6261, %v6259
    %v6478 = vpack.c.b16 %v6264, %v6262
    %v6479 = vpack.c.b16 %v6265, %v6263
    %v6480 = vpack.c.b16 %v6268, %v6266
    %v6481 = vpack.c.b16 %v6269, %v6267
    %v6482 = vpack.c.b16 %v6272, %v6270
    %v6483 = vpack.c.b16 %v6273, %v6271
    %v6484 = vpack.c.b16 %v6276, %v6274
    %v6485 = vpack.c.b16 %v6277, %v6275
    %v6486 = vpack.c.b16 %v6280, %v6278
    %v6487 = vpack.c.b16 %v6281, %v6279
    %v6488 = vpack.c.b16 %v6284, %v6282
    %v6489 = vpack.c.b16 %v6285, %v6283
    %v6490 = vpack.c.b16 %v6288, %v6286
    %v6491 = vpack.c.b16 %v6289, %v6287
    %v6492 = vpack.c.b16 %v6292, %v6290
    %v6493 = vpack.c.b16 %v6293, %v6291
    %v6494 = vpack.c.b16 %v6296, %v6294
    %v6495 = vpack.c.b16 %v6297, %v6295
    %v6496 = vpack.c.b16 %v6300, %v6298
    %v6497 = vpack.c.b16 %v6301, %v6299
    %v6498 = vpack.c.b16 %v6304, %v6302
    %v6499 = vpack.c.b16 %v6305, %v6303
    %v6500 = vpack.c.b16 %v6308, %v6306
    %v6501 = vpack.c.b16 %v6309, %v6307
    %v6502 = vpack.c.b16 %v6312, %v6310
    %v6503 = vpack.c.b16 %v6313, %v6311
    %v6504 = vpack.c.b16 %v6316, %v6314
    %v6505 = vpack.c.b16 %v6317, %v6315
    %v6506 = vpack.c.b16 %v6320, %v6318
    %v6507 = vpack.c.b16 %v6321, %v6319
    %v6508 = vpack.c.b16 %v6324, %v6322
    %v6509 = vpack.c.b16 %v6325, %v6323
    %v6510 = vpack.c.b16 %v6328, %v6326
    %v6511 = vpack.c.b16 %v6329, %v6327
    %v6512 = vpack.c.b16 %v6332, %v6330
    %v6513 = vpack.c.b16 %v6333, %v6331
    %v6514 = vpack.c.b16 %v6336, %v6334
    %v6515 = vpack.c.b16 %v6337, %v6335
    %v6516 = vpack.c.b16 %v6340, %v6338
    %v6517 = vpack.c.b16 %v6341, %v6339
    %v6518 = vpack.c.b16 %v6344, %v6342
    %v6519 = vpack.c.b16 %v6345, %v6343
    %v6520 = vpack.c.b16 %v6348, %v6346
    %v6521 = vpack.c.b16 %v6349, %v6347
    %v6522 = vpack.c.b16 %v6352, %v6350
    %v6523 = vpack.c.b16 %v6353, %v6351
    %v6524 = vpack.c.b16 %v6356, %v6354
    %v6525 = vpack.c.b16 %v6357, %v6355
    %v6526 = vpack.c.b16 %v6360, %v6358
    %v6527 = vpack.c.b16 %v6361, %v6359
    %v6528 = vpack.c.b16 %v6364, %v6362
    %v6529 = vpack.c.b16 %v6365, %v6363
    %v6530 = vpack.c.b16 %v6368, %v6366
    %v6531 = vpack.c.b16 %v6369, %v6367
    %v6532 = vpack.c.b16 %v6372, %v6370
    %v6533 = vpack.c.b16 %v6373, %v6371
    %v6534 = vpack.c.b16 %v6376, %v6374
    %v6535 = vpack.c.b16 %v6377, %v6375
    %v6536 = vpack.c.b16 %v6380, %v6378
    %v6537 = vpack.c.b16 %v6381, %v6379
    %v6538 = vpack.c.b16 %v6384, %v6382
    %v6539 = vpack.c.b16 %v6385, %v6383
    %v6540 = vpack.c.b16 %v6388, %v6386
    %v6541 = vpack.c.b16 %v6389, %v6387
    %v6542 = vpack.c.b16 %v6392, %v6390
    %v6543 = vpack.c.b16 %v6393, %v6391
    %v6544 = vpack.c.b16 %v6396, %v6394
    %v6545 = vpack.c.b16 %v6397, %v6395
    %v6546 = vpack.c.b16 %v6400, %v6398
    %v6547 = vpack.c.b16 %v6401, %v6399
    %v6548 = vpack.c.b16 %v6404, %v6402
    %v6549 = vpack.c.b16 %v6405, %v6403
    %v6550 = vpack.c.b16 %v6408, %v6406
    %v6551 = vpack.c.b16 %v6409, %v6407
    %v6552 = vpack.c.b16 %v6412, %v6410
    %v6553 = vpack.c.b16 %v6413, %v6411
    %v6554 = vpack.c.b16 %v6416, %v6414
    %v6555 = vpack.c.b16 %v6417, %v6415
    %v6556 = vpack.c.b16 %v6420, %v6418
    %v6557 = vpack.c.b16 %v6421, %v6419
    %v6558 = vpack.c.b16 %v6424, %v6422
    %v6559 = vpack.c.b16 %v6425, %v6423
    %v6560 = vpack.c.b16 %v6428, %v6426
    %v6561 = vpack.c.b16 %v6429, %v6427
    %v6562 = vpack.c.b16 %v6432, %v6430
    %v6563 = vpack.c.b16 %v6433, %v6431
    %v6564 = vpack.c.b16 %v6436, %v6434
    %v6565 = vpack.c.b16 %v6437, %v6435
    %6694 = vmatprep.subr.bf16.mxu0 %v6453
    %6695 = vmatpush1.bf16.msra.mxu0 %v6452
    %6696 = vmatprep.subr.bf16.mxu0 %v6451
    %6697 = vmatpush1.bf16.msra.mxu0 %v6450
    %6698 = vmatprep.subr.bf16.mxu0 %v6449
    %6699 = vmatpush1.bf16.msra.mxu0 %v6448
    %6700 = vmatprep.subr.bf16.mxu0 %v6447
    %6701 = vmatpush1.bf16.msra.mxu0 %v6446
    %6702 = vmatprep.subr.bf16.mxu0 %v6445
    %6703 = vmatpush1.bf16.msra.mxu0 %v6444
    %6704 = vmatprep.subr.bf16.mxu0 %v6443
    %6705 = vmatpush1.bf16.msra.mxu0 %v6442
    %6706 = vmatprep.subr.bf16.mxu0 %v6441
    %6707 = vmatpush1.bf16.msra.mxu0 %v6440
    %6708 = vmatprep.subr.bf16.mxu0 %v6439
    %6709 = vmatpush1.bf16.msra.mxu0 %v6438
    %6710 = vmatprep.subr.bf16.mxu0 %v6469
    %6711 = vmatpush2.bf16.msra.mxu0 %v6468
    %6712 = vmatprep.subr.bf16.mxu0 %v6467
    %6713 = vmatpush2.bf16.msra.mxu0 %v6466
    %6714 = vmatprep.subr.bf16.mxu0 %v6465
    %6715 = vmatpush2.bf16.msra.mxu0 %v6464
    %6716 = vmatprep.subr.bf16.mxu0 %v6463
    %6717 = vmatpush2.bf16.msra.mxu0 %v6462
    %6718 = vmatprep.subr.bf16.mxu0 %v6461
    %6719 = vmatpush2.bf16.msra.mxu0 %v6460
    %6720 = vmatprep.subr.bf16.mxu0 %v6459
    %6721 = vmatpush2.bf16.msra.mxu0 %v6458
    %6722 = vmatprep.subr.bf16.mxu0 %v6457
    %6723 = vmatpush2.bf16.msra.mxu0 %v6456
    %6724 = vmatprep.subr.bf16.mxu0 %v6455
    %6725 = vmatpush2.bf16.msra.mxu0 %v6454
    %6726 = vmatprep.mubr.bf16.mxu0 %v5907
    %6727 = vmatmul.mubr.bf16.gmra.mxu0 %v5906
    %v6728 = vpop.f32.mrf.mxu0
    %v6729 = vadd.f32 %v6047, %v6728
    %v6730 = vpop.f32.mrf.mxu0
    %v6731 = vadd.f32 %v6051, %v6730
    %v6732 = vpop.f32.mrf.mxu0
    %v6733 = vpop.f32.mrf.mxu0
    %6734 = vdwg.mxu0
    %6735 = vmatprep.subr.bf16.mxu0 %v6485
    %6736 = vmatpush1.bf16.msra.mxu0 %v6484
    %6737 = vmatprep.subr.bf16.mxu0 %v6483
    %6738 = vmatpush1.bf16.msra.mxu0 %v6482
    %6739 = vmatprep.subr.bf16.mxu0 %v6481
    %6740 = vmatpush1.bf16.msra.mxu0 %v6480
    %6741 = vmatprep.subr.bf16.mxu0 %v6479
    %6742 = vmatpush1.bf16.msra.mxu0 %v6478
    %6743 = vmatprep.subr.bf16.mxu0 %v6477
    %6744 = vmatpush1.bf16.msra.mxu0 %v6476
    %6745 = vmatprep.subr.bf16.mxu0 %v6475
    %6746 = vmatpush1.bf16.msra.mxu0 %v6474
    %6747 = vmatprep.subr.bf16.mxu0 %v6473
    %6748 = vmatpush1.bf16.msra.mxu0 %v6472
    %6749 = vmatprep.subr.bf16.mxu0 %v6471
    %6750 = vmatpush1.bf16.msra.mxu0 %v6470
    %6751 = vmatprep.subr.bf16.mxu0 %v6501
    %6752 = vmatpush2.bf16.msra.mxu0 %v6500
    %6753 = vmatprep.subr.bf16.mxu0 %v6499
    %6754 = vmatpush2.bf16.msra.mxu0 %v6498
    %6755 = vmatprep.subr.bf16.mxu0 %v6497
    %6756 = vmatpush2.bf16.msra.mxu0 %v6496
    %6757 = vmatprep.subr.bf16.mxu0 %v6495
    %6758 = vmatpush2.bf16.msra.mxu0 %v6494
    %6759 = vmatprep.subr.bf16.mxu0 %v6493
    %6760 = vmatpush2.bf16.msra.mxu0 %v6492
    %6761 = vmatprep.subr.bf16.mxu0 %v6491
    %6762 = vmatpush2.bf16.msra.mxu0 %v6490
    %6763 = vmatprep.subr.bf16.mxu0 %v6489
    %6764 = vmatpush2.bf16.msra.mxu0 %v6488
    %6765 = vmatprep.subr.bf16.mxu0 %v6487
    %6766 = vmatpush2.bf16.msra.mxu0 %v6486
    %6767 = vmatprep.mubr.bf16.mxu0 %v5909
    %6768 = vmatmul.mubr.bf16.gmra.mxu0 %v5908
    %v6769 = vpop.f32.mrf.mxu0
    %v6770 = vadd.f32 %v6729, %v6769
    %v6771 = vpop.f32.mrf.mxu0
    %v6772 = vadd.f32 %v6731, %v6771
    %v6773 = vpop.f32.mrf.mxu0
    %v6774 = vpop.f32.mrf.mxu0
    %6775 = vdwg.mxu0
    %6776 = vmatprep.subr.bf16.mxu0 %v6517
    %6777 = vmatpush1.bf16.msra.mxu0 %v6516
    %6778 = vmatprep.subr.bf16.mxu0 %v6515
    %6779 = vmatpush1.bf16.msra.mxu0 %v6514
    %6780 = vmatprep.subr.bf16.mxu0 %v6513
    %6781 = vmatpush1.bf16.msra.mxu0 %v6512
    %6782 = vmatprep.subr.bf16.mxu0 %v6511
    %6783 = vmatpush1.bf16.msra.mxu0 %v6510
    %6784 = vmatprep.subr.bf16.mxu0 %v6509
    %6785 = vmatpush1.bf16.msra.mxu0 %v6508
    %6786 = vmatprep.subr.bf16.mxu0 %v6507
    %6787 = vmatpush1.bf16.msra.mxu0 %v6506
    %6788 = vmatprep.subr.bf16.mxu0 %v6505
    %6789 = vmatpush1.bf16.msra.mxu0 %v6504
    %6790 = vmatprep.subr.bf16.mxu0 %v6503
    %6791 = vmatpush1.bf16.msra.mxu0 %v6502
    %6792 = vmatprep.subr.bf16.mxu0 %v6533
    %6793 = vmatpush2.bf16.msra.mxu0 %v6532
    %6794 = vmatprep.subr.bf16.mxu0 %v6531
    %6795 = vmatpush2.bf16.msra.mxu0 %v6530
    %6796 = vmatprep.subr.bf16.mxu0 %v6529
    %6797 = vmatpush2.bf16.msra.mxu0 %v6528
    %6798 = vmatprep.subr.bf16.mxu0 %v6527
    %6799 = vmatpush2.bf16.msra.mxu0 %v6526
    %6800 = vmatprep.subr.bf16.mxu0 %v6525
    %6801 = vmatpush2.bf16.msra.mxu0 %v6524
    %6802 = vmatprep.subr.bf16.mxu0 %v6523
    %6803 = vmatpush2.bf16.msra.mxu0 %v6522
    %6804 = vmatprep.subr.bf16.mxu0 %v6521
    %6805 = vmatpush2.bf16.msra.mxu0 %v6520
    %6806 = vmatprep.subr.bf16.mxu0 %v6519
    %6807 = vmatpush2.bf16.msra.mxu0 %v6518
    %6808 = vmatprep.mubr.bf16.mxu0 %v5911
    %6809 = vmatmul.mubr.bf16.gmra.mxu0 %v5910
    %v6810 = vpop.f32.mrf.mxu0
    %v6811 = vadd.f32 %v6770, %v6810
    %v6812 = vpop.f32.mrf.mxu0
    %v6813 = vadd.f32 %v6772, %v6812
    %v6814 = vpop.f32.mrf.mxu0
    %v6815 = vpop.f32.mrf.mxu0
    %6816 = vdwg.mxu0
    %6817 = vmatprep.subr.bf16.mxu0 %v6549
    %6818 = vmatpush1.bf16.msra.mxu0 %v6548
    %6819 = vmatprep.subr.bf16.mxu0 %v6547
    %6820 = vmatpush1.bf16.msra.mxu0 %v6546
    %6821 = vmatprep.subr.bf16.mxu0 %v6545
    %6822 = vmatpush1.bf16.msra.mxu0 %v6544
    %6823 = vmatprep.subr.bf16.mxu0 %v6543
    %6824 = vmatpush1.bf16.msra.mxu0 %v6542
    %6825 = vmatprep.subr.bf16.mxu0 %v6541
    %6826 = vmatpush1.bf16.msra.mxu0 %v6540
    %6827 = vmatprep.subr.bf16.mxu0 %v6539
    %6828 = vmatpush1.bf16.msra.mxu0 %v6538
    %6829 = vmatprep.subr.bf16.mxu0 %v6537
    %6830 = vmatpush1.bf16.msra.mxu0 %v6536
    %6831 = vmatprep.subr.bf16.mxu0 %v6535
    %6832 = vmatpush1.bf16.msra.mxu0 %v6534
    %6833 = vmatprep.subr.bf16.mxu0 %v6565
    %6834 = vmatpush2.bf16.msra.mxu0 %v6564
    %6835 = vmatprep.subr.bf16.mxu0 %v6563
    %6836 = vmatpush2.bf16.msra.mxu0 %v6562
    %6837 = vmatprep.subr.bf16.mxu0 %v6561
    %6838 = vmatpush2.bf16.msra.mxu0 %v6560
    %6839 = vmatprep.subr.bf16.mxu0 %v6559
    %6840 = vmatpush2.bf16.msra.mxu0 %v6558
    %6841 = vmatprep.subr.bf16.mxu0 %v6557
    %6842 = vmatpush2.bf16.msra.mxu0 %v6556
    %6843 = vmatprep.subr.bf16.mxu0 %v6555
    %6844 = vmatpush2.bf16.msra.mxu0 %v6554
    %6845 = vmatprep.subr.bf16.mxu0 %v6553
    %6846 = vmatpush2.bf16.msra.mxu0 %v6552
    %6847 = vmatprep.subr.bf16.mxu0 %v6551
    %6848 = vmatpush2.bf16.msra.mxu0 %v6550
    %6849 = vmatprep.mubr.bf16.mxu0 %v5913
    %6850 = vmatmul.mubr.bf16.gmra.mxu0 %v5912
    %v6851 = vpop.f32.mrf.mxu0
    %v6852 = vadd.f32 %v6811, %v6851
    %v6853 = vpop.f32.mrf.mxu0
    %v6854 = vadd.f32 %v6813, %v6853
    %v6855 = vpop.f32.mrf.mxu0
    %v6856 = vpop.f32.mrf.mxu0
    %6857 = vdwg.mxu0
    %v6858 = vsub.f32 0.0, %v6852
    %v6859 = vsub.f32 0.0, %v6854
    %v6860 = vmul.f32 %v6858, 1.442695
    %v6861 = vpow.pop %v6860
    %v6862 = vmul.f32 %v6859, 1.442695
    %v6863 = vpow.pop %v6862
    %v6864 = vadd.f32 %v6861, 1.0
    %v6865 = vadd.f32 %v6863, 1.0
    %v6866 = vrcp.pop %v6864
    %v6867 = vmul.f32 1.0, %v6866
    %v6868 = vrcp.pop %v6865
    %v6869 = vmul.f32 1.0, %v6868
    %6870 = vst [vmem:[%s13] sm:$0xff] %v6867
    %6871 = vst [vmem:[%s13 + $0x8] sm:$0xff] %v6869
    // Predicated region
    $region78: #{autoencoder_forward.1} parent=1 // pred_check
      _
    $region79: #{autoencoder_forward.1} parent=1 // pred_check_branch
      %6873 = sbr.rel (0) target = $region81
    $region80: #{autoencoder_forward.1} parent=1 // pred_region
      _
    $region81: #{autoencoder_forward.1} parent=1 // pred_fallthru
      _
    // Predicated region
    $region82: #{autoencoder_forward.1} parent=1 // pred_check
      _
    $region83: #{autoencoder_forward.1} parent=1 // pred_check_branch
      %6875 = sbr.rel (0) target = $region85
    $region84: #{autoencoder_forward.1} parent=1 // pred_region
      _
    $region85: #{autoencoder_forward.1} parent=1 // pred_fallthru
      _
    %6876 = vsyncpa [#allocation3], 1
    %6877 = vsyncpa [#allocation5], 1
    %6878 = vsyncpa [#allocation8], 1
    %6879 = vsyncpa [#allocation11], 1

</llo_original>
